<compile_context>
chip_gen: v6e
topology: v6e:2x2x1
jax: 0.10.0
libtpu: 0.0.40
codegen_flags: <defaults>
</compile_context>

<pallas_src>
import functools

import jax
import jax.numpy as jnp
import numpy as np
from jax import lax
from jax.experimental import pallas as pl
from jax.experimental.pallas import tpu as pltpu


# ------------------------------- Pallas kernel --------------------------------

def _spade_fused_kernel(seg_ref, x_ref, mu_ref, rstd_ref, w1_ref, b1_ref,
                        wgb_ref, bgb_ref, out_ref, act_scr,
                        *, W, TR, C, Cp, NH, GUARD):
    # seg_ref : (1, 1, Cinp, Sg)  zero-row-padded segmap rows for this tile, channel-major,
    #                             flattened (TR+4, W) row-major, content at lane offset 1.
    # x_ref   : (1, C, T)         channel-major input tile (T = TR*W)
    # mu_ref  : (1, C, 1)         per-(n,c) instance mean
    # rstd_ref: (1, C, 1)         per-(n,c) 1/sqrt(var + eps)
    # w1_ref  : (9, NH, Cinp)     mlp_shared 3x3 weights per tap, transposed to (NH, Cin)
    # b1_ref  : (NH, 1)
    # wgb_ref : (9, 2*Cp, NH)     [gamma | beta] 3x3 weights per tap, transposed to (Cout, NH)
    # bgb_ref : (2*Cp, 1)
    # out_ref : (1, C, T)
    # act_scr : (NH, GUARD+A+128) VMEM scratch for the conv1 activation, A = (TR+2)*W
    r = pl.program_id(1)
    T = TR * W
    A = (TR + 2) * W

    # Lane masks for taps that would read across a row edge (zero padding in W).
    col_a = lax.broadcasted_iota(jnp.int32, (1, A), 1) % W
    col_t = lax.broadcasted_iota(jnp.int32, (1, T), 1) % W

    # ---- conv1 (mlp_shared) + ReLU: 9 shifted (NH,Cinp)x(Cinp,A) matmuls, lane-dense output ----
    def seg_win(s):                                        # activation-flat shift s
        return seg_ref[0, 0, :, 1 + s:1 + s + A]           # (Cinp, A), static slice

    actv = None
    for dx in range(3):
        part = None
        for dy in range(3):
            p = jnp.dot(w1_ref[dy * 3 + dx], seg_win(dy * W + dx - 1),
                        preferred_element_type=jnp.float32)
            part = p if part is None else part + p
        if dx == 0:                                        # left column uses zero pad
            part = jnp.where(col_a > 0, part, 0.0)
        elif dx == 2:                                      # right column uses zero pad
            part = jnp.where(col_a < W - 1, part, 0.0)
        actv = part if actv is None else actv + part
    actv = jnp.maximum(actv + b1_ref[...], 0.0)            # (NH, A), f32

    # ---- stash the activation in VMEM (lane-aligned store at offset GUARD) ----
    act_scr[:, GUARD:GUARD + A] = actv.astype(act_scr.dtype)
    zc = jnp.zeros((NH, 1), act_scr.dtype)
    act_scr[:, GUARD - 1:GUARD] = zc                       # touched guard lanes (reads masked anyway)
    act_scr[:, GUARD + A:GUARD + A + 1] = zc
    zrow = jnp.zeros((NH, W), act_scr.dtype)

    @pl.when(r == 0)                                       # halo row above the image -> zero pad
    def _():
        act_scr[:, GUARD:GUARD + W] = zrow

    @pl.when(r == pl.num_programs(1) - 1)                  # halo row below the image -> zero pad
    def _():
        act_scr[:, GUARD + (TR + 1) * W:GUARD + (TR + 2) * W] = zrow

    # ---- conv2 (gamma | beta): 9 shifted (2Cp,NH)x(NH,T) matmuls, result already (2Cp, T) ----
    acc = None
    for dx in range(3):
        part = None
        for dy in range(3):
            s = dy * W + dx - 1
            p = jnp.dot(wgb_ref[dy * 3 + dx], act_scr[:, GUARD + s:GUARD + s + T],
                        preferred_element_type=jnp.float32)
            part = p if part is None else part + p
        if dx == 0:
            part = jnp.where(col_t > 0, part, 0.0)
        elif dx == 2:
            part = jnp.where(col_t < W - 1, part, 0.0)
        acc = part if acc is None else acc + part
    acc = acc + bgb_ref[...]                               # (2Cp, T)

    gamma = acc[:C]                                        # (C, T)
    beta = acc[Cp:Cp + C]                                  # (C, T)

    xn = (x_ref[0] - mu_ref[0]) * rstd_ref[0]              # InstanceNorm, (C, T)
    out_ref[0] = xn * (1.0 + gamma) + beta


# ---------------------------------- glue JAX -----------------------------------

def _nearest_resize(seg, H, W):
    # seg: (N, C, Hs, Ws) -> (N, C, H, W); matches F.interpolate(mode='nearest') for the
    # integer-factor case (floor index).
    Hs, Ws = seg.shape[2], seg.shape[3]
    iy = (jnp.arange(H) * Hs) // H
    ix = (jnp.arange(W) * Ws) // W
    return seg[:, :, iy[:, None], ix[None, :]]


def _round_up(v, m):
    return (v + m - 1) // m * m


def _pick_tile_rows(H, W, max_positions, want_multi):
    # Largest row-tile whose flattened size is lane-friendly and under the budget.
    valid = [tr for tr in range(1, H + 1)
             if H % tr == 0 and (tr == H or (tr * W) % 128 == 0)]
    under = [tr for tr in valid if tr * W <= max_positions] or [min(valid)]
    if want_multi:                     # v7x: keep both TensorCores busy even at N == 1
        multi = [tr for tr in under if H // tr >= 2]
        if multi:
            return max(multi)
    return max(under)


def _vmem_limit_bytes():
    try:
        cap = pltpu.get_tpu_info().vmem_capacity_bytes
    except Exception:
        cap = 128 * 1024 * 1024
    return int(min(100 * 1024 * 1024, cap * 3 // 4))   # ~48 MiB on v7x, ~96 MiB on v5e/v6e


def spade_forward(x, segmap, params, max_tile_positions=4096, use_bf16=False):
    # x: (N, norm_nc, H, W), segmap: (N, label_nc, Hs, Ws)  -- PyTorch NCHW, use_emb=False path
    N, C, H, W = x.shape
    Cin = segmap.shape[1]
    NH = params['w1'].shape[0]                      # nhidden = 128 for dim=2
    HW = H * W

    TR = _pick_tile_rows(H, W, max_tile_positions, want_multi=(N < 2))
    nT = H // TR
    T = TR * W
    A = (TR + 2) * W
    Cinp = max(_round_up(Cin, 8), 8)
    Cp = max(_round_up(C, 8), 8)
    GUARD = 128
    cdt = jnp.bfloat16 if use_bf16 else jnp.float32

    # segmap path: nearest resize -> channel pad -> 2-row zero halo -> overlapping row tiles,
    # channel-major and flattened row-major (width W) with a 1-lane front guard.
    seg = _nearest_resize(segmap.astype(jnp.float32), H, W)                 # (N, Cin, H, W)
    seg = jnp.pad(seg, ((0, 0), (0, Cinp - Cin), (2, 2), (0, 0)))           # (N, Cinp, H+4, W)
    tiles = jnp.stack([seg[:, :, r * TR:r * TR + TR + 4, :] for r in range(nT)], axis=1)
    tiles = tiles.reshape(N, nT, Cinp, (TR + 4) * W)
    Sg = _round_up((TR + 4) * W + 2, 128)
    seg_tiles = jnp.pad(tiles, ((0, 0), (0, 0), (0, 0),
                                (1, Sg - (TR + 4) * W - 1))).astype(cdt)    # (N, nT, Cinp, Sg)

    # weights: per-tap, pre-transposed so every matmul output is lane-dense
    w1T = jnp.transpose(params['w1'], (2, 3, 0, 1)).reshape(9, NH, Cin)
    w1T = jnp.pad(w1T, ((0, 0), (0, 0), (0, Cinp - Cin))).astype(cdt)       # (9, NH, Cinp)
    b1 = params['b1'].reshape(NH, 1).astype(jnp.float32)

    def gb_taps(w):                                                          # (C, NH, 3, 3) -> (9, Cp, NH)
        t = jnp.transpose(w, (2, 3, 0, 1)).reshape(9, C, NH)
        return jnp.pad(t, ((0, 0), (0, Cp - C), (0, 0)))

    wgbT = jnp.concatenate([gb_taps(params['wg']), gb_taps(params['wb'])],
                           axis=1).astype(cdt)                               # (9, 2Cp, NH)
    bgb = jnp.concatenate([jnp.pad(params['bg'], (0, Cp - C)),
                           jnp.pad(params['bb'], (0, Cp - C))]).reshape(2 * Cp, 1).astype(jnp.float32)

    # per-(n,c) InstanceNorm stats (tiny reduction, hoisted out of the hot kernel)
    xf = x.astype(jnp.float32)
    mu = jnp.mean(xf, axis=(2, 3))
    var = jnp.mean(jnp.square(xf - mu[:, :, None, None]), axis=(2, 3))
    rstd = lax.rsqrt(var + 1e-5)
    mu = mu.reshape(N, C, 1)
    rstd = rstd.reshape(N, C, 1)

    x_r = xf.reshape(N, C, HW)                                               # channel-major, free reshape

    kernel = functools.partial(_spade_fused_kernel, W=W, TR=TR, C=C, Cp=Cp, NH=NH, GUARD=GUARD)

    out = pl.pallas_call(
        kernel,
        out_shape=jax.ShapeDtypeStruct((N, C, HW), jnp.float32),
        grid=(N, nT),
        in_specs=[
            pl.BlockSpec((1, 1, Cinp, Sg), lambda n, r: (n, r, 0, 0)),   # segmap tile (with halo)
            pl.BlockSpec((1, C, T), lambda n, r: (n, 0, r)),             # x tile (channel-major)
            pl.BlockSpec((1, C, 1), lambda n, r: (n, 0, 0)),             # mu
            pl.BlockSpec((1, C, 1), lambda n, r: (n, 0, 0)),             # rstd
            pl.BlockSpec((9, NH, Cinp), lambda n, r: (0, 0, 0)),         # mlp_shared weights
            pl.BlockSpec((NH, 1), lambda n, r: (0, 0)),                  # mlp_shared bias
            pl.BlockSpec((9, 2 * Cp, NH), lambda n, r: (0, 0, 0)),       # gamma|beta weights
            pl.BlockSpec((2 * Cp, 1), lambda n, r: (0, 0)),              # gamma|beta bias
        ],
        out_specs=pl.BlockSpec((1, C, T), lambda n, r: (n, 0, r)),
        scratch_shapes=[pltpu.VMEM((NH, GUARD + A + 128), cdt)],
        compiler_params=pltpu.CompilerParams(
            dimension_semantics=("parallel", "parallel"),
            vmem_limit_bytes=_vmem_limit_bytes()),
    )(seg_tiles, x_r, mu, rstd, w1T, b1, wgbT, bgb)

    return out.reshape(N, C, H, W)                                           # already NCHW


# ----------------------------- pure-JAX reference ------------------------------

def spade_reference(x, segmap, params):
    N, C, H, W = x.shape
    mu = jnp.mean(x, axis=(2, 3), keepdims=True)
    var = jnp.mean((x - mu) ** 2, axis=(2, 3), keepdims=True)
    normed = (x - mu) / jnp.sqrt(var + 1e-5)
    seg = _nearest_resize(segmap, H, W)

    def conv(inp, w, b):
        y = lax.conv_general_dilated(inp, w, (1, 1), ((1, 1), (1, 1)),
                                     dimension_numbers=('NCHW', 'OIHW', 'NCHW'))
        return y + b.reshape(1, -1, 1, 1)

    actv = jnp.maximum(conv(seg, params['w1'], params['b1']), 0.0)
    gamma = conv(actv, params['wg'], params['bg'])
    beta = conv(actv, params['wb'], params['bb'])
    return normed * (1.0 + gamma) + beta


# ------------------------------------ main -------------------------------------

if __name__ == "__main__":
    key = jax.random.PRNGKey(0)
    norm_nc, label_nc, nhidden = 4, 3, 128            # nhidden fixed by the module (dim=2)
    N, H, W = 2, 16, 16
    Hs, Ws = 8, 8                                     # segmap resolution (nearest-upsampled)
    ks = jax.random.split(key, 8)

    x = jax.random.normal(ks[0], (N, norm_nc, H, W), jnp.float32)
    segmap = jax.random.normal(ks[1], (N, label_nc, Hs, Ws), jnp.float32)

    params = {
        'w1': jax.random.normal(ks[2], (nhidden, label_nc, 3, 3), jnp.float32) * 0.05,
        'b1': jax.random.normal(ks[3], (nhidden,), jnp.float32) * 0.05,
        'wg': jax.random.normal(ks[4], (norm_nc, nhidden, 3, 3), jnp.float32) * 0.05,
        'bg': jax.random.normal(ks[5], (norm_nc,), jnp.float32) * 0.05,
        'wb': jax.random.normal(ks[6], (norm_nc, nhidden, 3, 3), jnp.float32) * 0.05,
        'bb': jax.random.normal(ks[7], (norm_nc,), jnp.float32) * 0.05,
    }

    ref = spade_reference(x, segmap, params)

    # Multi-tile f32 path (TR=8 -> 2 row tiles per sample): exercises halo rows / boundary masks.
    out_tiled = jax.jit(functools.partial(spade_forward, max_tile_positions=128))(x, segmap, params)
    jax.block_until_ready(out_tiled)
    np.testing.assert_allclose(np.asarray(out_tiled), np.asarray(ref), rtol=2e-3, atol=2e-3)

    # Default tile budget, f32 (single tile per sample at this small size).
    out_full = jax.jit(spade_forward)(x, segmap, params)
    jax.block_until_ready(out_full)
    np.testing.assert_allclose(np.asarray(out_full), np.asarray(ref), rtol=2e-3, atol=2e-3)

    # bf16 MXU operands with f32 accumulation (perf option) -- looser tolerance.
    out_bf16 = jax.jit(functools.partial(spade_forward, use_bf16=True))(x, segmap, params)
    jax.block_until_ready(out_bf16)
    np.testing.assert_allclose(np.asarray(out_bf16), np.asarray(ref), rtol=3e-2, atol=3e-2)

    assert out_tiled.shape == out_full.shape == ref.shape == (N, norm_nc, H, W)
    print("KERNEL_OK")
</pallas_src>

<mosaic_0001>
module attributes {stable_mosaic.version = 11 : i64} {
  func.func @_spade_fused_kernel(%arg0: i32, %arg1: i32, %arg2: memref<1x1x8x256xf32, #tpu.memory_space<vmem>>, %arg3: memref<1x4x128xf32, #tpu.memory_space<vmem>>, %arg4: memref<1x4x1xf32, #tpu.memory_space<vmem>>, %arg5: memref<1x4x1xf32, #tpu.memory_space<vmem>>, %arg6: memref<9x128x8xf32, #tpu.memory_space<vmem>>, %arg7: memref<128x1xf32, #tpu.memory_space<vmem>>, %arg8: memref<9x16x128xf32, #tpu.memory_space<vmem>>, %arg9: memref<16x1xf32, #tpu.memory_space<vmem>>, %arg10: memref<1x4x128xf32, #tpu.memory_space<vmem>>, %arg11: memref<128x416xf32, #tpu.memory_space<vmem>>) attributes {dimension_semantics = [#tpu.dimension_semantics<parallel>, #tpu.dimension_semantics<parallel>], iteration_bounds = array<i64: 2, 2>, scalar_prefetch = 0 : i64, scratch_operands = 1 : i64, tpu.core_type = #tpu.core_type<tc>, window_params = [{transform_indices = @transform_0, window_bounds = array<i64: 1, 1, 8, 256>}, {transform_indices = @transform_1, window_bounds = array<i64: 1, 4, 128>}, {transform_indices = @transform_2, window_bounds = array<i64: 1, 4, 1>}, {transform_indices = @transform_3, window_bounds = array<i64: 1, 4, 1>}, {pipeline_mode = #tpu.pipeline_mode<synchronous>, transform_indices = @transform_4, window_bounds = array<i64: 9, 128, 8>}, {pipeline_mode = #tpu.pipeline_mode<synchronous>, transform_indices = @transform_5, window_bounds = array<i64: 128, 1>}, {pipeline_mode = #tpu.pipeline_mode<synchronous>, transform_indices = @transform_6, window_bounds = array<i64: 9, 16, 128>}, {pipeline_mode = #tpu.pipeline_mode<synchronous>, transform_indices = @transform_7, window_bounds = array<i64: 16, 1>}, {transform_indices = @transform_8, window_bounds = array<i64: 1, 4, 128>}]} {
    %0 = tpu.iota {dimensions = array<i32: 1>} : vector<1x160xi32>
    %c16_i32 = arith.constant 16 : i32
    %c0_i32 = arith.constant 0 : i32
    %1 = arith.cmpi eq, %c16_i32, %c0_i32 : i32
    %c1_i32 = arith.constant 1 : i32
    %2 = arith.select %1, %c1_i32, %c16_i32 : i32
    %3 = vector.broadcast %2 : i32 to vector<1x160xi32>
    %4 = arith.remsi %0, %3 : vector<1x160xi32>
    %c0_i32_0 = arith.constant 0 : i32
    %5 = vector.broadcast %c0_i32_0 : i32 to vector<1x160xi32>
    %6 = arith.cmpi ne, %4, %5 : vector<1x160xi32>
    %c0_i32_1 = arith.constant 0 : i32
    %7 = vector.broadcast %c0_i32_1 : i32 to vector<1x160xi32>
    %8 = arith.cmpi slt, %4, %7 : vector<1x160xi32>
    %c0_i32_2 = arith.constant 0 : i32
    %9 = arith.cmpi slt, %2, %c0_i32_2 : i32
    %10 = vector.broadcast %9 : i1 to vector<1x160xi1>
    %11 = vector.broadcast %10 : vector<1x160xi1> to vector<1x160xi1>
    %12 = arith.xori %8, %11 : vector<1x160xi1>
    %13 = arith.andi %12, %6 : vector<1x160xi1>
    %14 = vector.broadcast %2 : i32 to vector<1x160xi32>
    %15 = arith.addi %4, %14 : vector<1x160xi32>
    %16 = arith.select %13, %15, %4 : vector<1x160xi1>, vector<1x160xi32>
    %17 = tpu.iota {dimensions = array<i32: 1>} : vector<1x128xi32>
    %c16_i32_3 = arith.constant 16 : i32
    %c0_i32_4 = arith.constant 0 : i32
    %18 = arith.cmpi eq, %c16_i32_3, %c0_i32_4 : i32
    %c1_i32_5 = arith.constant 1 : i32
    %19 = arith.select %18, %c1_i32_5, %c16_i32_3 : i32
    %20 = vector.broadcast %19 : i32 to vector<1x128xi32>
    %21 = arith.remsi %17, %20 : vector<1x128xi32>
    %c0_i32_6 = arith.constant 0 : i32
    %22 = vector.broadcast %c0_i32_6 : i32 to vector<1x128xi32>
    %23 = arith.cmpi ne, %21, %22 : vector<1x128xi32>
    %c0_i32_7 = arith.constant 0 : i32
    %24 = vector.broadcast %c0_i32_7 : i32 to vector<1x128xi32>
    %25 = arith.cmpi slt, %21, %24 : vector<1x128xi32>
    %c0_i32_8 = arith.constant 0 : i32
    %26 = arith.cmpi slt, %19, %c0_i32_8 : i32
    %27 = vector.broadcast %26 : i1 to vector<1x128xi1>
    %28 = vector.broadcast %27 : vector<1x128xi1> to vector<1x128xi1>
    %29 = arith.xori %25, %28 : vector<1x128xi1>
    %30 = arith.andi %29, %23 : vector<1x128xi1>
    %31 = vector.broadcast %19 : i32 to vector<1x128xi32>
    %32 = arith.addi %21, %31 : vector<1x128xi32>
    %33 = arith.select %30, %32, %21 : vector<1x128xi1>, vector<1x128xi32>
    %c0 = arith.constant 0 : index
    %c0_9 = arith.constant 0 : index
    %c0_10 = arith.constant 0 : index
    %34 = vector.load %arg6[%c0, %c0_9, %c0_10] : memref<9x128x8xf32, #tpu.memory_space<vmem>>, vector<1x128x8xf32>
    %35 = vector.shape_cast %34 : vector<1x128x8xf32> to vector<128x8xf32>
    %c0_11 = arith.constant 0 : index
    %c0_12 = arith.constant 0 : index
    %c0_13 = arith.constant 0 : index
    %c0_14 = arith.constant 0 : index
    %36 = vector.load %arg2[%c0_11, %c0_12, %c0_13, %c0_14] : memref<1x1x8x256xf32, #tpu.memory_space<vmem>>, vector<1x1x8x160xf32>
    %37 = vector.shape_cast %36 : vector<1x1x8x160xf32> to vector<8x160xf32>
    %cst = arith.constant dense<0.000000e+00> : vector<128x160xf32>
    %38 = tpu.matmul %35, %37, %cst {dimension_numbers = #tpu.dot_dimension_numbers<[1], [0], [0], [1], [0, 0, 1, 1], [], []>} : vector<128x8xf32>, vector<8x160xf32>, vector<128x160xf32> -> vector<128x160xf32>
    %c3 = arith.constant 3 : index
    %c0_15 = arith.constant 0 : index
    %c0_16 = arith.constant 0 : index
    %39 = vector.load %arg6[%c3, %c0_15, %c0_16] : memref<9x128x8xf32, #tpu.memory_space<vmem>>, vector<1x128x8xf32>
    %40 = vector.shape_cast %39 : vector<1x128x8xf32> to vector<128x8xf32>
    %c0_17 = arith.constant 0 : index
    %c0_18 = arith.constant 0 : index
    %c0_19 = arith.constant 0 : index
    %c16 = arith.constant 16 : index
    %41 = vector.load %arg2[%c0_17, %c0_18, %c0_19, %c16] : memref<1x1x8x256xf32, #tpu.memory_space<vmem>>, vector<1x1x8x160xf32>
    %42 = vector.shape_cast %41 : vector<1x1x8x160xf32> to vector<8x160xf32>
    %cst_20 = arith.constant dense<0.000000e+00> : vector<128x160xf32>
    %43 = tpu.matmul %40, %42, %cst_20 {dimension_numbers = #tpu.dot_dimension_numbers<[1], [0], [0], [1], [0, 0, 1, 1], [], []>} : vector<128x8xf32>, vector<8x160xf32>, vector<128x160xf32> -> vector<128x160xf32>
    %44 = arith.addf %38, %43 : vector<128x160xf32>
    %c6 = arith.constant 6 : index
    %c0_21 = arith.constant 0 : index
    %c0_22 = arith.constant 0 : index
    %45 = vector.load %arg6[%c6, %c0_21, %c0_22] : memref<9x128x8xf32, #tpu.memory_space<vmem>>, vector<1x128x8xf32>
    %46 = vector.shape_cast %45 : vector<1x128x8xf32> to vector<128x8xf32>
    %c0_23 = arith.constant 0 : index
    %c0_24 = arith.constant 0 : index
    %c0_25 = arith.constant 0 : index
    %c32 = arith.constant 32 : index
    %47 = vector.load %arg2[%c0_23, %c0_24, %c0_25, %c32] : memref<1x1x8x256xf32, #tpu.memory_space<vmem>>, vector<1x1x8x160xf32>
    %48 = vector.shape_cast %47 : vector<1x1x8x160xf32> to vector<8x160xf32>
    %cst_26 = arith.constant dense<0.000000e+00> : vector<128x160xf32>
    %49 = tpu.matmul %46, %48, %cst_26 {dimension_numbers = #tpu.dot_dimension_numbers<[1], [0], [0], [1], [0, 0, 1, 1], [], []>} : vector<128x8xf32>, vector<8x160xf32>, vector<128x160xf32> -> vector<128x160xf32>
    %50 = arith.addf %44, %49 : vector<128x160xf32>
    %c0_i32_27 = arith.constant 0 : i32
    %51 = vector.broadcast %c0_i32_27 : i32 to vector<1x160xi32>
    %52 = arith.cmpi sgt, %16, %51 : vector<1x160xi32>
    %cst_28 = arith.constant 0.000000e+00 : f32
    %53 = vector.shape_cast %52 : vector<1x160xi1> to vector<1x160xi1>
    %54 = vector.broadcast %53 : vector<1x160xi1> to vector<128x160xi1>
    %55 = vector.broadcast %cst_28 : f32 to vector<128x160xf32>
    %56 = arith.select %54, %50, %55 : vector<128x160xi1>, vector<128x160xf32>
    %c1 = arith.constant 1 : index
    %c0_29 = arith.constant 0 : index
    %c0_30 = arith.constant 0 : index
    %57 = vector.load %arg6[%c1, %c0_29, %c0_30] : memref<9x128x8xf32, #tpu.memory_space<vmem>>, vector<1x128x8xf32>
    %58 = vector.shape_cast %57 : vector<1x128x8xf32> to vector<128x8xf32>
    %c0_31 = arith.constant 0 : index
    %c0_32 = arith.constant 0 : index
    %c0_33 = arith.constant 0 : index
    %c1_34 = arith.constant 1 : index
    %59 = vector.load %arg2[%c0_31, %c0_32, %c0_33, %c1_34] : memref<1x1x8x256xf32, #tpu.memory_space<vmem>>, vector<1x1x8x160xf32>
    %60 = vector.shape_cast %59 : vector<1x1x8x160xf32> to vector<8x160xf32>
    %cst_35 = arith.constant dense<0.000000e+00> : vector<128x160xf32>
    %61 = tpu.matmul %58, %60, %cst_35 {dimension_numbers = #tpu.dot_dimension_numbers<[1], [0], [0], [1], [0, 0, 1, 1], [], []>} : vector<128x8xf32>, vector<8x160xf32>, vector<128x160xf32> -> vector<128x160xf32>
    %c4 = arith.constant 4 : index
    %c0_36 = arith.constant 0 : index
    %c0_37 = arith.constant 0 : index
    %62 = vector.load %arg6[%c4, %c0_36, %c0_37] : memref<9x128x8xf32, #tpu.memory_space<vmem>>, vector<1x128x8xf32>
    %63 = vector.shape_cast %62 : vector<1x128x8xf32> to vector<128x8xf32>
    %c0_38 = arith.constant 0 : index
    %c0_39 = arith.constant 0 : index
    %c0_40 = arith.constant 0 : index
    %c17 = arith.constant 17 : index
    %64 = vector.load %arg2[%c0_38, %c0_39, %c0_40, %c17] : memref<1x1x8x256xf32, #tpu.memory_space<vmem>>, vector<1x1x8x160xf32>
    %65 = vector.shape_cast %64 : vector<1x1x8x160xf32> to vector<8x160xf32>
    %cst_41 = arith.constant dense<0.000000e+00> : vector<128x160xf32>
    %66 = tpu.matmul %63, %65, %cst_41 {dimension_numbers = #tpu.dot_dimension_numbers<[1], [0], [0], [1], [0, 0, 1, 1], [], []>} : vector<128x8xf32>, vector<8x160xf32>, vector<128x160xf32> -> vector<128x160xf32>
    %67 = arith.addf %61, %66 : vector<128x160xf32>
    %c7 = arith.constant 7 : index
    %c0_42 = arith.constant 0 : index
    %c0_43 = arith.constant 0 : index
    %68 = vector.load %arg6[%c7, %c0_42, %c0_43] : memref<9x128x8xf32, #tpu.memory_space<vmem>>, vector<1x128x8xf32>
    %69 = vector.shape_cast %68 : vector<1x128x8xf32> to vector<128x8xf32>
    %c0_44 = arith.constant 0 : index
    %c0_45 = arith.constant 0 : index
    %c0_46 = arith.constant 0 : index
    %c33 = arith.constant 33 : index
    %70 = vector.load %arg2[%c0_44, %c0_45, %c0_46, %c33] : memref<1x1x8x256xf32, #tpu.memory_space<vmem>>, vector<1x1x8x160xf32>
    %71 = vector.shape_cast %70 : vector<1x1x8x160xf32> to vector<8x160xf32>
    %cst_47 = arith.constant dense<0.000000e+00> : vector<128x160xf32>
    %72 = tpu.matmul %69, %71, %cst_47 {dimension_numbers = #tpu.dot_dimension_numbers<[1], [0], [0], [1], [0, 0, 1, 1], [], []>} : vector<128x8xf32>, vector<8x160xf32>, vector<128x160xf32> -> vector<128x160xf32>
    %73 = arith.addf %67, %72 : vector<128x160xf32>
    %74 = arith.addf %56, %73 : vector<128x160xf32>
    %c2 = arith.constant 2 : index
    %c0_48 = arith.constant 0 : index
    %c0_49 = arith.constant 0 : index
    %75 = vector.load %arg6[%c2, %c0_48, %c0_49] : memref<9x128x8xf32, #tpu.memory_space<vmem>>, vector<1x128x8xf32>
    %76 = vector.shape_cast %75 : vector<1x128x8xf32> to vector<128x8xf32>
    %c0_50 = arith.constant 0 : index
    %c0_51 = arith.constant 0 : index
    %c0_52 = arith.constant 0 : index
    %c2_53 = arith.constant 2 : index
    %77 = vector.load %arg2[%c0_50, %c0_51, %c0_52, %c2_53] : memref<1x1x8x256xf32, #tpu.memory_space<vmem>>, vector<1x1x8x160xf32>
    %78 = vector.shape_cast %77 : vector<1x1x8x160xf32> to vector<8x160xf32>
    %cst_54 = arith.constant dense<0.000000e+00> : vector<128x160xf32>
    %79 = tpu.matmul %76, %78, %cst_54 {dimension_numbers = #tpu.dot_dimension_numbers<[1], [0], [0], [1], [0, 0, 1, 1], [], []>} : vector<128x8xf32>, vector<8x160xf32>, vector<128x160xf32> -> vector<128x160xf32>
    %c5 = arith.constant 5 : index
    %c0_55 = arith.constant 0 : index
    %c0_56 = arith.constant 0 : index
    %80 = vector.load %arg6[%c5, %c0_55, %c0_56] : memref<9x128x8xf32, #tpu.memory_space<vmem>>, vector<1x128x8xf32>
    %81 = vector.shape_cast %80 : vector<1x128x8xf32> to vector<128x8xf32>
    %c0_57 = arith.constant 0 : index
    %c0_58 = arith.constant 0 : index
    %c0_59 = arith.constant 0 : index
    %c18 = arith.constant 18 : index
    %82 = vector.load %arg2[%c0_57, %c0_58, %c0_59, %c18] : memref<1x1x8x256xf32, #tpu.memory_space<vmem>>, vector<1x1x8x160xf32>
    %83 = vector.shape_cast %82 : vector<1x1x8x160xf32> to vector<8x160xf32>
    %cst_60 = arith.constant dense<0.000000e+00> : vector<128x160xf32>
    %84 = tpu.matmul %81, %83, %cst_60 {dimension_numbers = #tpu.dot_dimension_numbers<[1], [0], [0], [1], [0, 0, 1, 1], [], []>} : vector<128x8xf32>, vector<8x160xf32>, vector<128x160xf32> -> vector<128x160xf32>
    %85 = arith.addf %79, %84 : vector<128x160xf32>
    %c8 = arith.constant 8 : index
    %c0_61 = arith.constant 0 : index
    %c0_62 = arith.constant 0 : index
    %86 = vector.load %arg6[%c8, %c0_61, %c0_62] : memref<9x128x8xf32, #tpu.memory_space<vmem>>, vector<1x128x8xf32>
    %87 = vector.shape_cast %86 : vector<1x128x8xf32> to vector<128x8xf32>
    %c0_63 = arith.constant 0 : index
    %c0_64 = arith.constant 0 : index
    %c0_65 = arith.constant 0 : index
    %c34 = arith.constant 34 : index
    %88 = vector.load %arg2[%c0_63, %c0_64, %c0_65, %c34] : memref<1x1x8x256xf32, #tpu.memory_space<vmem>>, vector<1x1x8x160xf32>
    %89 = vector.shape_cast %88 : vector<1x1x8x160xf32> to vector<8x160xf32>
    %cst_66 = arith.constant dense<0.000000e+00> : vector<128x160xf32>
    %90 = tpu.matmul %87, %89, %cst_66 {dimension_numbers = #tpu.dot_dimension_numbers<[1], [0], [0], [1], [0, 0, 1, 1], [], []>} : vector<128x8xf32>, vector<8x160xf32>, vector<128x160xf32> -> vector<128x160xf32>
    %91 = arith.addf %85, %90 : vector<128x160xf32>
    %c15_i32 = arith.constant 15 : i32
    %92 = vector.broadcast %c15_i32 : i32 to vector<1x160xi32>
    %93 = arith.cmpi slt, %16, %92 : vector<1x160xi32>
    %cst_67 = arith.constant 0.000000e+00 : f32
    %94 = vector.shape_cast %93 : vector<1x160xi1> to vector<1x160xi1>
    %95 = vector.broadcast %94 : vector<1x160xi1> to vector<128x160xi1>
    %96 = vector.broadcast %cst_67 : f32 to vector<128x160xf32>
    %97 = arith.select %95, %91, %96 : vector<128x160xi1>, vector<128x160xf32>
    %98 = arith.addf %74, %97 : vector<128x160xf32>
    %c0_68 = arith.constant 0 : index
    %c0_69 = arith.constant 0 : index
    %99 = vector.load %arg7[%c0_68, %c0_69] : memref<128x1xf32, #tpu.memory_space<vmem>>, vector<128x1xf32>
    %100 = vector.broadcast %99 : vector<128x1xf32> to vector<128x160xf32>
    %101 = arith.addf %98, %100 : vector<128x160xf32>
    %cst_70 = arith.constant 0.000000e+00 : f32
    %102 = vector.broadcast %cst_70 : f32 to vector<128x160xf32>
    %103 = arith.maximumf %101, %102 : vector<128x160xf32>
    %c0_71 = arith.constant 0 : index
    %c128 = arith.constant 128 : index
    %104 = vector.load %arg11[%c0_71, %c128] : memref<128x416xf32, #tpu.memory_space<vmem>>, vector<128x160xf32>
    tpu.vector_store %arg11[%c0_71, %c128], %103 {strides = array<i32>} : memref<128x416xf32, #tpu.memory_space<vmem>>, vector<128x160xf32>,
    %cst_72 = arith.constant 0.000000e+00 : f32
    %105 = vector.broadcast %cst_72 : f32 to vector<128x1xf32>
    %c0_73 = arith.constant 0 : index
    %c127 = arith.constant 127 : index
    %106 = vector.load %arg11[%c0_73, %c127] : memref<128x416xf32, #tpu.memory_space<vmem>>, vector<128x1xf32>
    tpu.vector_store %arg11[%c0_73, %c127], %105 {strides = array<i32>} : memref<128x416xf32, #tpu.memory_space<vmem>>, vector<128x1xf32>,
    %c0_74 = arith.constant 0 : index
    %c288 = arith.constant 288 : index
    %107 = vector.load %arg11[%c0_74, %c288] : memref<128x416xf32, #tpu.memory_space<vmem>>, vector<128x1xf32>
    tpu.vector_store %arg11[%c0_74, %c288], %105 {strides = array<i32>} : memref<128x416xf32, #tpu.memory_space<vmem>>, vector<128x1xf32>,
    %cst_75 = arith.constant 0.000000e+00 : f32
    %108 = vector.broadcast %cst_75 : f32 to vector<128x16xf32>
    %c0_i32_76 = arith.constant 0 : i32
    %109 = arith.cmpi eq, %arg1, %c0_i32_76 : i32
    %110 = arith.extui %109 : i1 to i32
    %c0_i32_77 = arith.constant 0 : i32
    %111 = arith.cmpi ne, %110, %c0_i32_77 : i32
    scf.if %111 {
      %c0_146 = arith.constant 0 : index
      %c128_147 = arith.constant 128 : index
      %193 = vector.load %arg11[%c0_146, %c128_147] : memref<128x416xf32, #tpu.memory_space<vmem>>, vector<128x16xf32>
      tpu.vector_store %arg11[%c0_146, %c128_147], %108 {strides = array<i32>} : memref<128x416xf32, #tpu.memory_space<vmem>>, vector<128x16xf32>,
    } else {
    }
    %c1_i32_78 = arith.constant 1 : i32
    %112 = arith.cmpi eq, %arg1, %c1_i32_78 : i32
    %113 = arith.extui %112 : i1 to i32
    %c0_i32_79 = arith.constant 0 : i32
    %114 = arith.cmpi ne, %113, %c0_i32_79 : i32
    scf.if %114 {
      %c0_146 = arith.constant 0 : index
      %c272 = arith.constant 272 : index
      %193 = vector.load %arg11[%c0_146, %c272] : memref<128x416xf32, #tpu.memory_space<vmem>>, vector<128x16xf32>
      tpu.vector_store %arg11[%c0_146, %c272], %108 {strides = array<i32>} : memref<128x416xf32, #tpu.memory_space<vmem>>, vector<128x16xf32>,
    } else {
    }
    %c0_80 = arith.constant 0 : index
    %c0_81 = arith.constant 0 : index
    %c0_82 = arith.constant 0 : index
    %115 = vector.load %arg8[%c0_80, %c0_81, %c0_82] : memref<9x16x128xf32, #tpu.memory_space<vmem>>, vector<1x16x128xf32>
    %116 = vector.shape_cast %115 : vector<1x16x128xf32> to vector<16x128xf32>
    %c0_83 = arith.constant 0 : index
    %c127_84 = arith.constant 127 : index
    %117 = vector.load %arg11[%c0_83, %c127_84] : memref<128x416xf32, #tpu.memory_space<vmem>>, vector<128x128xf32>
    %cst_85 = arith.constant dense<0.000000e+00> : vector<16x128xf32>
    %118 = tpu.matmul %116, %117, %cst_85 {dimension_numbers = #tpu.dot_dimension_numbers<[1], [0], [0], [1], [0, 0, 1, 1], [], []>} : vector<16x128xf32>, vector<128x128xf32>, vector<16x128xf32> -> vector<16x128xf32>
    %c3_86 = arith.constant 3 : index
    %c0_87 = arith.constant 0 : index
    %c0_88 = arith.constant 0 : index
    %119 = vector.load %arg8[%c3_86, %c0_87, %c0_88] : memref<9x16x128xf32, #tpu.memory_space<vmem>>, vector<1x16x128xf32>
    %120 = vector.shape_cast %119 : vector<1x16x128xf32> to vector<16x128xf32>
    %c0_89 = arith.constant 0 : index
    %c143 = arith.constant 143 : index
    %121 = vector.load %arg11[%c0_89, %c143] : memref<128x416xf32, #tpu.memory_space<vmem>>, vector<128x128xf32>
    %cst_90 = arith.constant dense<0.000000e+00> : vector<16x128xf32>
    %122 = tpu.matmul %120, %121, %cst_90 {dimension_numbers = #tpu.dot_dimension_numbers<[1], [0], [0], [1], [0, 0, 1, 1], [], []>} : vector<16x128xf32>, vector<128x128xf32>, vector<16x128xf32> -> vector<16x128xf32>
    %123 = arith.addf %118, %122 : vector<16x128xf32>
    %c6_91 = arith.constant 6 : index
    %c0_92 = arith.constant 0 : index
    %c0_93 = arith.constant 0 : index
    %124 = vector.load %arg8[%c6_91, %c0_92, %c0_93] : memref<9x16x128xf32, #tpu.memory_space<vmem>>, vector<1x16x128xf32>
    %125 = vector.shape_cast %124 : vector<1x16x128xf32> to vector<16x128xf32>
    %c0_94 = arith.constant 0 : index
    %c159 = arith.constant 159 : index
    %126 = vector.load %arg11[%c0_94, %c159] : memref<128x416xf32, #tpu.memory_space<vmem>>, vector<128x128xf32>
    %cst_95 = arith.constant dense<0.000000e+00> : vector<16x128xf32>
    %127 = tpu.matmul %125, %126, %cst_95 {dimension_numbers = #tpu.dot_dimension_numbers<[1], [0], [0], [1], [0, 0, 1, 1], [], []>} : vector<16x128xf32>, vector<128x128xf32>, vector<16x128xf32> -> vector<16x128xf32>
    %128 = arith.addf %123, %127 : vector<16x128xf32>
    %c0_i32_96 = arith.constant 0 : i32
    %129 = vector.broadcast %c0_i32_96 : i32 to vector<1x128xi32>
    %130 = arith.cmpi sgt, %33, %129 : vector<1x128xi32>
    %cst_97 = arith.constant 0.000000e+00 : f32
    %131 = vector.shape_cast %130 : vector<1x128xi1> to vector<1x128xi1>
    %132 = vector.broadcast %131 : vector<1x128xi1> to vector<16x128xi1>
    %133 = vector.broadcast %cst_97 : f32 to vector<16x128xf32>
    %134 = arith.select %132, %128, %133 : vector<16x128xi1>, vector<16x128xf32>
    %c1_98 = arith.constant 1 : index
    %c0_99 = arith.constant 0 : index
    %c0_100 = arith.constant 0 : index
    %135 = vector.load %arg8[%c1_98, %c0_99, %c0_100] : memref<9x16x128xf32, #tpu.memory_space<vmem>>, vector<1x16x128xf32>
    %136 = vector.shape_cast %135 : vector<1x16x128xf32> to vector<16x128xf32>
    %c0_101 = arith.constant 0 : index
    %c128_102 = arith.constant 128 : index
    %137 = vector.load %arg11[%c0_101, %c128_102] : memref<128x416xf32, #tpu.memory_space<vmem>>, vector<128x128xf32>
    %cst_103 = arith.constant dense<0.000000e+00> : vector<16x128xf32>
    %138 = tpu.matmul %136, %137, %cst_103 {dimension_numbers = #tpu.dot_dimension_numbers<[1], [0], [0], [1], [0, 0, 1, 1], [], []>} : vector<16x128xf32>, vector<128x128xf32>, vector<16x128xf32> -> vector<16x128xf32>
    %c4_104 = arith.constant 4 : index
    %c0_105 = arith.constant 0 : index
    %c0_106 = arith.constant 0 : index
    %139 = vector.load %arg8[%c4_104, %c0_105, %c0_106] : memref<9x16x128xf32, #tpu.memory_space<vmem>>, vector<1x16x128xf32>
    %140 = vector.shape_cast %139 : vector<1x16x128xf32> to vector<16x128xf32>
    %c0_107 = arith.constant 0 : index
    %c144 = arith.constant 144 : index
    %141 = vector.load %arg11[%c0_107, %c144] : memref<128x416xf32, #tpu.memory_space<vmem>>, vector<128x128xf32>
    %cst_108 = arith.constant dense<0.000000e+00> : vector<16x128xf32>
    %142 = tpu.matmul %140, %141, %cst_108 {dimension_numbers = #tpu.dot_dimension_numbers<[1], [0], [0], [1], [0, 0, 1, 1], [], []>} : vector<16x128xf32>, vector<128x128xf32>, vector<16x128xf32> -> vector<16x128xf32>
    %143 = arith.addf %138, %142 : vector<16x128xf32>
    %c7_109 = arith.constant 7 : index
    %c0_110 = arith.constant 0 : index
    %c0_111 = arith.constant 0 : index
    %144 = vector.load %arg8[%c7_109, %c0_110, %c0_111] : memref<9x16x128xf32, #tpu.memory_space<vmem>>, vector<1x16x128xf32>
    %145 = vector.shape_cast %144 : vector<1x16x128xf32> to vector<16x128xf32>
    %c0_112 = arith.constant 0 : index
    %c160 = arith.constant 160 : index
    %146 = vector.load %arg11[%c0_112, %c160] : memref<128x416xf32, #tpu.memory_space<vmem>>, vector<128x128xf32>
    %cst_113 = arith.constant dense<0.000000e+00> : vector<16x128xf32>
    %147 = tpu.matmul %145, %146, %cst_113 {dimension_numbers = #tpu.dot_dimension_numbers<[1], [0], [0], [1], [0, 0, 1, 1], [], []>} : vector<16x128xf32>, vector<128x128xf32>, vector<16x128xf32> -> vector<16x128xf32>
    %148 = arith.addf %143, %147 : vector<16x128xf32>
    %149 = arith.addf %134, %148 : vector<16x128xf32>
    %c2_114 = arith.constant 2 : index
    %c0_115 = arith.constant 0 : index
    %c0_116 = arith.constant 0 : index
    %150 = vector.load %arg8[%c2_114, %c0_115, %c0_116] : memref<9x16x128xf32, #tpu.memory_space<vmem>>, vector<1x16x128xf32>
    %151 = vector.shape_cast %150 : vector<1x16x128xf32> to vector<16x128xf32>
    %c0_117 = arith.constant 0 : index
    %c129 = arith.constant 129 : index
    %152 = vector.load %arg11[%c0_117, %c129] : memref<128x416xf32, #tpu.memory_space<vmem>>, vector<128x128xf32>
    %cst_118 = arith.constant dense<0.000000e+00> : vector<16x128xf32>
    %153 = tpu.matmul %151, %152, %cst_118 {dimension_numbers = #tpu.dot_dimension_numbers<[1], [0], [0], [1], [0, 0, 1, 1], [], []>} : vector<16x128xf32>, vector<128x128xf32>, vector<16x128xf32> -> vector<16x128xf32>
    %c5_119 = arith.constant 5 : index
    %c0_120 = arith.constant 0 : index
    %c0_121 = arith.constant 0 : index
    %154 = vector.load %arg8[%c5_119, %c0_120, %c0_121] : memref<9x16x128xf32, #tpu.memory_space<vmem>>, vector<1x16x128xf32>
    %155 = vector.shape_cast %154 : vector<1x16x128xf32> to vector<16x128xf32>
    %c0_122 = arith.constant 0 : index
    %c145 = arith.constant 145 : index
    %156 = vector.load %arg11[%c0_122, %c145] : memref<128x416xf32, #tpu.memory_space<vmem>>, vector<128x128xf32>
    %cst_123 = arith.constant dense<0.000000e+00> : vector<16x128xf32>
    %157 = tpu.matmul %155, %156, %cst_123 {dimension_numbers = #tpu.dot_dimension_numbers<[1], [0], [0], [1], [0, 0, 1, 1], [], []>} : vector<16x128xf32>, vector<128x128xf32>, vector<16x128xf32> -> vector<16x128xf32>
    %158 = arith.addf %153, %157 : vector<16x128xf32>
    %c8_124 = arith.constant 8 : index
    %c0_125 = arith.constant 0 : index
    %c0_126 = arith.constant 0 : index
    %159 = vector.load %arg8[%c8_124, %c0_125, %c0_126] : memref<9x16x128xf32, #tpu.memory_space<vmem>>, vector<1x16x128xf32>
    %160 = vector.shape_cast %159 : vector<1x16x128xf32> to vector<16x128xf32>
    %c0_127 = arith.constant 0 : index
    %c161 = arith.constant 161 : index
    %161 = vector.load %arg11[%c0_127, %c161] : memref<128x416xf32, #tpu.memory_space<vmem>>, vector<128x128xf32>
    %cst_128 = arith.constant dense<0.000000e+00> : vector<16x128xf32>
    %162 = tpu.matmul %160, %161, %cst_128 {dimension_numbers = #tpu.dot_dimension_numbers<[1], [0], [0], [1], [0, 0, 1, 1], [], []>} : vector<16x128xf32>, vector<128x128xf32>, vector<16x128xf32> -> vector<16x128xf32>
    %163 = arith.addf %158, %162 : vector<16x128xf32>
    %c15_i32_129 = arith.constant 15 : i32
    %164 = vector.broadcast %c15_i32_129 : i32 to vector<1x128xi32>
    %165 = arith.cmpi slt, %33, %164 : vector<1x128xi32>
    %cst_130 = arith.constant 0.000000e+00 : f32
    %166 = vector.shape_cast %165 : vector<1x128xi1> to vector<1x128xi1>
    %167 = vector.broadcast %166 : vector<1x128xi1> to vector<16x128xi1>
    %168 = vector.broadcast %cst_130 : f32 to vector<16x128xf32>
    %169 = arith.select %167, %163, %168 : vector<16x128xi1>, vector<16x128xf32>
    %170 = arith.addf %149, %169 : vector<16x128xf32>
    %c0_131 = arith.constant 0 : index
    %c0_132 = arith.constant 0 : index
    %171 = vector.load %arg9[%c0_131, %c0_132] : memref<16x1xf32, #tpu.memory_space<vmem>>, vector<16x1xf32>
    %172 = vector.broadcast %171 : vector<16x1xf32> to vector<16x128xf32>
    %173 = arith.addf %170, %172 : vector<16x128xf32>
    %174 = vector.extract_strided_slice %173 {offsets = [0, 0], sizes = [4, 128], strides = [1, 1]} : vector<16x128xf32> to vector<4x128xf32>
    %175 = vector.extract_strided_slice %173 {offsets = [8, 0], sizes = [4, 128], strides = [1, 1]} : vector<16x128xf32> to vector<4x128xf32>
    %c0_133 = arith.constant 0 : index
    %c0_134 = arith.constant 0 : index
    %c0_135 = arith.constant 0 : index
    %176 = vector.load %arg3[%c0_133, %c0_134, %c0_135] : memref<1x4x128xf32, #tpu.memory_space<vmem>>, vector<1x4x128xf32>
    %177 = vector.shape_cast %176 : vector<1x4x128xf32> to vector<4x128xf32>
    %c0_136 = arith.constant 0 : index
    %c0_137 = arith.constant 0 : index
    %c0_138 = arith.constant 0 : index
    %178 = vector.load %arg4[%c0_136, %c0_137, %c0_138] : memref<1x4x1xf32, #tpu.memory_space<vmem>>, vector<1x4x1xf32>
    %179 = vector.shape_cast %178 : vector<1x4x1xf32> to vector<4x1xf32>
    %180 = vector.broadcast %179 : vector<4x1xf32> to vector<4x128xf32>
    %181 = arith.subf %177, %180 : vector<4x128xf32>
    %c0_139 = arith.constant 0 : index
    %c0_140 = arith.constant 0 : index
    %c0_141 = arith.constant 0 : index
    %182 = vector.load %arg5[%c0_139, %c0_140, %c0_141] : memref<1x4x1xf32, #tpu.memory_space<vmem>>, vector<1x4x1xf32>
    %183 = vector.shape_cast %182 : vector<1x4x1xf32> to vector<4x1xf32>
    %184 = vector.broadcast %183 : vector<4x1xf32> to vector<4x128xf32>
    %185 = arith.mulf %181, %184 : vector<4x128xf32>
    %cst_142 = arith.constant 1.000000e+00 : f32
    %186 = vector.broadcast %cst_142 : f32 to vector<4x128xf32>
    %187 = arith.addf %186, %174 : vector<4x128xf32>
    %188 = arith.mulf %185, %187 : vector<4x128xf32>
    %189 = arith.addf %188, %175 : vector<4x128xf32>
    %c0_143 = arith.constant 0 : index
    %c0_144 = arith.constant 0 : index
    %c0_145 = arith.constant 0 : index
    %190 = vector.load %arg10[%c0_143, %c0_144, %c0_145] : memref<1x4x128xf32, #tpu.memory_space<vmem>>, vector<1x4x128xf32>
    %191 = vector.shape_cast %190 : vector<1x4x128xf32> to vector<4x128xf32>
    %192 = vector.shape_cast %189 : vector<4x128xf32> to vector<1x4x128xf32>
    tpu.vector_store %arg10[%c0_143, %c0_144, %c0_145], %192 {strides = array<i32>} : memref<1x4x128xf32, #tpu.memory_space<vmem>>, vector<1x4x128xf32>,
    return
  }
  func.func @transform_0(%arg0: i32, %arg1: i32) -> (i32, i32, i32, i32) {
    %c0_i32 = arith.constant 0 : i32
    %c0_i32_0 = arith.constant 0 : i32
    %c0_i32_1 = arith.constant 0 : i32
    return %arg0, %arg1, %c0_i32, %c0_i32_0 : i32, i32, i32, i32
  }
  func.func @transform_1(%arg0: i32, %arg1: i32) -> (i32, i32, i32) {
    %c0_i32 = arith.constant 0 : i32
    %c0_i32_0 = arith.constant 0 : i32
    return %arg0, %c0_i32, %arg1 : i32, i32, i32
  }
  func.func @transform_2(%arg0: i32, %arg1: i32) -> (i32, i32, i32) {
    %c0_i32 = arith.constant 0 : i32
    %c0_i32_0 = arith.constant 0 : i32
    %c0_i32_1 = arith.constant 0 : i32
    return %arg0, %c0_i32, %c0_i32_0 : i32, i32, i32
  }
  func.func @transform_3(%arg0: i32, %arg1: i32) -> (i32, i32, i32) {
    %c0_i32 = arith.constant 0 : i32
    %c0_i32_0 = arith.constant 0 : i32
    %c0_i32_1 = arith.constant 0 : i32
    return %arg0, %c0_i32, %c0_i32_0 : i32, i32, i32
  }
  func.func @transform_4(%arg0: i32, %arg1: i32) -> (i32, i32, i32) {
    %c0_i32 = arith.constant 0 : i32
    %c0_i32_0 = arith.constant 0 : i32
    %c0_i32_1 = arith.constant 0 : i32
    %c0_i32_2 = arith.constant 0 : i32
    return %c0_i32, %c0_i32_0, %c0_i32_1 : i32, i32, i32
  }
  func.func @transform_5(%arg0: i32, %arg1: i32) -> (i32, i32) {
    %c0_i32 = arith.constant 0 : i32
    %c0_i32_0 = arith.constant 0 : i32
    %c0_i32_1 = arith.constant 0 : i32
    return %c0_i32, %c0_i32_0 : i32, i32
  }
  func.func @transform_6(%arg0: i32, %arg1: i32) -> (i32, i32, i32) {
    %c0_i32 = arith.constant 0 : i32
    %c0_i32_0 = arith.constant 0 : i32
    %c0_i32_1 = arith.constant 0 : i32
    %c0_i32_2 = arith.constant 0 : i32
    return %c0_i32, %c0_i32_0, %c0_i32_1 : i32, i32, i32
  }
  func.func @transform_7(%arg0: i32, %arg1: i32) -> (i32, i32) {
    %c0_i32 = arith.constant 0 : i32
    %c0_i32_0 = arith.constant 0 : i32
    %c0_i32_1 = arith.constant 0 : i32
    return %c0_i32, %c0_i32_0 : i32, i32
  }
  func.func @transform_8(%arg0: i32, %arg1: i32) -> (i32, i32, i32) {
    %c0_i32 = arith.constant 0 : i32
    %c0_i32_0 = arith.constant 0 : i32
    return %arg0, %c0_i32, %arg1 : i32, i32, i32
  }
}

</mosaic_0001>

<llo_original>
// kernel: spade_forward.1
$region0: #{spade_forward.1}
  #allocation0 [shape = 'u32[]', space=smem, size = 0x4, offset = 0x4, fixed_abs, tag = 'smem constant byte address 0x4 - core index']
  #allocation1 [shape = 'u32[144,128]{1,0:T(1,128)}', space=vmem, size = 0x12000, scoped, tag = 'internal scratch']
  #allocation2 [shape = 'f32[128,416]{1,0:T(8,128)}', space=vmem, size = 0x40000, scoped, tag = 'scratch operand']
  %s0 = inlined_call_operand.vmem [shape: f32[2,2,8,256], index: 0, kind: input, shape index: {}]
  %s1 = inlined_call_operand.vmem [shape: f32[2,4,256], index: 1, kind: input, shape index: {}]
  %s2 = inlined_call_operand.vmem [shape: f32[2,4,1], index: 2, kind: input, shape index: {}]
  %s3 = inlined_call_operand.vmem [shape: f32[2,4,1], index: 3, kind: input, shape index: {}]
  %s4 = inlined_call_operand.vmem [shape: f32[9,128,8], index: 4, kind: input, shape index: {}]
  %s5 = inlined_call_operand.vmem [shape: f32[128,1], index: 5, kind: input, shape index: {}]
  %s6 = inlined_call_operand.vmem [shape: f32[9,16,128], index: 6, kind: input, shape index: {}]
  %s7 = inlined_call_operand.vmem [shape: f32[16,1], index: 7, kind: input, shape index: {}]
  %s8 = inlined_call_operand.vmem [shape: f32[2,4,256], index: 8, kind: output, shape index: {}]
  %s9 = sld [smem:[#allocation0]]
  $region73: #{spade_forward.1} parent=0
    _
  %s11 = ssub.s32 1, %s9
  %s12 = scalar_select 0, %s11, %s9
  loop: start=0, step=1, limit=6
  $region2: #{spade_forward.1} parent=0 // loop_pre_header
    _
  $region3: #{spade_forward.1} parent=0 // loop_header
    %s14 = sphi 0, %s18
    %p15 = scmp.ge.s32.totalorder %s14, 6
    %s21 = sphi 0, %s33
    %s22 = sphi 0, %s29
    %s23 = sphi 0, %s21
    %s24 = sphi 0, %s22
    %s25 = sphi 0, %s23
    %s26 = sphi 0, %s24
    %s38 = sphi 0, %s40
    %s41 = sphi 0, %s38
    %s42 = sphi 0, %s41
    %s58 = sphi 0, %s42
    %s66 = sphi 0, %s68
    %s69 = sphi 0, %s66
    %s70 = sphi 0, %s69
    %s86 = sphi 0, %s70
    %s92 = sphi 0, %s94
    %s95 = sphi 0, %s92
    %s96 = sphi 0, %s95
    %s112 = sphi 0, %s96
    %s118 = sphi 0, %s120
    %s121 = sphi 0, %s118
    %s122 = sphi 0, %s121
    %s138 = sphi 0, %s122
    %s142 = sphi 0, %s142
    %s144 = sphi 0, %s142
    %s145 = sphi 0, %s144
    %s159 = sphi 0, %s145
    %s163 = sphi 0, %s163
    %s165 = sphi 0, %s163
    %s166 = sphi 0, %s165
    %s180 = sphi 0, %s166
    %s184 = sphi 0, %s184
    %s186 = sphi 0, %s184
    %s187 = sphi 0, %s186
    %s201 = sphi 0, %s187
    %s205 = sphi 0, %s205
    %s207 = sphi 0, %s205
    %s208 = sphi 0, %s207
    %s222 = sphi 0, %s208
    %s230 = sphi 0, %s232
    %s233 = sphi 0, %s230
    %s234 = sphi 0, %s233
    %s250 = sphi 0, %s234
  $region4: #{spade_forward.1} parent=0 // loop_header_branch
    %17 = sbr.rel (%p15) target = $region8
  $region5: #{spade_forward.1} parent=0 // loop_body
    %s19 = ssub.s32 %s14, 1
    %s20 = ssub.s32 %s14, 2
    %s27 = sadd.s32 1, %s22
    %p28 = scmp.ge.s32.totalorder %s27, 2
    %s29 = scalar_select %p28, 0, %s27
    %s30 = sadd.s32 1, %s21
    %s31 = scalar_select %p28, %s30, %s21
    %p32 = scmp.ge.s32.totalorder %s31, 2
    %s33 = scalar_select %p32, 0, %s31
    %s34 = ssub.s32 %s21, %s33
    %s35 = ssub.s32 %s22, %s29
    %s36 = sor.u32 %s34, %s35
    %p37 = scmp.eq.s32.totalorder %s36, 0
    %s39 = sadd.s32 %s38, 1
    %s40 = scalar_select %p37, %s38, %s39
    %p43 = pneg %p37
    %p44 = scmp.eq.s32.totalorder %s14, 3
    %p45 = por %p43, %p44
    %p46 = scmp.ne.s32.totalorder %s38, %s41
    %p47 = scmp.eq.s32.totalorder %s14, 0
    %p48 = por %p46, %p47
    %p49 = scmp.ne.s32.totalorder %s38, %s41
    %p50 = scmp.eq.s32.totalorder %s19, 3
    %p51 = por %p49, %p50
    %p52 = scmp.ne.s32.totalorder %s41, %s42
    %p53 = scmp.eq.s32.totalorder %s19, 0
    %p54 = por %p52, %p53
    %p55 = scmp.ne.s32.totalorder %s41, %s42
    %p56 = scmp.eq.s32.totalorder %s20, 3
    %p57 = por %p55, %p56
    %p59 = scmp.ne.s32.totalorder %s42, %s58
    %p60 = scmp.eq.s32.totalorder %s20, 0
    %p61 = por %p59, %p60
    %s62 = ssub.s32 %s21, %s33
    %s63 = ssub.s32 %s22, %s29
    %s64 = sor.u32 %s62, %s63
    %p65 = scmp.eq.s32.totalorder %s64, 0
    %s67 = sadd.s32 %s66, 1
    %s68 = scalar_select %p65, %s66, %s67
    %p71 = pneg %p65
    %p72 = scmp.eq.s32.totalorder %s14, 3
    %p73 = por %p71, %p72
    %p74 = scmp.ne.s32.totalorder %s66, %s69
    %p75 = scmp.eq.s32.totalorder %s14, 0
    %p76 = por %p74, %p75
    %p77 = scmp.ne.s32.totalorder %s66, %s69
    %p78 = scmp.eq.s32.totalorder %s19, 3
    %p79 = por %p77, %p78
    %p80 = scmp.ne.s32.totalorder %s69, %s70
    %p81 = scmp.eq.s32.totalorder %s19, 0
    %p82 = por %p80, %p81
    %p83 = scmp.ne.s32.totalorder %s69, %s70
    %p84 = scmp.eq.s32.totalorder %s20, 3
    %p85 = por %p83, %p84
    %p87 = scmp.ne.s32.totalorder %s70, %s86
    %p88 = scmp.eq.s32.totalorder %s20, 0
    %p89 = por %p87, %p88
    %s90 = ssub.s32 %s21, %s33
    %p91 = scmp.eq.s32.totalorder %s90, 0
    %s93 = sadd.s32 %s92, 1
    %s94 = scalar_select %p91, %s92, %s93
    %p97 = pneg %p91
    %p98 = scmp.eq.s32.totalorder %s14, 3
    %p99 = por %p97, %p98
    %p100 = scmp.ne.s32.totalorder %s92, %s95
    %p101 = scmp.eq.s32.totalorder %s14, 0
    %p102 = por %p100, %p101
    %p103 = scmp.ne.s32.totalorder %s92, %s95
    %p104 = scmp.eq.s32.totalorder %s19, 3
    %p105 = por %p103, %p104
    %p106 = scmp.ne.s32.totalorder %s95, %s96
    %p107 = scmp.eq.s32.totalorder %s19, 0
    %p108 = por %p106, %p107
    %p109 = scmp.ne.s32.totalorder %s95, %s96
    %p110 = scmp.eq.s32.totalorder %s20, 3
    %p111 = por %p109, %p110
    %p113 = scmp.ne.s32.totalorder %s96, %s112
    %p114 = scmp.eq.s32.totalorder %s20, 0
    %p115 = por %p113, %p114
    %s116 = ssub.s32 %s21, %s33
    %p117 = scmp.eq.s32.totalorder %s116, 0
    %s119 = sadd.s32 %s118, 1
    %s120 = scalar_select %p117, %s118, %s119
    %p123 = pneg %p117
    %p124 = scmp.eq.s32.totalorder %s14, 3
    %p125 = por %p123, %p124
    %p126 = scmp.ne.s32.totalorder %s118, %s121
    %p127 = scmp.eq.s32.totalorder %s14, 0
    %p128 = por %p126, %p127
    %p129 = scmp.ne.s32.totalorder %s118, %s121
    %p130 = scmp.eq.s32.totalorder %s19, 3
    %p131 = por %p129, %p130
    %p132 = scmp.ne.s32.totalorder %s121, %s122
    %p133 = scmp.eq.s32.totalorder %s19, 0
    %p134 = por %p132, %p133
    %p135 = scmp.ne.s32.totalorder %s121, %s122
    %p136 = scmp.eq.s32.totalorder %s20, 3
    %p137 = por %p135, %p136
    %p139 = scmp.ne.s32.totalorder %s122, %s138
    %p140 = scmp.eq.s32.totalorder %s20, 0
    %p141 = por %p139, %p140
    %s143 = sadd.s32 %s142, 1
    %p146 = scmp.eq.s32.totalorder %s14, 3
    %p147 = scmp.ne.s32.totalorder %s142, %s144
    %p148 = scmp.eq.s32.totalorder %s14, 0
    %p149 = por %p147, %p148
    %p150 = scmp.ne.s32.totalorder %s142, %s144
    %p151 = scmp.eq.s32.totalorder %s19, 3
    %p152 = por %p150, %p151
    %p153 = scmp.ne.s32.totalorder %s144, %s145
    %p154 = scmp.eq.s32.totalorder %s19, 0
    %p155 = por %p153, %p154
    %p156 = scmp.ne.s32.totalorder %s144, %s145
    %p157 = scmp.eq.s32.totalorder %s20, 3
    %p158 = por %p156, %p157
    %p160 = scmp.ne.s32.totalorder %s145, %s159
    %p161 = scmp.eq.s32.totalorder %s20, 0
    %p162 = por %p160, %p161
    %s164 = sadd.s32 %s163, 1
    %p167 = scmp.eq.s32.totalorder %s14, 3
    %p168 = scmp.ne.s32.totalorder %s163, %s165
    %p169 = scmp.eq.s32.totalorder %s14, 0
    %p170 = por %p168, %p169
    %p171 = scmp.ne.s32.totalorder %s163, %s165
    %p172 = scmp.eq.s32.totalorder %s19, 3
    %p173 = por %p171, %p172
    %p174 = scmp.ne.s32.totalorder %s165, %s166
    %p175 = scmp.eq.s32.totalorder %s19, 0
    %p176 = por %p174, %p175
    %p177 = scmp.ne.s32.totalorder %s165, %s166
    %p178 = scmp.eq.s32.totalorder %s20, 3
    %p179 = por %p177, %p178
    %p181 = scmp.ne.s32.totalorder %s166, %s180
    %p182 = scmp.eq.s32.totalorder %s20, 0
    %p183 = por %p181, %p182
    %s185 = sadd.s32 %s184, 1
    %p188 = scmp.eq.s32.totalorder %s14, 3
    %p189 = scmp.ne.s32.totalorder %s184, %s186
    %p190 = scmp.eq.s32.totalorder %s14, 0
    %p191 = por %p189, %p190
    %p192 = scmp.ne.s32.totalorder %s184, %s186
    %p193 = scmp.eq.s32.totalorder %s19, 3
    %p194 = por %p192, %p193
    %p195 = scmp.ne.s32.totalorder %s186, %s187
    %p196 = scmp.eq.s32.totalorder %s19, 0
    %p197 = por %p195, %p196
    %p198 = scmp.ne.s32.totalorder %s186, %s187
    %p199 = scmp.eq.s32.totalorder %s20, 3
    %p200 = por %p198, %p199
    %p202 = scmp.ne.s32.totalorder %s187, %s201
    %p203 = scmp.eq.s32.totalorder %s20, 0
    %p204 = por %p202, %p203
    %s206 = sadd.s32 %s205, 1
    %p209 = scmp.eq.s32.totalorder %s14, 3
    %p210 = scmp.ne.s32.totalorder %s205, %s207
    %p211 = scmp.eq.s32.totalorder %s14, 0
    %p212 = por %p210, %p211
    %p213 = scmp.ne.s32.totalorder %s205, %s207
    %p214 = scmp.eq.s32.totalorder %s19, 3
    %p215 = por %p213, %p214
    %p216 = scmp.ne.s32.totalorder %s207, %s208
    %p217 = scmp.eq.s32.totalorder %s19, 0
    %p218 = por %p216, %p217
    %p219 = scmp.ne.s32.totalorder %s207, %s208
    %p220 = scmp.eq.s32.totalorder %s20, 3
    %p221 = por %p219, %p220
    %p223 = scmp.ne.s32.totalorder %s208, %s222
    %p224 = scmp.eq.s32.totalorder %s20, 0
    %p225 = por %p223, %p224
    %s226 = ssub.s32 %s21, %s33
    %s227 = ssub.s32 %s22, %s29
    %s228 = sor.u32 %s226, %s227
    %p229 = scmp.eq.s32.totalorder %s228, 0
    %s231 = sadd.s32 %s230, 1
    %s232 = scalar_select %p229, %s230, %s231
    %p235 = pneg %p229
    %p236 = scmp.eq.s32.totalorder %s14, 3
    %p237 = por %p235, %p236
    %p238 = scmp.ne.s32.totalorder %s230, %s233
    %p239 = scmp.eq.s32.totalorder %s14, 0
    %p240 = por %p238, %p239
    %p241 = scmp.ne.s32.totalorder %s230, %s233
    %p242 = scmp.eq.s32.totalorder %s19, 3
    %p243 = por %p241, %p242
    %p244 = scmp.ne.s32.totalorder %s233, %s234
    %p245 = scmp.eq.s32.totalorder %s19, 0
    %p246 = por %p244, %p245
    %p247 = scmp.ne.s32.totalorder %s233, %s234
    %p248 = scmp.eq.s32.totalorder %s20, 3
    %p249 = por %p247, %p248
    %p251 = scmp.ne.s32.totalorder %s234, %s250
    %p252 = scmp.eq.s32.totalorder %s20, 0
    %p253 = por %p251, %p252
    %p254 = scmp.le.s32.totalorder 1, %s14
    %p255 = scmp.lt.s32.totalorder %s14, 5
    %p256 = pnand %p254, %p255
    %p257 = pneg %p256
    // Predicated region
    $region9: #{spade_forward.1} parent=5 // pred_check
      _
    $region10: #{spade_forward.1} parent=5 // pred_check_branch
      %259 = sbr.rel (%p256) target = $region12
    $region11: #{spade_forward.1} parent=5 // pred_region
      %s260 = ssub.s32 %s14, 1
      // Predicated region
      $region13: #{spade_forward.1} parent=11 // pred_check
        %p261 = pneg %p155
      $region14: #{spade_forward.1} parent=11 // pred_check_branch
        %263 = sbr.rel (%p261) target = $region16
      $region15: #{spade_forward.1} parent=11 // pred_region
        _
      $region16: #{spade_forward.1} parent=11 // pred_fallthru
        _
      // Predicated region
      $region17: #{spade_forward.1} parent=11 // pred_check
        %p264 = pneg %p176
      $region18: #{spade_forward.1} parent=11 // pred_check_branch
        %266 = sbr.rel (%p264) target = $region20
      $region19: #{spade_forward.1} parent=11 // pred_region
        _
      $region20: #{spade_forward.1} parent=11 // pred_fallthru
        _
      // Predicated region
      $region21: #{spade_forward.1} parent=11 // pred_check
        %p267 = pneg %p197
      $region22: #{spade_forward.1} parent=11 // pred_check_branch
        %269 = sbr.rel (%p267) target = $region24
      $region23: #{spade_forward.1} parent=11 // pred_region
        _
      $region24: #{spade_forward.1} parent=11 // pred_fallthru
        _
      // Predicated region
      $region25: #{spade_forward.1} parent=11 // pred_check
        %p270 = pneg %p218
      $region26: #{spade_forward.1} parent=11 // pred_check_branch
        %272 = sbr.rel (%p270) target = $region28
      $region27: #{spade_forward.1} parent=11 // pred_region
        _
      $region28: #{spade_forward.1} parent=11 // pred_fallthru
        _
    $region12: #{spade_forward.1} parent=5 // pred_fallthru
      _
    %p273 = scmp.lt.s32.totalorder %s14, 4
    // Predicated region
    $region29: #{spade_forward.1} parent=5 // pred_check
      %p274 = pneg %p273
    $region30: #{spade_forward.1} parent=5 // pred_check_branch
      %276 = sbr.rel (%p274) target = $region32
    $region31: #{spade_forward.1} parent=5 // pred_region
      // Predicated region
      $region33: #{spade_forward.1} parent=31 // pred_check
        %p277 = pneg %p48
      $region34: #{spade_forward.1} parent=31 // pred_check_branch
        %279 = sbr.rel (%p277) target = $region36
      $region35: #{spade_forward.1} parent=31 // pred_region
        %p280 = scmp.lt.s32.totalorder %s21, 1
        %s281 = scalar_select %p280, %s21, 1
        %p282 = scmp.lt.s32.totalorder %s22, 1
        %s283 = scalar_select %p282, %s22, 1
        %s284 = smul.addr %s283, 2
        %s285 = smul.addr %s281, 4
        %s286 = sadd.s32 %s284, %s285
        %s287 = smul.addr %s286, 8
        %s288 = scalar_lea.vmem %s0, %s287
      $region36: #{spade_forward.1} parent=31 // pred_fallthru
        _
      // Predicated region
      $region37: #{spade_forward.1} parent=31 // pred_check
        %p289 = pneg %p76
      $region38: #{spade_forward.1} parent=31 // pred_check_branch
        %291 = sbr.rel (%p289) target = $region40
      $region39: #{spade_forward.1} parent=31 // pred_region
        %p292 = scmp.lt.s32.totalorder %s21, 1
        %s293 = scalar_select %p292, %s21, 1
        %p294 = scmp.lt.s32.totalorder %s22, 1
        %s295 = scalar_select %p294, %s22, 1
        %s296 = smul.addr %s293, 2
        %s297 = sadd.s32 %s295, %s296
        %s298 = smul.addr %s297, 4
        %s299 = scalar_lea.vmem %s1, %s298
      $region40: #{spade_forward.1} parent=31 // pred_fallthru
        _
      // Predicated region
      $region41: #{spade_forward.1} parent=31 // pred_check
        %p300 = pneg %p102
      $region42: #{spade_forward.1} parent=31 // pred_check_branch
        %302 = sbr.rel (%p300) target = $region44
      $region43: #{spade_forward.1} parent=31 // pred_region
        %p303 = scmp.lt.s32.totalorder %s21, 1
        %s304 = scalar_select %p303, %s21, 1
        %s305 = smul.addr %s304, 4
        %s306 = scalar_lea.vmem %s2, %s305
      $region44: #{spade_forward.1} parent=31 // pred_fallthru
        _
      // Predicated region
      $region45: #{spade_forward.1} parent=31 // pred_check
        %p307 = pneg %p128
      $region46: #{spade_forward.1} parent=31 // pred_check_branch
        %309 = sbr.rel (%p307) target = $region48
      $region47: #{spade_forward.1} parent=31 // pred_region
        %p310 = scmp.lt.s32.totalorder %s21, 1
        %s311 = scalar_select %p310, %s21, 1
        %s312 = smul.addr %s311, 4
        %s313 = scalar_lea.vmem %s3, %s312
      $region48: #{spade_forward.1} parent=31 // pred_fallthru
        _
    $region32: #{spade_forward.1} parent=5 // pred_fallthru
      _
    %p314 = scmp.le.s32.totalorder 1, %s14
    %p315 = scmp.lt.s32.totalorder %s14, 5
    %p316 = pnand %p314, %p315
    %p317 = pneg %p316
    // Predicated region
    $region49: #{spade_forward.1} parent=5 // pred_check
      _
    $region50: #{spade_forward.1} parent=5 // pred_check_branch
      %319 = sbr.rel (%p316) target = $region52
    $region51: #{spade_forward.1} parent=5 // pred_region
      %s320 = ssub.s32 %s14, 1
      %p321 = scmp.lt.s32.totalorder %s23, 1
      %s322 = scalar_select %p321, %s23, 1
      %p323 = scmp.lt.s32.totalorder %s24, 1
      %s324 = scalar_select %p323, %s24, 1
      %s325 = smul.addr %s324, 2
      %s326 = smul.addr %s322, 4
      %s327 = sadd.s32 %s325, %s326
      %s328 = smul.addr %s327, 8
      %s329 = scalar_lea.vmem %s0, %s328
      %p330 = pneg %p54
      %p331 = pneg %p51
      %p332 = scmp.lt.s32.totalorder %s23, 1
      %s333 = scalar_select %p332, %s23, 1
      %p334 = scmp.lt.s32.totalorder %s24, 1
      %s335 = scalar_select %p334, %s24, 1
      %s336 = smul.addr %s333, 2
      %s337 = sadd.s32 %s335, %s336
      %s338 = smul.addr %s337, 4
      %s339 = scalar_lea.vmem %s1, %s338
      %p340 = pneg %p82
      %p341 = pneg %p79
      %p342 = scmp.lt.s32.totalorder %s23, 1
      %s343 = scalar_select %p342, %s23, 1
      %s344 = smul.addr %s343, 4
      %s345 = scalar_lea.vmem %s2, %s344
      %p346 = pneg %p108
      %p347 = pneg %p105
      %p348 = scmp.lt.s32.totalorder %s23, 1
      %s349 = scalar_select %p348, %s23, 1
      %s350 = smul.addr %s349, 4
      %s351 = scalar_lea.vmem %s3, %s350
      %p352 = pneg %p134
      %p353 = pneg %p131
      %p354 = pneg %p155
      %p355 = pneg %p152
      %p356 = pneg %p176
      %p357 = pneg %p173
      %p358 = pneg %p197
      %p359 = pneg %p194
      %p360 = pneg %p218
      %p361 = pneg %p215
      %p362 = pneg %p246
      %p363 = pneg %p243
      %p364 = scmp.lt.s32.totalorder %s23, 1
      %s365 = scalar_select %p364, %s23, 1
      %p366 = scmp.lt.s32.totalorder %s24, 1
      %s367 = scalar_select %p366, %s24, 1
      %s368 = smul.addr %s365, 2
      %s369 = sadd.s32 %s367, %s368
      %s370 = smul.addr %s369, 4
      %s371 = scalar_lea.vmem %s8, %s370
      %p372 = scmp.lt.s32.totalorder %s23, 1
      %s373 = scalar_select %p372, %s23, 1
      %p374 = scmp.lt.s32.totalorder %s24, 1
      %s375 = scalar_select %p374, %s24, 1
      %s376 = smul.addr %s375, 2
      %s377 = smul.addr %s373, 4
      %s378 = sadd.s32 %s376, %s377
      %s379 = smul.addr %s378, 8
      %s380 = scalar_lea.vmem %s0, %s379
      %p381 = scmp.lt.s32.totalorder %s23, 1
      %s382 = scalar_select %p381, %s23, 1
      %p383 = scmp.lt.s32.totalorder %s24, 1
      %s384 = scalar_select %p383, %s24, 1
      %s385 = smul.addr %s382, 2
      %s386 = sadd.s32 %s384, %s385
      %s387 = smul.addr %s386, 4
      %s388 = scalar_lea.vmem %s1, %s387
      %p389 = scmp.lt.s32.totalorder %s23, 1
      %s390 = scalar_select %p389, %s23, 1
      %s391 = smul.addr %s390, 4
      %s392 = scalar_lea.vmem %s2, %s391
      %p393 = scmp.lt.s32.totalorder %s23, 1
      %s394 = scalar_select %p393, %s23, 1
      %s395 = smul.addr %s394, 4
      %s396 = scalar_lea.vmem %s3, %s395
      %p397 = scmp.lt.s32.totalorder %s23, 1
      %s398 = scalar_select %p397, %s23, 1
      %p399 = scmp.lt.s32.totalorder %s24, 1
      %s400 = scalar_select %p399, %s24, 1
      %s401 = smul.addr %s398, 2
      %s402 = sadd.s32 %s400, %s401
      %s403 = smul.addr %s402, 4
      %s404 = scalar_lea.vmem %s8, %s403
      %v405 = vlaneseq
      %v406 = vand.u32 %v405, 127
      %v407 = vadd.s32 %v406, 128
      %vm408 = vcmp.lt.s32.totalorder %v406, 0
      %v409 = vsub.s32 0, %v406
      %v410 = vsel %vm408, %v409, %v406
      %v411 = vshrl.u32 %v410, 4
      %v412 = vand.u32 %v410, 15
      %v413 = vsub.s32 0, %v412
      %v414 = vsel %vm408, %v413, %v412
      %vm415 = vcmp.lt.s32.totalorder %v407, 0
      %v416 = vsub.s32 0, %v407
      %v417 = vsel %vm415, %v416, %v407
      %v418 = vshrl.u32 %v417, 4
      %v419 = vand.u32 %v417, 15
      %v420 = vsub.s32 0, %v419
      %v421 = vsel %vm415, %v420, %v419
      %vm422 = vcmp.ne.s32.totalorder %v414, 0
      %vm423 = vcmp.ne.s32.totalorder %v421, 0
      %vm424 = vcmp.lt.s32.totalorder %v414, 0
      %vm425 = vcmp.lt.s32.totalorder %v421, 0
      %vm426 = vmand %vm424, %vm422
      %vm427 = vmand %vm425, %vm423
      %v428 = vadd.s32 %v414, 16
      %v429 = vadd.s32 %v421, 16
      %v430 = vsel %vm426, %v428, %v414
      %v431 = vsel %vm427, %v429, %v421
      %v432 = vld [vmem:[%s4] sm:$0xff]
      %v433 = vld [vmem:[%s4 + $0x8] sm:$0xff]
      %v434 = vld [vmem:[%s4 + $0x10] sm:$0xff]
      %v435 = vld [vmem:[%s4 + $0x18] sm:$0xff]
      %v436 = vld [vmem:[%s4 + $0x20] sm:$0xff]
      %v437 = vld [vmem:[%s4 + $0x28] sm:$0xff]
      %v438 = vld [vmem:[%s4 + $0x30] sm:$0xff]
      %v439 = vld [vmem:[%s4 + $0x38] sm:$0xff]
      %v440 = vld [vmem:[%s4 + $0x40] sm:$0xff]
      %v441 = vld [vmem:[%s4 + $0x48] sm:$0xff]
      %v442 = vld [vmem:[%s4 + $0x50] sm:$0xff]
      %v443 = vld [vmem:[%s4 + $0x58] sm:$0xff]
      %v444 = vld [vmem:[%s4 + $0x60] sm:$0xff]
      %v445 = vld [vmem:[%s4 + $0x68] sm:$0xff]
      %v446 = vld [vmem:[%s4 + $0x70] sm:$0xff]
      %v447 = vld [vmem:[%s4 + $0x78] sm:$0xff]
      %v448 = vld [vmem:[%s380] sm:$0xff]
      %v449 = vld [vmem:[%s380 + $0x8] sm:$0xff]
      %s450 = scalar_lea.vmem %s4, 384
      %v451 = vld [vmem:[%s450] sm:$0xff]
      %v452 = vld [vmem:[%s450 + $0x8] sm:$0xff]
      %v453 = vld [vmem:[%s450 + $0x10] sm:$0xff]
      %v454 = vld [vmem:[%s450 + $0x18] sm:$0xff]
      %v455 = vld [vmem:[%s450 + $0x20] sm:$0xff]
      %v456 = vld [vmem:[%s450 + $0x28] sm:$0xff]
      %v457 = vld [vmem:[%s450 + $0x30] sm:$0xff]
      %v458 = vld [vmem:[%s450 + $0x38] sm:$0xff]
      %v459 = vld [vmem:[%s450 + $0x40] sm:$0xff]
      %v460 = vld [vmem:[%s450 + $0x48] sm:$0xff]
      %v461 = vld [vmem:[%s450 + $0x50] sm:$0xff]
      %v462 = vld [vmem:[%s450 + $0x58] sm:$0xff]
      %v463 = vld [vmem:[%s450 + $0x60] sm:$0xff]
      %v464 = vld [vmem:[%s450 + $0x68] sm:$0xff]
      %v465 = vld [vmem:[%s450 + $0x70] sm:$0xff]
      %v466 = vld [vmem:[%s450 + $0x78] sm:$0xff]
      %469 = vrot.lane.b32.xlu0 %v448, 112
      %v470 = vpop.permute.xlu0 %469
      %471 = vrot.lane.b32.xlu0 %v449, 112
      %v472 = vpop.permute.xlu0 %471
      %vm473 = vcmask 916480
      %v474 = vsel %vm473, %v470, %v472
      %vm477 = vcmask 64512
      %v479 = vsel %vm477, %v451, 0
      %v482 = vsel %vm477, %v452, 0
      %v485 = vsel %vm477, %v453, 0
      %v488 = vsel %vm477, %v454, 0
      %v491 = vsel %vm477, %v455, 0
      %v494 = vsel %vm477, %v456, 0
      %v497 = vsel %vm477, %v457, 0
      %v500 = vsel %vm477, %v458, 0
      %v503 = vsel %vm477, %v459, 0
      %v506 = vsel %vm477, %v460, 0
      %v509 = vsel %vm477, %v461, 0
      %v512 = vsel %vm477, %v462, 0
      %v515 = vsel %vm477, %v463, 0
      %v518 = vsel %vm477, %v464, 0
      %v521 = vsel %vm477, %v465, 0
      %v524 = vsel %vm477, %v466, 0
      %526 = vmatprep.subr.mxu0 0.0
      %527 = vmatpush1.msra.mxu0 0.0
      %528 = vmatprep.subr.mxu0 0.0
      %529 = vmatpush1.msra.mxu0 0.0
      %530 = vmatprep.subr.mxu0 0.0
      %531 = vmatpush1.msra.mxu0 0.0
      %532 = vmatprep.subr.mxu0 0.0
      %533 = vmatpush1.msra.mxu0 0.0
      %534 = vmatprep.subr.mxu0 0.0
      %535 = vmatpush1.msra.mxu0 0.0
      %536 = vmatprep.subr.mxu0 0.0
      %537 = vmatpush1.msra.mxu0 0.0
      %538 = vmatprep.subr.mxu0 0.0
      %539 = vmatpush1.msra.mxu0 0.0
      %540 = vmatprep.subr.mxu0 0.0
      %541 = vmatpush1.msra.mxu0 0.0
      %542 = vmatprep.subr.mxu0 0.0
      %543 = vmatpush1.msra.mxu0 0.0
      %544 = vmatprep.subr.mxu0 0.0
      %545 = vmatpush1.msra.mxu0 0.0
      %546 = vmatprep.subr.mxu0 0.0
      %547 = vmatpush1.msra.mxu0 0.0
      %548 = vmatprep.subr.mxu0 0.0
      %549 = vmatpush1.msra.mxu0 0.0
      %550 = vmatprep.subr.mxu0 0.0
      %551 = vmatpush1.msra.mxu0 0.0
      %552 = vmatprep.subr.mxu0 0.0
      %553 = vmatpush1.msra.mxu0 0.0
      %554 = vmatprep.subr.mxu0 0.0
      %555 = vmatpush1.msra.mxu0 0.0
      %556 = vmatprep.subr.mxu0 %v472
      %557 = vmatpush1.msra.mxu0 %v474
      %558 = vmatprep.subr.mxu0 0.0
      %559 = vmatpush2.msra.mxu0 0.0
      %560 = vmatprep.subr.mxu0 0.0
      %561 = vmatpush2.msra.mxu0 0.0
      %562 = vmatprep.subr.mxu0 0.0
      %563 = vmatpush2.msra.mxu0 0.0
      %564 = vmatprep.subr.mxu0 0.0
      %565 = vmatpush2.msra.mxu0 0.0
      %566 = vmatprep.subr.mxu0 0.0
      %567 = vmatpush2.msra.mxu0 0.0
      %568 = vmatprep.subr.mxu0 0.0
      %569 = vmatpush2.msra.mxu0 0.0
      %570 = vmatprep.subr.mxu0 0.0
      %571 = vmatpush2.msra.mxu0 0.0
      %572 = vmatprep.subr.mxu0 0.0
      %573 = vmatpush2.msra.mxu0 0.0
      %574 = vmatprep.subr.mxu0 0.0
      %575 = vmatpush2.msra.mxu0 0.0
      %576 = vmatprep.subr.mxu0 0.0
      %577 = vmatpush2.msra.mxu0 0.0
      %578 = vmatprep.subr.mxu0 0.0
      %579 = vmatpush2.msra.mxu0 0.0
      %580 = vmatprep.subr.mxu0 0.0
      %581 = vmatpush2.msra.mxu0 0.0
      %582 = vmatprep.subr.mxu0 0.0
      %583 = vmatpush2.msra.mxu0 0.0
      %584 = vmatprep.subr.mxu0 0.0
      %585 = vmatpush2.msra.mxu0 0.0
      %586 = vmatprep.subr.mxu0 0.0
      %587 = vmatpush2.msra.mxu0 0.0
      %588 = vmatprep.subr.mxu0 0.0
      %589 = vmatpush2.msra.mxu0 0.0
      %590 = vmatprep.mubr.f32.mxu0 0.0
      %591 = vmatmul.mubr.f32.gmra.mxu0 %v479
      %v592 = vpop.f32.mrf.mxu0
      %v593 = vadd.f32 0.0, %v592
      %v594 = vpop.f32.mrf.mxu0
      %v595 = vadd.f32 0.0, %v594
      %596 = vmatprep.mubr.f32.mxu0 0.0
      %597 = vmatmul.mubr.f32.gmra.mxu0 %v482
      %v598 = vpop.f32.mrf.mxu0
      %v599 = vadd.f32 0.0, %v598
      %v600 = vpop.f32.mrf.mxu0
      %v601 = vadd.f32 0.0, %v600
      %602 = vmatprep.mubr.f32.mxu0 0.0
      %603 = vmatmul.mubr.f32.gmra.mxu0 %v485
      %v604 = vpop.f32.mrf.mxu0
      %v605 = vadd.f32 0.0, %v604
      %v606 = vpop.f32.mrf.mxu0
      %v607 = vadd.f32 0.0, %v606
      %608 = vmatprep.mubr.f32.mxu0 0.0
      %609 = vmatmul.mubr.f32.gmra.mxu0 %v488
      %v610 = vpop.f32.mrf.mxu0
      %v611 = vadd.f32 0.0, %v610
      %v612 = vpop.f32.mrf.mxu0
      %v613 = vadd.f32 0.0, %v612
      %614 = vmatprep.mubr.f32.mxu0 0.0
      %615 = vmatmul.mubr.f32.gmra.mxu0 %v491
      %v616 = vpop.f32.mrf.mxu0
      %v617 = vadd.f32 0.0, %v616
      %v618 = vpop.f32.mrf.mxu0
      %v619 = vadd.f32 0.0, %v618
      %620 = vmatprep.mubr.f32.mxu0 0.0
      %621 = vmatmul.mubr.f32.gmra.mxu0 %v494
      %v622 = vpop.f32.mrf.mxu0
      %v623 = vadd.f32 0.0, %v622
      %v624 = vpop.f32.mrf.mxu0
      %v625 = vadd.f32 0.0, %v624
      %626 = vmatprep.mubr.f32.mxu0 0.0
      %627 = vmatmul.mubr.f32.gmra.mxu0 %v497
      %v628 = vpop.f32.mrf.mxu0
      %v629 = vadd.f32 0.0, %v628
      %v630 = vpop.f32.mrf.mxu0
      %v631 = vadd.f32 0.0, %v630
      %632 = vmatprep.mubr.f32.mxu0 0.0
      %633 = vmatmul.mubr.f32.gmra.mxu0 %v500
      %v634 = vpop.f32.mrf.mxu0
      %v635 = vadd.f32 0.0, %v634
      %v636 = vpop.f32.mrf.mxu0
      %v637 = vadd.f32 0.0, %v636
      %638 = vmatprep.mubr.f32.mxu0 0.0
      %639 = vmatmul.mubr.f32.gmra.mxu0 %v503
      %v640 = vpop.f32.mrf.mxu0
      %v641 = vadd.f32 0.0, %v640
      %v642 = vpop.f32.mrf.mxu0
      %v643 = vadd.f32 0.0, %v642
      %644 = vmatprep.mubr.f32.mxu0 0.0
      %645 = vmatmul.mubr.f32.gmra.mxu0 %v506
      %v646 = vpop.f32.mrf.mxu0
      %v647 = vadd.f32 0.0, %v646
      %v648 = vpop.f32.mrf.mxu0
      %v649 = vadd.f32 0.0, %v648
      %650 = vmatprep.mubr.f32.mxu0 0.0
      %651 = vmatmul.mubr.f32.gmra.mxu0 %v509
      %v652 = vpop.f32.mrf.mxu0
      %v653 = vadd.f32 0.0, %v652
      %v654 = vpop.f32.mrf.mxu0
      %v655 = vadd.f32 0.0, %v654
      %656 = vmatprep.mubr.f32.mxu0 0.0
      %657 = vmatmul.mubr.f32.gmra.mxu0 %v512
      %v658 = vpop.f32.mrf.mxu0
      %v659 = vadd.f32 0.0, %v658
      %v660 = vpop.f32.mrf.mxu0
      %v661 = vadd.f32 0.0, %v660
      %662 = vmatprep.mubr.f32.mxu0 0.0
      %663 = vmatmul.mubr.f32.gmra.mxu0 %v515
      %v664 = vpop.f32.mrf.mxu0
      %v665 = vadd.f32 0.0, %v664
      %v666 = vpop.f32.mrf.mxu0
      %v667 = vadd.f32 0.0, %v666
      %668 = vmatprep.mubr.f32.mxu0 0.0
      %669 = vmatmul.mubr.f32.gmra.mxu0 %v518
      %v670 = vpop.f32.mrf.mxu0
      %v671 = vadd.f32 0.0, %v670
      %v672 = vpop.f32.mrf.mxu0
      %v673 = vadd.f32 0.0, %v672
      %674 = vmatprep.mubr.f32.mxu0 0.0
      %675 = vmatmul.mubr.f32.gmra.mxu0 %v521
      %v676 = vpop.f32.mrf.mxu0
      %v677 = vadd.f32 0.0, %v676
      %v678 = vpop.f32.mrf.mxu0
      %v679 = vadd.f32 0.0, %v678
      %680 = vmatprep.mubr.f32.mxu0 0.0
      %681 = vmatmul.mubr.f32.gmra.mxu0 %v524
      %v682 = vpop.f32.mrf.mxu0
      %v683 = vadd.f32 0.0, %v682
      %v684 = vpop.f32.mrf.mxu0
      %v685 = vadd.f32 0.0, %v684
      %686 = vdwg.mxu0
      %v688 = vsel %vm477, %v432, 0
      %v691 = vsel %vm477, %v433, 0
      %v694 = vsel %vm477, %v434, 0
      %v697 = vsel %vm477, %v435, 0
      %v700 = vsel %vm477, %v436, 0
      %v703 = vsel %vm477, %v437, 0
      %v706 = vsel %vm477, %v438, 0
      %v709 = vsel %vm477, %v439, 0
      %v712 = vsel %vm477, %v440, 0
      %v715 = vsel %vm477, %v441, 0
      %v718 = vsel %vm477, %v442, 0
      %v721 = vsel %vm477, %v443, 0
      %v724 = vsel %vm477, %v444, 0
      %v727 = vsel %vm477, %v445, 0
      %v730 = vsel %vm477, %v446, 0
      %v733 = vsel %vm477, %v447, 0
      %735 = vmatprep.subr.mxu0 0.0
      %736 = vmatpush1.msra.mxu0 0.0
      %737 = vmatprep.subr.mxu0 0.0
      %738 = vmatpush1.msra.mxu0 0.0
      %739 = vmatprep.subr.mxu0 0.0
      %740 = vmatpush1.msra.mxu0 0.0
      %741 = vmatprep.subr.mxu0 0.0
      %742 = vmatpush1.msra.mxu0 0.0
      %743 = vmatprep.subr.mxu0 0.0
      %744 = vmatpush1.msra.mxu0 0.0
      %745 = vmatprep.subr.mxu0 0.0
      %746 = vmatpush1.msra.mxu0 0.0
      %747 = vmatprep.subr.mxu0 0.0
      %748 = vmatpush1.msra.mxu0 0.0
      %749 = vmatprep.subr.mxu0 0.0
      %750 = vmatpush1.msra.mxu0 0.0
      %751 = vmatprep.subr.mxu0 0.0
      %752 = vmatpush1.msra.mxu0 0.0
      %753 = vmatprep.subr.mxu0 0.0
      %754 = vmatpush1.msra.mxu0 0.0
      %755 = vmatprep.subr.mxu0 0.0
      %756 = vmatpush1.msra.mxu0 0.0
      %757 = vmatprep.subr.mxu0 0.0
      %758 = vmatpush1.msra.mxu0 0.0
      %759 = vmatprep.subr.mxu0 0.0
      %760 = vmatpush1.msra.mxu0 0.0
      %761 = vmatprep.subr.mxu0 0.0
      %762 = vmatpush1.msra.mxu0 0.0
      %763 = vmatprep.subr.mxu0 0.0
      %764 = vmatpush1.msra.mxu0 0.0
      %765 = vmatprep.subr.mxu0 %v449
      %766 = vmatpush1.msra.mxu0 %v448
      %767 = vmatprep.subr.mxu0 0.0
      %768 = vmatpush2.msra.mxu0 0.0
      %769 = vmatprep.subr.mxu0 0.0
      %770 = vmatpush2.msra.mxu0 0.0
      %771 = vmatprep.subr.mxu0 0.0
      %772 = vmatpush2.msra.mxu0 0.0
      %773 = vmatprep.subr.mxu0 0.0
      %774 = vmatpush2.msra.mxu0 0.0
      %775 = vmatprep.subr.mxu0 0.0
      %776 = vmatpush2.msra.mxu0 0.0
      %777 = vmatprep.subr.mxu0 0.0
      %778 = vmatpush2.msra.mxu0 0.0
      %779 = vmatprep.subr.mxu0 0.0
      %780 = vmatpush2.msra.mxu0 0.0
      %781 = vmatprep.subr.mxu0 0.0
      %782 = vmatpush2.msra.mxu0 0.0
      %783 = vmatprep.subr.mxu0 0.0
      %784 = vmatpush2.msra.mxu0 0.0
      %785 = vmatprep.subr.mxu0 0.0
      %786 = vmatpush2.msra.mxu0 0.0
      %787 = vmatprep.subr.mxu0 0.0
      %788 = vmatpush2.msra.mxu0 0.0
      %789 = vmatprep.subr.mxu0 0.0
      %790 = vmatpush2.msra.mxu0 0.0
      %791 = vmatprep.subr.mxu0 0.0
      %792 = vmatpush2.msra.mxu0 0.0
      %793 = vmatprep.subr.mxu0 0.0
      %794 = vmatpush2.msra.mxu0 0.0
      %795 = vmatprep.subr.mxu0 0.0
      %796 = vmatpush2.msra.mxu0 0.0
      %797 = vmatprep.subr.mxu0 0.0
      %798 = vmatpush2.msra.mxu0 0.0
      %799 = vmatprep.mubr.f32.mxu0 0.0
      %800 = vmatmul.mubr.f32.gmra.mxu0 %v688
      %v801 = vpop.f32.mrf.mxu0
      %v802 = vadd.f32 %v593, %v801
      %v803 = vpop.f32.mrf.mxu0
      %v804 = vadd.f32 %v595, %v803
      %805 = vmatprep.mubr.f32.mxu0 0.0
      %806 = vmatmul.mubr.f32.gmra.mxu0 %v691
      %v807 = vpop.f32.mrf.mxu0
      %v808 = vadd.f32 %v599, %v807
      %v809 = vpop.f32.mrf.mxu0
      %v810 = vadd.f32 %v601, %v809
      %811 = vmatprep.mubr.f32.mxu0 0.0
      %812 = vmatmul.mubr.f32.gmra.mxu0 %v694
      %v813 = vpop.f32.mrf.mxu0
      %v814 = vadd.f32 %v605, %v813
      %v815 = vpop.f32.mrf.mxu0
      %v816 = vadd.f32 %v607, %v815
      %817 = vmatprep.mubr.f32.mxu0 0.0
      %818 = vmatmul.mubr.f32.gmra.mxu0 %v697
      %v819 = vpop.f32.mrf.mxu0
      %v820 = vadd.f32 %v611, %v819
      %v821 = vpop.f32.mrf.mxu0
      %v822 = vadd.f32 %v613, %v821
      %823 = vmatprep.mubr.f32.mxu0 0.0
      %824 = vmatmul.mubr.f32.gmra.mxu0 %v700
      %v825 = vpop.f32.mrf.mxu0
      %v826 = vadd.f32 %v617, %v825
      %v827 = vpop.f32.mrf.mxu0
      %v828 = vadd.f32 %v619, %v827
      %829 = vmatprep.mubr.f32.mxu0 0.0
      %830 = vmatmul.mubr.f32.gmra.mxu0 %v703
      %v831 = vpop.f32.mrf.mxu0
      %v832 = vadd.f32 %v623, %v831
      %v833 = vpop.f32.mrf.mxu0
      %v834 = vadd.f32 %v625, %v833
      %835 = vmatprep.mubr.f32.mxu0 0.0
      %836 = vmatmul.mubr.f32.gmra.mxu0 %v706
      %v837 = vpop.f32.mrf.mxu0
      %v838 = vadd.f32 %v629, %v837
      %v839 = vpop.f32.mrf.mxu0
      %v840 = vadd.f32 %v631, %v839
      %841 = vmatprep.mubr.f32.mxu0 0.0
      %842 = vmatmul.mubr.f32.gmra.mxu0 %v709
      %v843 = vpop.f32.mrf.mxu0
      %v844 = vadd.f32 %v635, %v843
      %v845 = vpop.f32.mrf.mxu0
      %v846 = vadd.f32 %v637, %v845
      %847 = vmatprep.mubr.f32.mxu0 0.0
      %848 = vmatmul.mubr.f32.gmra.mxu0 %v712
      %v849 = vpop.f32.mrf.mxu0
      %v850 = vadd.f32 %v641, %v849
      %v851 = vpop.f32.mrf.mxu0
      %v852 = vadd.f32 %v643, %v851
      %853 = vmatprep.mubr.f32.mxu0 0.0
      %854 = vmatmul.mubr.f32.gmra.mxu0 %v715
      %v855 = vpop.f32.mrf.mxu0
      %v856 = vadd.f32 %v647, %v855
      %v857 = vpop.f32.mrf.mxu0
      %v858 = vadd.f32 %v649, %v857
      %859 = vmatprep.mubr.f32.mxu0 0.0
      %860 = vmatmul.mubr.f32.gmra.mxu0 %v718
      %v861 = vpop.f32.mrf.mxu0
      %v862 = vadd.f32 %v653, %v861
      %v863 = vpop.f32.mrf.mxu0
      %v864 = vadd.f32 %v655, %v863
      %865 = vmatprep.mubr.f32.mxu0 0.0
      %866 = vmatmul.mubr.f32.gmra.mxu0 %v721
      %v867 = vpop.f32.mrf.mxu0
      %v868 = vadd.f32 %v659, %v867
      %v869 = vpop.f32.mrf.mxu0
      %v870 = vadd.f32 %v661, %v869
      %871 = vmatprep.mubr.f32.mxu0 0.0
      %872 = vmatmul.mubr.f32.gmra.mxu0 %v724
      %v873 = vpop.f32.mrf.mxu0
      %v874 = vadd.f32 %v665, %v873
      %v875 = vpop.f32.mrf.mxu0
      %v876 = vadd.f32 %v667, %v875
      %877 = vmatprep.mubr.f32.mxu0 0.0
      %878 = vmatmul.mubr.f32.gmra.mxu0 %v727
      %v879 = vpop.f32.mrf.mxu0
      %v880 = vadd.f32 %v671, %v879
      %v881 = vpop.f32.mrf.mxu0
      %v882 = vadd.f32 %v673, %v881
      %883 = vmatprep.mubr.f32.mxu0 0.0
      %884 = vmatmul.mubr.f32.gmra.mxu0 %v730
      %v885 = vpop.f32.mrf.mxu0
      %v886 = vadd.f32 %v677, %v885
      %v887 = vpop.f32.mrf.mxu0
      %v888 = vadd.f32 %v679, %v887
      %889 = vmatprep.mubr.f32.mxu0 0.0
      %890 = vmatmul.mubr.f32.gmra.mxu0 %v733
      %v891 = vpop.f32.mrf.mxu0
      %v892 = vadd.f32 %v683, %v891
      %v893 = vpop.f32.mrf.mxu0
      %v894 = vadd.f32 %v685, %v893
      %895 = vdwg.mxu0
      %s896 = scalar_lea.vmem %s4, 768
      %v897 = vld [vmem:[%s896] sm:$0xff]
      %v898 = vld [vmem:[%s896 + $0x8] sm:$0xff]
      %v899 = vld [vmem:[%s896 + $0x10] sm:$0xff]
      %v900 = vld [vmem:[%s896 + $0x18] sm:$0xff]
      %v901 = vld [vmem:[%s896 + $0x20] sm:$0xff]
      %v902 = vld [vmem:[%s896 + $0x28] sm:$0xff]
      %v903 = vld [vmem:[%s896 + $0x30] sm:$0xff]
      %v904 = vld [vmem:[%s896 + $0x38] sm:$0xff]
      %v905 = vld [vmem:[%s896 + $0x40] sm:$0xff]
      %v906 = vld [vmem:[%s896 + $0x48] sm:$0xff]
      %v907 = vld [vmem:[%s896 + $0x50] sm:$0xff]
      %v908 = vld [vmem:[%s896 + $0x58] sm:$0xff]
      %v909 = vld [vmem:[%s896 + $0x60] sm:$0xff]
      %v910 = vld [vmem:[%s896 + $0x68] sm:$0xff]
      %v911 = vld [vmem:[%s896 + $0x70] sm:$0xff]
      %v912 = vld [vmem:[%s896 + $0x78] sm:$0xff]
      %913 = vrot.lane.b32.xlu0 %v448, 96
      %v914 = vpop.permute.xlu0 %913
      %915 = vrot.lane.b32.xlu0 %v449, 96
      %v916 = vpop.permute.xlu0 %915
      %vm917 = vcmask 785408
      %v918 = vsel %vm917, %v914, %v916
      %v922 = vsel %vm477, %v897, 0
      %v925 = vsel %vm477, %v898, 0
      %v928 = vsel %vm477, %v899, 0
      %v931 = vsel %vm477, %v900, 0
      %v934 = vsel %vm477, %v901, 0
      %v937 = vsel %vm477, %v902, 0
      %v940 = vsel %vm477, %v903, 0
      %v943 = vsel %vm477, %v904, 0
      %v946 = vsel %vm477, %v905, 0
      %v949 = vsel %vm477, %v906, 0
      %v952 = vsel %vm477, %v907, 0
      %v955 = vsel %vm477, %v908, 0
      %v958 = vsel %vm477, %v909, 0
      %v961 = vsel %vm477, %v910, 0
      %v964 = vsel %vm477, %v911, 0
      %v967 = vsel %vm477, %v912, 0
      %969 = vmatprep.subr.mxu0 0.0
      %970 = vmatpush1.msra.mxu0 0.0
      %971 = vmatprep.subr.mxu0 0.0
      %972 = vmatpush1.msra.mxu0 0.0
      %973 = vmatprep.subr.mxu0 0.0
      %974 = vmatpush1.msra.mxu0 0.0
      %975 = vmatprep.subr.mxu0 0.0
      %976 = vmatpush1.msra.mxu0 0.0
      %977 = vmatprep.subr.mxu0 0.0
      %978 = vmatpush1.msra.mxu0 0.0
      %979 = vmatprep.subr.mxu0 0.0
      %980 = vmatpush1.msra.mxu0 0.0
      %981 = vmatprep.subr.mxu0 0.0
      %982 = vmatpush1.msra.mxu0 0.0
      %983 = vmatprep.subr.mxu0 0.0
      %984 = vmatpush1.msra.mxu0 0.0
      %985 = vmatprep.subr.mxu0 0.0
      %986 = vmatpush1.msra.mxu0 0.0
      %987 = vmatprep.subr.mxu0 0.0
      %988 = vmatpush1.msra.mxu0 0.0
      %989 = vmatprep.subr.mxu0 0.0
      %990 = vmatpush1.msra.mxu0 0.0
      %991 = vmatprep.subr.mxu0 0.0
      %992 = vmatpush1.msra.mxu0 0.0
      %993 = vmatprep.subr.mxu0 0.0
      %994 = vmatpush1.msra.mxu0 0.0
      %995 = vmatprep.subr.mxu0 0.0
      %996 = vmatpush1.msra.mxu0 0.0
      %997 = vmatprep.subr.mxu0 0.0
      %998 = vmatpush1.msra.mxu0 0.0
      %999 = vmatprep.subr.mxu0 %v916
      %1000 = vmatpush1.msra.mxu0 %v918
      %1001 = vmatprep.subr.mxu0 0.0
      %1002 = vmatpush2.msra.mxu0 0.0
      %1003 = vmatprep.subr.mxu0 0.0
      %1004 = vmatpush2.msra.mxu0 0.0
      %1005 = vmatprep.subr.mxu0 0.0
      %1006 = vmatpush2.msra.mxu0 0.0
      %1007 = vmatprep.subr.mxu0 0.0
      %1008 = vmatpush2.msra.mxu0 0.0
      %1009 = vmatprep.subr.mxu0 0.0
      %1010 = vmatpush2.msra.mxu0 0.0
      %1011 = vmatprep.subr.mxu0 0.0
      %1012 = vmatpush2.msra.mxu0 0.0
      %1013 = vmatprep.subr.mxu0 0.0
      %1014 = vmatpush2.msra.mxu0 0.0
      %1015 = vmatprep.subr.mxu0 0.0
      %1016 = vmatpush2.msra.mxu0 0.0
      %1017 = vmatprep.subr.mxu0 0.0
      %1018 = vmatpush2.msra.mxu0 0.0
      %1019 = vmatprep.subr.mxu0 0.0
      %1020 = vmatpush2.msra.mxu0 0.0
      %1021 = vmatprep.subr.mxu0 0.0
      %1022 = vmatpush2.msra.mxu0 0.0
      %1023 = vmatprep.subr.mxu0 0.0
      %1024 = vmatpush2.msra.mxu0 0.0
      %1025 = vmatprep.subr.mxu0 0.0
      %1026 = vmatpush2.msra.mxu0 0.0
      %1027 = vmatprep.subr.mxu0 0.0
      %1028 = vmatpush2.msra.mxu0 0.0
      %1029 = vmatprep.subr.mxu0 0.0
      %1030 = vmatpush2.msra.mxu0 0.0
      %1031 = vmatprep.subr.mxu0 0.0
      %1032 = vmatpush2.msra.mxu0 0.0
      %1033 = vmatprep.mubr.f32.mxu0 0.0
      %1034 = vmatmul.mubr.f32.gmra.mxu0 %v922
      %v1035 = vpop.f32.mrf.mxu0
      %v1036 = vadd.f32 0.0, %v1035
      %v1037 = vpop.f32.mrf.mxu0
      %v1038 = vadd.f32 0.0, %v1037
      %1039 = vmatprep.mubr.f32.mxu0 0.0
      %1040 = vmatmul.mubr.f32.gmra.mxu0 %v925
      %v1041 = vpop.f32.mrf.mxu0
      %v1042 = vadd.f32 0.0, %v1041
      %v1043 = vpop.f32.mrf.mxu0
      %v1044 = vadd.f32 0.0, %v1043
      %1045 = vmatprep.mubr.f32.mxu0 0.0
      %1046 = vmatmul.mubr.f32.gmra.mxu0 %v928
      %v1047 = vpop.f32.mrf.mxu0
      %v1048 = vadd.f32 0.0, %v1047
      %v1049 = vpop.f32.mrf.mxu0
      %v1050 = vadd.f32 0.0, %v1049
      %1051 = vmatprep.mubr.f32.mxu0 0.0
      %1052 = vmatmul.mubr.f32.gmra.mxu0 %v931
      %v1053 = vpop.f32.mrf.mxu0
      %v1054 = vadd.f32 0.0, %v1053
      %v1055 = vpop.f32.mrf.mxu0
      %v1056 = vadd.f32 0.0, %v1055
      %1057 = vmatprep.mubr.f32.mxu0 0.0
      %1058 = vmatmul.mubr.f32.gmra.mxu0 %v934
      %v1059 = vpop.f32.mrf.mxu0
      %v1060 = vadd.f32 0.0, %v1059
      %v1061 = vpop.f32.mrf.mxu0
      %v1062 = vadd.f32 0.0, %v1061
      %1063 = vmatprep.mubr.f32.mxu0 0.0
      %1064 = vmatmul.mubr.f32.gmra.mxu0 %v937
      %v1065 = vpop.f32.mrf.mxu0
      %v1066 = vadd.f32 0.0, %v1065
      %v1067 = vpop.f32.mrf.mxu0
      %v1068 = vadd.f32 0.0, %v1067
      %1069 = vmatprep.mubr.f32.mxu0 0.0
      %1070 = vmatmul.mubr.f32.gmra.mxu0 %v940
      %v1071 = vpop.f32.mrf.mxu0
      %v1072 = vadd.f32 0.0, %v1071
      %v1073 = vpop.f32.mrf.mxu0
      %v1074 = vadd.f32 0.0, %v1073
      %1075 = vmatprep.mubr.f32.mxu0 0.0
      %1076 = vmatmul.mubr.f32.gmra.mxu0 %v943
      %v1077 = vpop.f32.mrf.mxu0
      %v1078 = vadd.f32 0.0, %v1077
      %v1079 = vpop.f32.mrf.mxu0
      %v1080 = vadd.f32 0.0, %v1079
      %1081 = vmatprep.mubr.f32.mxu0 0.0
      %1082 = vmatmul.mubr.f32.gmra.mxu0 %v946
      %v1083 = vpop.f32.mrf.mxu0
      %v1084 = vadd.f32 0.0, %v1083
      %v1085 = vpop.f32.mrf.mxu0
      %v1086 = vadd.f32 0.0, %v1085
      %1087 = vmatprep.mubr.f32.mxu0 0.0
      %1088 = vmatmul.mubr.f32.gmra.mxu0 %v949
      %v1089 = vpop.f32.mrf.mxu0
      %v1090 = vadd.f32 0.0, %v1089
      %v1091 = vpop.f32.mrf.mxu0
      %v1092 = vadd.f32 0.0, %v1091
      %1093 = vmatprep.mubr.f32.mxu0 0.0
      %1094 = vmatmul.mubr.f32.gmra.mxu0 %v952
      %v1095 = vpop.f32.mrf.mxu0
      %v1096 = vadd.f32 0.0, %v1095
      %v1097 = vpop.f32.mrf.mxu0
      %v1098 = vadd.f32 0.0, %v1097
      %1099 = vmatprep.mubr.f32.mxu0 0.0
      %1100 = vmatmul.mubr.f32.gmra.mxu0 %v955
      %v1101 = vpop.f32.mrf.mxu0
      %v1102 = vadd.f32 0.0, %v1101
      %v1103 = vpop.f32.mrf.mxu0
      %v1104 = vadd.f32 0.0, %v1103
      %1105 = vmatprep.mubr.f32.mxu0 0.0
      %1106 = vmatmul.mubr.f32.gmra.mxu0 %v958
      %v1107 = vpop.f32.mrf.mxu0
      %v1108 = vadd.f32 0.0, %v1107
      %v1109 = vpop.f32.mrf.mxu0
      %v1110 = vadd.f32 0.0, %v1109
      %1111 = vmatprep.mubr.f32.mxu0 0.0
      %1112 = vmatmul.mubr.f32.gmra.mxu0 %v961
      %v1113 = vpop.f32.mrf.mxu0
      %v1114 = vadd.f32 0.0, %v1113
      %v1115 = vpop.f32.mrf.mxu0
      %v1116 = vadd.f32 0.0, %v1115
      %1117 = vmatprep.mubr.f32.mxu0 0.0
      %1118 = vmatmul.mubr.f32.gmra.mxu0 %v964
      %v1119 = vpop.f32.mrf.mxu0
      %v1120 = vadd.f32 0.0, %v1119
      %v1121 = vpop.f32.mrf.mxu0
      %v1122 = vadd.f32 0.0, %v1121
      %1123 = vmatprep.mubr.f32.mxu0 0.0
      %1124 = vmatmul.mubr.f32.gmra.mxu0 %v967
      %v1125 = vpop.f32.mrf.mxu0
      %v1126 = vadd.f32 0.0, %v1125
      %v1127 = vpop.f32.mrf.mxu0
      %v1128 = vadd.f32 0.0, %v1127
      %1129 = vdwg.mxu0
      %v1130 = vadd.f32 %v802, %v1036
      %v1131 = vadd.f32 %v804, %v1038
      %v1132 = vadd.f32 %v808, %v1042
      %v1133 = vadd.f32 %v810, %v1044
      %v1134 = vadd.f32 %v814, %v1048
      %v1135 = vadd.f32 %v816, %v1050
      %v1136 = vadd.f32 %v820, %v1054
      %v1137 = vadd.f32 %v822, %v1056
      %v1138 = vadd.f32 %v826, %v1060
      %v1139 = vadd.f32 %v828, %v1062
      %v1140 = vadd.f32 %v832, %v1066
      %v1141 = vadd.f32 %v834, %v1068
      %v1142 = vadd.f32 %v838, %v1072
      %v1143 = vadd.f32 %v840, %v1074
      %v1144 = vadd.f32 %v844, %v1078
      %v1145 = vadd.f32 %v846, %v1080
      %v1146 = vadd.f32 %v850, %v1084
      %v1147 = vadd.f32 %v852, %v1086
      %v1148 = vadd.f32 %v856, %v1090
      %v1149 = vadd.f32 %v858, %v1092
      %v1150 = vadd.f32 %v862, %v1096
      %v1151 = vadd.f32 %v864, %v1098
      %v1152 = vadd.f32 %v868, %v1102
      %v1153 = vadd.f32 %v870, %v1104
      %v1154 = vadd.f32 %v874, %v1108
      %v1155 = vadd.f32 %v876, %v1110
      %v1156 = vadd.f32 %v880, %v1114
      %v1157 = vadd.f32 %v882, %v1116
      %v1158 = vadd.f32 %v886, %v1120
      %v1159 = vadd.f32 %v888, %v1122
      %v1160 = vadd.f32 %v892, %v1126
      %v1161 = vadd.f32 %v894, %v1128
      %vm1162 = vcmp.gt.s32.totalorder %v430, 0
      %vm1163 = vcmp.gt.s32.totalorder %v431, 0
      %v1164 = vsel %vm1162, 1, 0
      %v1165 = vsel %vm1163, 1, 0
      %vm1166 = vcmp.eq.s32.totalorder %v1164, 1
      %vm1167 = vcmp.eq.s32.totalorder %v1165, 1
      %v1168 = vsel %vm1166, %v1130, 0.0
      %v1169 = vsel %vm1167, %v1131, 0.0
      %v1170 = vsel %vm1166, %v1132, 0.0
      %v1171 = vsel %vm1167, %v1133, 0.0
      %v1172 = vsel %vm1166, %v1134, 0.0
      %v1173 = vsel %vm1167, %v1135, 0.0
      %v1174 = vsel %vm1166, %v1136, 0.0
      %v1175 = vsel %vm1167, %v1137, 0.0
      %v1176 = vsel %vm1166, %v1138, 0.0
      %v1177 = vsel %vm1167, %v1139, 0.0
      %v1178 = vsel %vm1166, %v1140, 0.0
      %v1179 = vsel %vm1167, %v1141, 0.0
      %v1180 = vsel %vm1166, %v1142, 0.0
      %v1181 = vsel %vm1167, %v1143, 0.0
      %v1182 = vsel %vm1166, %v1144, 0.0
      %v1183 = vsel %vm1167, %v1145, 0.0
      %v1184 = vsel %vm1166, %v1146, 0.0
      %v1185 = vsel %vm1167, %v1147, 0.0
      %v1186 = vsel %vm1166, %v1148, 0.0
      %v1187 = vsel %vm1167, %v1149, 0.0
      %v1188 = vsel %vm1166, %v1150, 0.0
      %v1189 = vsel %vm1167, %v1151, 0.0
      %v1190 = vsel %vm1166, %v1152, 0.0
      %v1191 = vsel %vm1167, %v1153, 0.0
      %v1192 = vsel %vm1166, %v1154, 0.0
      %v1193 = vsel %vm1167, %v1155, 0.0
      %v1194 = vsel %vm1166, %v1156, 0.0
      %v1195 = vsel %vm1167, %v1157, 0.0
      %v1196 = vsel %vm1166, %v1158, 0.0
      %v1197 = vsel %vm1167, %v1159, 0.0
      %v1198 = vsel %vm1166, %v1160, 0.0
      %v1199 = vsel %vm1167, %v1161, 0.0
      %s1200 = scalar_lea.vmem %s4, 128
      %v1201 = vld [vmem:[%s1200] sm:$0xff]
      %v1202 = vld [vmem:[%s1200 + $0x8] sm:$0xff]
      %v1203 = vld [vmem:[%s1200 + $0x10] sm:$0xff]
      %v1204 = vld [vmem:[%s1200 + $0x18] sm:$0xff]
      %v1205 = vld [vmem:[%s1200 + $0x20] sm:$0xff]
      %v1206 = vld [vmem:[%s1200 + $0x28] sm:$0xff]
      %v1207 = vld [vmem:[%s1200 + $0x30] sm:$0xff]
      %v1208 = vld [vmem:[%s1200 + $0x38] sm:$0xff]
      %v1209 = vld [vmem:[%s1200 + $0x40] sm:$0xff]
      %v1210 = vld [vmem:[%s1200 + $0x48] sm:$0xff]
      %v1211 = vld [vmem:[%s1200 + $0x50] sm:$0xff]
      %v1212 = vld [vmem:[%s1200 + $0x58] sm:$0xff]
      %v1213 = vld [vmem:[%s1200 + $0x60] sm:$0xff]
      %v1214 = vld [vmem:[%s1200 + $0x68] sm:$0xff]
      %v1215 = vld [vmem:[%s1200 + $0x70] sm:$0xff]
      %v1216 = vld [vmem:[%s1200 + $0x78] sm:$0xff]
      %s1217 = scalar_lea.vmem %s4, 512
      %v1218 = vld [vmem:[%s1217] sm:$0xff]
      %v1219 = vld [vmem:[%s1217 + $0x8] sm:$0xff]
      %v1220 = vld [vmem:[%s1217 + $0x10] sm:$0xff]
      %v1221 = vld [vmem:[%s1217 + $0x18] sm:$0xff]
      %v1222 = vld [vmem:[%s1217 + $0x20] sm:$0xff]
      %v1223 = vld [vmem:[%s1217 + $0x28] sm:$0xff]
      %v1224 = vld [vmem:[%s1217 + $0x30] sm:$0xff]
      %v1225 = vld [vmem:[%s1217 + $0x38] sm:$0xff]
      %v1226 = vld [vmem:[%s1217 + $0x40] sm:$0xff]
      %v1227 = vld [vmem:[%s1217 + $0x48] sm:$0xff]
      %v1228 = vld [vmem:[%s1217 + $0x50] sm:$0xff]
      %v1229 = vld [vmem:[%s1217 + $0x58] sm:$0xff]
      %v1230 = vld [vmem:[%s1217 + $0x60] sm:$0xff]
      %v1231 = vld [vmem:[%s1217 + $0x68] sm:$0xff]
      %v1232 = vld [vmem:[%s1217 + $0x70] sm:$0xff]
      %v1233 = vld [vmem:[%s1217 + $0x78] sm:$0xff]
      %1234 = vrot.lane.b32.xlu0 %v448, 111
      %v1235 = vpop.permute.xlu0 %1234
      %1236 = vrot.lane.b32.xlu0 %v449, 111
      %v1237 = vpop.permute.xlu0 %1236
      %vm1238 = vcmask 908288
      %v1239 = vsel %vm1238, %v1235, %v1237
      %v1243 = vsel %vm477, %v1218, 0
      %v1246 = vsel %vm477, %v1219, 0
      %v1249 = vsel %vm477, %v1220, 0
      %v1252 = vsel %vm477, %v1221, 0
      %v1255 = vsel %vm477, %v1222, 0
      %v1258 = vsel %vm477, %v1223, 0
      %v1261 = vsel %vm477, %v1224, 0
      %v1264 = vsel %vm477, %v1225, 0
      %v1267 = vsel %vm477, %v1226, 0
      %v1270 = vsel %vm477, %v1227, 0
      %v1273 = vsel %vm477, %v1228, 0
      %v1276 = vsel %vm477, %v1229, 0
      %v1279 = vsel %vm477, %v1230, 0
      %v1282 = vsel %vm477, %v1231, 0
      %v1285 = vsel %vm477, %v1232, 0
      %v1288 = vsel %vm477, %v1233, 0
      %1290 = vmatprep.subr.mxu0 0.0
      %1291 = vmatpush1.msra.mxu0 0.0
      %1292 = vmatprep.subr.mxu0 0.0
      %1293 = vmatpush1.msra.mxu0 0.0
      %1294 = vmatprep.subr.mxu0 0.0
      %1295 = vmatpush1.msra.mxu0 0.0
      %1296 = vmatprep.subr.mxu0 0.0
      %1297 = vmatpush1.msra.mxu0 0.0
      %1298 = vmatprep.subr.mxu0 0.0
      %1299 = vmatpush1.msra.mxu0 0.0
      %1300 = vmatprep.subr.mxu0 0.0
      %1301 = vmatpush1.msra.mxu0 0.0
      %1302 = vmatprep.subr.mxu0 0.0
      %1303 = vmatpush1.msra.mxu0 0.0
      %1304 = vmatprep.subr.mxu0 0.0
      %1305 = vmatpush1.msra.mxu0 0.0
      %1306 = vmatprep.subr.mxu0 0.0
      %1307 = vmatpush1.msra.mxu0 0.0
      %1308 = vmatprep.subr.mxu0 0.0
      %1309 = vmatpush1.msra.mxu0 0.0
      %1310 = vmatprep.subr.mxu0 0.0
      %1311 = vmatpush1.msra.mxu0 0.0
      %1312 = vmatprep.subr.mxu0 0.0
      %1313 = vmatpush1.msra.mxu0 0.0
      %1314 = vmatprep.subr.mxu0 0.0
      %1315 = vmatpush1.msra.mxu0 0.0
      %1316 = vmatprep.subr.mxu0 0.0
      %1317 = vmatpush1.msra.mxu0 0.0
      %1318 = vmatprep.subr.mxu0 0.0
      %1319 = vmatpush1.msra.mxu0 0.0
      %1320 = vmatprep.subr.mxu0 %v1237
      %1321 = vmatpush1.msra.mxu0 %v1239
      %1322 = vmatprep.subr.mxu0 0.0
      %1323 = vmatpush2.msra.mxu0 0.0
      %1324 = vmatprep.subr.mxu0 0.0
      %1325 = vmatpush2.msra.mxu0 0.0
      %1326 = vmatprep.subr.mxu0 0.0
      %1327 = vmatpush2.msra.mxu0 0.0
      %1328 = vmatprep.subr.mxu0 0.0
      %1329 = vmatpush2.msra.mxu0 0.0
      %1330 = vmatprep.subr.mxu0 0.0
      %1331 = vmatpush2.msra.mxu0 0.0
      %1332 = vmatprep.subr.mxu0 0.0
      %1333 = vmatpush2.msra.mxu0 0.0
      %1334 = vmatprep.subr.mxu0 0.0
      %1335 = vmatpush2.msra.mxu0 0.0
      %1336 = vmatprep.subr.mxu0 0.0
      %1337 = vmatpush2.msra.mxu0 0.0
      %1338 = vmatprep.subr.mxu0 0.0
      %1339 = vmatpush2.msra.mxu0 0.0
      %1340 = vmatprep.subr.mxu0 0.0
      %1341 = vmatpush2.msra.mxu0 0.0
      %1342 = vmatprep.subr.mxu0 0.0
      %1343 = vmatpush2.msra.mxu0 0.0
      %1344 = vmatprep.subr.mxu0 0.0
      %1345 = vmatpush2.msra.mxu0 0.0
      %1346 = vmatprep.subr.mxu0 0.0
      %1347 = vmatpush2.msra.mxu0 0.0
      %1348 = vmatprep.subr.mxu0 0.0
      %1349 = vmatpush2.msra.mxu0 0.0
      %1350 = vmatprep.subr.mxu0 0.0
      %1351 = vmatpush2.msra.mxu0 0.0
      %1352 = vmatprep.subr.mxu0 0.0
      %1353 = vmatpush2.msra.mxu0 0.0
      %1354 = vmatprep.mubr.f32.mxu0 0.0
      %1355 = vmatmul.mubr.f32.gmra.mxu0 %v1243
      %v1356 = vpop.f32.mrf.mxu0
      %v1357 = vadd.f32 0.0, %v1356
      %v1358 = vpop.f32.mrf.mxu0
      %v1359 = vadd.f32 0.0, %v1358
      %1360 = vmatprep.mubr.f32.mxu0 0.0
      %1361 = vmatmul.mubr.f32.gmra.mxu0 %v1246
      %v1362 = vpop.f32.mrf.mxu0
      %v1363 = vadd.f32 0.0, %v1362
      %v1364 = vpop.f32.mrf.mxu0
      %v1365 = vadd.f32 0.0, %v1364
      %1366 = vmatprep.mubr.f32.mxu0 0.0
      %1367 = vmatmul.mubr.f32.gmra.mxu0 %v1249
      %v1368 = vpop.f32.mrf.mxu0
      %v1369 = vadd.f32 0.0, %v1368
      %v1370 = vpop.f32.mrf.mxu0
      %v1371 = vadd.f32 0.0, %v1370
      %1372 = vmatprep.mubr.f32.mxu0 0.0
      %1373 = vmatmul.mubr.f32.gmra.mxu0 %v1252
      %v1374 = vpop.f32.mrf.mxu0
      %v1375 = vadd.f32 0.0, %v1374
      %v1376 = vpop.f32.mrf.mxu0
      %v1377 = vadd.f32 0.0, %v1376
      %1378 = vmatprep.mubr.f32.mxu0 0.0
      %1379 = vmatmul.mubr.f32.gmra.mxu0 %v1255
      %v1380 = vpop.f32.mrf.mxu0
      %v1381 = vadd.f32 0.0, %v1380
      %v1382 = vpop.f32.mrf.mxu0
      %v1383 = vadd.f32 0.0, %v1382
      %1384 = vmatprep.mubr.f32.mxu0 0.0
      %1385 = vmatmul.mubr.f32.gmra.mxu0 %v1258
      %v1386 = vpop.f32.mrf.mxu0
      %v1387 = vadd.f32 0.0, %v1386
      %v1388 = vpop.f32.mrf.mxu0
      %v1389 = vadd.f32 0.0, %v1388
      %1390 = vmatprep.mubr.f32.mxu0 0.0
      %1391 = vmatmul.mubr.f32.gmra.mxu0 %v1261
      %v1392 = vpop.f32.mrf.mxu0
      %v1393 = vadd.f32 0.0, %v1392
      %v1394 = vpop.f32.mrf.mxu0
      %v1395 = vadd.f32 0.0, %v1394
      %1396 = vmatprep.mubr.f32.mxu0 0.0
      %1397 = vmatmul.mubr.f32.gmra.mxu0 %v1264
      %v1398 = vpop.f32.mrf.mxu0
      %v1399 = vadd.f32 0.0, %v1398
      %v1400 = vpop.f32.mrf.mxu0
      %v1401 = vadd.f32 0.0, %v1400
      %1402 = vmatprep.mubr.f32.mxu0 0.0
      %1403 = vmatmul.mubr.f32.gmra.mxu0 %v1267
      %v1404 = vpop.f32.mrf.mxu0
      %v1405 = vadd.f32 0.0, %v1404
      %v1406 = vpop.f32.mrf.mxu0
      %v1407 = vadd.f32 0.0, %v1406
      %1408 = vmatprep.mubr.f32.mxu0 0.0
      %1409 = vmatmul.mubr.f32.gmra.mxu0 %v1270
      %v1410 = vpop.f32.mrf.mxu0
      %v1411 = vadd.f32 0.0, %v1410
      %v1412 = vpop.f32.mrf.mxu0
      %v1413 = vadd.f32 0.0, %v1412
      %1414 = vmatprep.mubr.f32.mxu0 0.0
      %1415 = vmatmul.mubr.f32.gmra.mxu0 %v1273
      %v1416 = vpop.f32.mrf.mxu0
      %v1417 = vadd.f32 0.0, %v1416
      %v1418 = vpop.f32.mrf.mxu0
      %v1419 = vadd.f32 0.0, %v1418
      %1420 = vmatprep.mubr.f32.mxu0 0.0
      %1421 = vmatmul.mubr.f32.gmra.mxu0 %v1276
      %v1422 = vpop.f32.mrf.mxu0
      %v1423 = vadd.f32 0.0, %v1422
      %v1424 = vpop.f32.mrf.mxu0
      %v1425 = vadd.f32 0.0, %v1424
      %1426 = vmatprep.mubr.f32.mxu0 0.0
      %1427 = vmatmul.mubr.f32.gmra.mxu0 %v1279
      %v1428 = vpop.f32.mrf.mxu0
      %v1429 = vadd.f32 0.0, %v1428
      %v1430 = vpop.f32.mrf.mxu0
      %v1431 = vadd.f32 0.0, %v1430
      %1432 = vmatprep.mubr.f32.mxu0 0.0
      %1433 = vmatmul.mubr.f32.gmra.mxu0 %v1282
      %v1434 = vpop.f32.mrf.mxu0
      %v1435 = vadd.f32 0.0, %v1434
      %v1436 = vpop.f32.mrf.mxu0
      %v1437 = vadd.f32 0.0, %v1436
      %1438 = vmatprep.mubr.f32.mxu0 0.0
      %1439 = vmatmul.mubr.f32.gmra.mxu0 %v1285
      %v1440 = vpop.f32.mrf.mxu0
      %v1441 = vadd.f32 0.0, %v1440
      %v1442 = vpop.f32.mrf.mxu0
      %v1443 = vadd.f32 0.0, %v1442
      %1444 = vmatprep.mubr.f32.mxu0 0.0
      %1445 = vmatmul.mubr.f32.gmra.mxu0 %v1288
      %v1446 = vpop.f32.mrf.mxu0
      %v1447 = vadd.f32 0.0, %v1446
      %v1448 = vpop.f32.mrf.mxu0
      %v1449 = vadd.f32 0.0, %v1448
      %1450 = vdwg.mxu0
      %1451 = vrot.lane.b32.xlu0 %v448, 127
      %v1452 = vpop.permute.xlu0 %1451
      %1453 = vrot.lane.b32.xlu0 %v449, 127
      %v1454 = vpop.permute.xlu0 %1453
      %vm1455 = vcmask 1039360
      %v1456 = vsel %vm1455, %v1452, %v1454
      %v1460 = vsel %vm477, %v1201, 0
      %v1463 = vsel %vm477, %v1202, 0
      %v1466 = vsel %vm477, %v1203, 0
      %v1469 = vsel %vm477, %v1204, 0
      %v1472 = vsel %vm477, %v1205, 0
      %v1475 = vsel %vm477, %v1206, 0
      %v1478 = vsel %vm477, %v1207, 0
      %v1481 = vsel %vm477, %v1208, 0
      %v1484 = vsel %vm477, %v1209, 0
      %v1487 = vsel %vm477, %v1210, 0
      %v1490 = vsel %vm477, %v1211, 0
      %v1493 = vsel %vm477, %v1212, 0
      %v1496 = vsel %vm477, %v1213, 0
      %v1499 = vsel %vm477, %v1214, 0
      %v1502 = vsel %vm477, %v1215, 0
      %v1505 = vsel %vm477, %v1216, 0
      %1507 = vmatprep.subr.mxu0 0.0
      %1508 = vmatpush1.msra.mxu0 0.0
      %1509 = vmatprep.subr.mxu0 0.0
      %1510 = vmatpush1.msra.mxu0 0.0
      %1511 = vmatprep.subr.mxu0 0.0
      %1512 = vmatpush1.msra.mxu0 0.0
      %1513 = vmatprep.subr.mxu0 0.0
      %1514 = vmatpush1.msra.mxu0 0.0
      %1515 = vmatprep.subr.mxu0 0.0
      %1516 = vmatpush1.msra.mxu0 0.0
      %1517 = vmatprep.subr.mxu0 0.0
      %1518 = vmatpush1.msra.mxu0 0.0
      %1519 = vmatprep.subr.mxu0 0.0
      %1520 = vmatpush1.msra.mxu0 0.0
      %1521 = vmatprep.subr.mxu0 0.0
      %1522 = vmatpush1.msra.mxu0 0.0
      %1523 = vmatprep.subr.mxu0 0.0
      %1524 = vmatpush1.msra.mxu0 0.0
      %1525 = vmatprep.subr.mxu0 0.0
      %1526 = vmatpush1.msra.mxu0 0.0
      %1527 = vmatprep.subr.mxu0 0.0
      %1528 = vmatpush1.msra.mxu0 0.0
      %1529 = vmatprep.subr.mxu0 0.0
      %1530 = vmatpush1.msra.mxu0 0.0
      %1531 = vmatprep.subr.mxu0 0.0
      %1532 = vmatpush1.msra.mxu0 0.0
      %1533 = vmatprep.subr.mxu0 0.0
      %1534 = vmatpush1.msra.mxu0 0.0
      %1535 = vmatprep.subr.mxu0 0.0
      %1536 = vmatpush1.msra.mxu0 0.0
      %1537 = vmatprep.subr.mxu0 %v1454
      %1538 = vmatpush1.msra.mxu0 %v1456
      %1539 = vmatprep.subr.mxu0 0.0
      %1540 = vmatpush2.msra.mxu0 0.0
      %1541 = vmatprep.subr.mxu0 0.0
      %1542 = vmatpush2.msra.mxu0 0.0
      %1543 = vmatprep.subr.mxu0 0.0
      %1544 = vmatpush2.msra.mxu0 0.0
      %1545 = vmatprep.subr.mxu0 0.0
      %1546 = vmatpush2.msra.mxu0 0.0
      %1547 = vmatprep.subr.mxu0 0.0
      %1548 = vmatpush2.msra.mxu0 0.0
      %1549 = vmatprep.subr.mxu0 0.0
      %1550 = vmatpush2.msra.mxu0 0.0
      %1551 = vmatprep.subr.mxu0 0.0
      %1552 = vmatpush2.msra.mxu0 0.0
      %1553 = vmatprep.subr.mxu0 0.0
      %1554 = vmatpush2.msra.mxu0 0.0
      %1555 = vmatprep.subr.mxu0 0.0
      %1556 = vmatpush2.msra.mxu0 0.0
      %1557 = vmatprep.subr.mxu0 0.0
      %1558 = vmatpush2.msra.mxu0 0.0
      %1559 = vmatprep.subr.mxu0 0.0
      %1560 = vmatpush2.msra.mxu0 0.0
      %1561 = vmatprep.subr.mxu0 0.0
      %1562 = vmatpush2.msra.mxu0 0.0
      %1563 = vmatprep.subr.mxu0 0.0
      %1564 = vmatpush2.msra.mxu0 0.0
      %1565 = vmatprep.subr.mxu0 0.0
      %1566 = vmatpush2.msra.mxu0 0.0
      %1567 = vmatprep.subr.mxu0 0.0
      %1568 = vmatpush2.msra.mxu0 0.0
      %1569 = vmatprep.subr.mxu0 0.0
      %1570 = vmatpush2.msra.mxu0 0.0
      %1571 = vmatprep.mubr.f32.mxu0 0.0
      %1572 = vmatmul.mubr.f32.gmra.mxu0 %v1460
      %v1573 = vpop.f32.mrf.mxu0
      %v1574 = vadd.f32 %v1357, %v1573
      %v1575 = vpop.f32.mrf.mxu0
      %v1576 = vadd.f32 %v1359, %v1575
      %1577 = vmatprep.mubr.f32.mxu0 0.0
      %1578 = vmatmul.mubr.f32.gmra.mxu0 %v1463
      %v1579 = vpop.f32.mrf.mxu0
      %v1580 = vadd.f32 %v1363, %v1579
      %v1581 = vpop.f32.mrf.mxu0
      %v1582 = vadd.f32 %v1365, %v1581
      %1583 = vmatprep.mubr.f32.mxu0 0.0
      %1584 = vmatmul.mubr.f32.gmra.mxu0 %v1466
      %v1585 = vpop.f32.mrf.mxu0
      %v1586 = vadd.f32 %v1369, %v1585
      %v1587 = vpop.f32.mrf.mxu0
      %v1588 = vadd.f32 %v1371, %v1587
      %1589 = vmatprep.mubr.f32.mxu0 0.0
      %1590 = vmatmul.mubr.f32.gmra.mxu0 %v1469
      %v1591 = vpop.f32.mrf.mxu0
      %v1592 = vadd.f32 %v1375, %v1591
      %v1593 = vpop.f32.mrf.mxu0
      %v1594 = vadd.f32 %v1377, %v1593
      %1595 = vmatprep.mubr.f32.mxu0 0.0
      %1596 = vmatmul.mubr.f32.gmra.mxu0 %v1472
      %v1597 = vpop.f32.mrf.mxu0
      %v1598 = vadd.f32 %v1381, %v1597
      %v1599 = vpop.f32.mrf.mxu0
      %v1600 = vadd.f32 %v1383, %v1599
      %1601 = vmatprep.mubr.f32.mxu0 0.0
      %1602 = vmatmul.mubr.f32.gmra.mxu0 %v1475
      %v1603 = vpop.f32.mrf.mxu0
      %v1604 = vadd.f32 %v1387, %v1603
      %v1605 = vpop.f32.mrf.mxu0
      %v1606 = vadd.f32 %v1389, %v1605
      %1607 = vmatprep.mubr.f32.mxu0 0.0
      %1608 = vmatmul.mubr.f32.gmra.mxu0 %v1478
      %v1609 = vpop.f32.mrf.mxu0
      %v1610 = vadd.f32 %v1393, %v1609
      %v1611 = vpop.f32.mrf.mxu0
      %v1612 = vadd.f32 %v1395, %v1611
      %1613 = vmatprep.mubr.f32.mxu0 0.0
      %1614 = vmatmul.mubr.f32.gmra.mxu0 %v1481
      %v1615 = vpop.f32.mrf.mxu0
      %v1616 = vadd.f32 %v1399, %v1615
      %v1617 = vpop.f32.mrf.mxu0
      %v1618 = vadd.f32 %v1401, %v1617
      %1619 = vmatprep.mubr.f32.mxu0 0.0
      %1620 = vmatmul.mubr.f32.gmra.mxu0 %v1484
      %v1621 = vpop.f32.mrf.mxu0
      %v1622 = vadd.f32 %v1405, %v1621
      %v1623 = vpop.f32.mrf.mxu0
      %v1624 = vadd.f32 %v1407, %v1623
      %1625 = vmatprep.mubr.f32.mxu0 0.0
      %1626 = vmatmul.mubr.f32.gmra.mxu0 %v1487
      %v1627 = vpop.f32.mrf.mxu0
      %v1628 = vadd.f32 %v1411, %v1627
      %v1629 = vpop.f32.mrf.mxu0
      %v1630 = vadd.f32 %v1413, %v1629
      %1631 = vmatprep.mubr.f32.mxu0 0.0
      %1632 = vmatmul.mubr.f32.gmra.mxu0 %v1490
      %v1633 = vpop.f32.mrf.mxu0
      %v1634 = vadd.f32 %v1417, %v1633
      %v1635 = vpop.f32.mrf.mxu0
      %v1636 = vadd.f32 %v1419, %v1635
      %1637 = vmatprep.mubr.f32.mxu0 0.0
      %1638 = vmatmul.mubr.f32.gmra.mxu0 %v1493
      %v1639 = vpop.f32.mrf.mxu0
      %v1640 = vadd.f32 %v1423, %v1639
      %v1641 = vpop.f32.mrf.mxu0
      %v1642 = vadd.f32 %v1425, %v1641
      %1643 = vmatprep.mubr.f32.mxu0 0.0
      %1644 = vmatmul.mubr.f32.gmra.mxu0 %v1496
      %v1645 = vpop.f32.mrf.mxu0
      %v1646 = vadd.f32 %v1429, %v1645
      %v1647 = vpop.f32.mrf.mxu0
      %v1648 = vadd.f32 %v1431, %v1647
      %1649 = vmatprep.mubr.f32.mxu0 0.0
      %1650 = vmatmul.mubr.f32.gmra.mxu0 %v1499
      %v1651 = vpop.f32.mrf.mxu0
      %v1652 = vadd.f32 %v1435, %v1651
      %v1653 = vpop.f32.mrf.mxu0
      %v1654 = vadd.f32 %v1437, %v1653
      %1655 = vmatprep.mubr.f32.mxu0 0.0
      %1656 = vmatmul.mubr.f32.gmra.mxu0 %v1502
      %v1657 = vpop.f32.mrf.mxu0
      %v1658 = vadd.f32 %v1441, %v1657
      %v1659 = vpop.f32.mrf.mxu0
      %v1660 = vadd.f32 %v1443, %v1659
      %1661 = vmatprep.mubr.f32.mxu0 0.0
      %1662 = vmatmul.mubr.f32.gmra.mxu0 %v1505
      %v1663 = vpop.f32.mrf.mxu0
      %v1664 = vadd.f32 %v1447, %v1663
      %v1665 = vpop.f32.mrf.mxu0
      %v1666 = vadd.f32 %v1449, %v1665
      %1667 = vdwg.mxu0
      %s1668 = scalar_lea.vmem %s4, 896
      %v1669 = vld [vmem:[%s1668] sm:$0xff]
      %v1670 = vld [vmem:[%s1668 + $0x8] sm:$0xff]
      %v1671 = vld [vmem:[%s1668 + $0x10] sm:$0xff]
      %v1672 = vld [vmem:[%s1668 + $0x18] sm:$0xff]
      %v1673 = vld [vmem:[%s1668 + $0x20] sm:$0xff]
      %v1674 = vld [vmem:[%s1668 + $0x28] sm:$0xff]
      %v1675 = vld [vmem:[%s1668 + $0x30] sm:$0xff]
      %v1676 = vld [vmem:[%s1668 + $0x38] sm:$0xff]
      %v1677 = vld [vmem:[%s1668 + $0x40] sm:$0xff]
      %v1678 = vld [vmem:[%s1668 + $0x48] sm:$0xff]
      %v1679 = vld [vmem:[%s1668 + $0x50] sm:$0xff]
      %v1680 = vld [vmem:[%s1668 + $0x58] sm:$0xff]
      %v1681 = vld [vmem:[%s1668 + $0x60] sm:$0xff]
      %v1682 = vld [vmem:[%s1668 + $0x68] sm:$0xff]
      %v1683 = vld [vmem:[%s1668 + $0x70] sm:$0xff]
      %v1684 = vld [vmem:[%s1668 + $0x78] sm:$0xff]
      %1685 = vrot.lane.b32.xlu0 %v448, 95
      %v1686 = vpop.permute.xlu0 %1685
      %1687 = vrot.lane.b32.xlu0 %v449, 95
      %v1688 = vpop.permute.xlu0 %1687
      %vm1689 = vcmask 777216
      %v1690 = vsel %vm1689, %v1686, %v1688
      %v1694 = vsel %vm477, %v1669, 0
      %v1697 = vsel %vm477, %v1670, 0
      %v1700 = vsel %vm477, %v1671, 0
      %v1703 = vsel %vm477, %v1672, 0
      %v1706 = vsel %vm477, %v1673, 0
      %v1709 = vsel %vm477, %v1674, 0
      %v1712 = vsel %vm477, %v1675, 0
      %v1715 = vsel %vm477, %v1676, 0
      %v1718 = vsel %vm477, %v1677, 0
      %v1721 = vsel %vm477, %v1678, 0
      %v1724 = vsel %vm477, %v1679, 0
      %v1727 = vsel %vm477, %v1680, 0
      %v1730 = vsel %vm477, %v1681, 0
      %v1733 = vsel %vm477, %v1682, 0
      %v1736 = vsel %vm477, %v1683, 0
      %v1739 = vsel %vm477, %v1684, 0
      %1741 = vmatprep.subr.mxu0 0.0
      %1742 = vmatpush1.msra.mxu0 0.0
      %1743 = vmatprep.subr.mxu0 0.0
      %1744 = vmatpush1.msra.mxu0 0.0
      %1745 = vmatprep.subr.mxu0 0.0
      %1746 = vmatpush1.msra.mxu0 0.0
      %1747 = vmatprep.subr.mxu0 0.0
      %1748 = vmatpush1.msra.mxu0 0.0
      %1749 = vmatprep.subr.mxu0 0.0
      %1750 = vmatpush1.msra.mxu0 0.0
      %1751 = vmatprep.subr.mxu0 0.0
      %1752 = vmatpush1.msra.mxu0 0.0
      %1753 = vmatprep.subr.mxu0 0.0
      %1754 = vmatpush1.msra.mxu0 0.0
      %1755 = vmatprep.subr.mxu0 0.0
      %1756 = vmatpush1.msra.mxu0 0.0
      %1757 = vmatprep.subr.mxu0 0.0
      %1758 = vmatpush1.msra.mxu0 0.0
      %1759 = vmatprep.subr.mxu0 0.0
      %1760 = vmatpush1.msra.mxu0 0.0
      %1761 = vmatprep.subr.mxu0 0.0
      %1762 = vmatpush1.msra.mxu0 0.0
      %1763 = vmatprep.subr.mxu0 0.0
      %1764 = vmatpush1.msra.mxu0 0.0
      %1765 = vmatprep.subr.mxu0 0.0
      %1766 = vmatpush1.msra.mxu0 0.0
      %1767 = vmatprep.subr.mxu0 0.0
      %1768 = vmatpush1.msra.mxu0 0.0
      %1769 = vmatprep.subr.mxu0 0.0
      %1770 = vmatpush1.msra.mxu0 0.0
      %1771 = vmatprep.subr.mxu0 %v1688
      %1772 = vmatpush1.msra.mxu0 %v1690
      %1773 = vmatprep.subr.mxu0 0.0
      %1774 = vmatpush2.msra.mxu0 0.0
      %1775 = vmatprep.subr.mxu0 0.0
      %1776 = vmatpush2.msra.mxu0 0.0
      %1777 = vmatprep.subr.mxu0 0.0
      %1778 = vmatpush2.msra.mxu0 0.0
      %1779 = vmatprep.subr.mxu0 0.0
      %1780 = vmatpush2.msra.mxu0 0.0
      %1781 = vmatprep.subr.mxu0 0.0
      %1782 = vmatpush2.msra.mxu0 0.0
      %1783 = vmatprep.subr.mxu0 0.0
      %1784 = vmatpush2.msra.mxu0 0.0
      %1785 = vmatprep.subr.mxu0 0.0
      %1786 = vmatpush2.msra.mxu0 0.0
      %1787 = vmatprep.subr.mxu0 0.0
      %1788 = vmatpush2.msra.mxu0 0.0
      %1789 = vmatprep.subr.mxu0 0.0
      %1790 = vmatpush2.msra.mxu0 0.0
      %1791 = vmatprep.subr.mxu0 0.0
      %1792 = vmatpush2.msra.mxu0 0.0
      %1793 = vmatprep.subr.mxu0 0.0
      %1794 = vmatpush2.msra.mxu0 0.0
      %1795 = vmatprep.subr.mxu0 0.0
      %1796 = vmatpush2.msra.mxu0 0.0
      %1797 = vmatprep.subr.mxu0 0.0
      %1798 = vmatpush2.msra.mxu0 0.0
      %1799 = vmatprep.subr.mxu0 0.0
      %1800 = vmatpush2.msra.mxu0 0.0
      %1801 = vmatprep.subr.mxu0 0.0
      %1802 = vmatpush2.msra.mxu0 0.0
      %1803 = vmatprep.subr.mxu0 0.0
      %1804 = vmatpush2.msra.mxu0 0.0
      %1805 = vmatprep.mubr.f32.mxu0 0.0
      %1806 = vmatmul.mubr.f32.gmra.mxu0 %v1694
      %v1807 = vpop.f32.mrf.mxu0
      %v1808 = vadd.f32 0.0, %v1807
      %v1809 = vpop.f32.mrf.mxu0
      %v1810 = vadd.f32 0.0, %v1809
      %1811 = vmatprep.mubr.f32.mxu0 0.0
      %1812 = vmatmul.mubr.f32.gmra.mxu0 %v1697
      %v1813 = vpop.f32.mrf.mxu0
      %v1814 = vadd.f32 0.0, %v1813
      %v1815 = vpop.f32.mrf.mxu0
      %v1816 = vadd.f32 0.0, %v1815
      %1817 = vmatprep.mubr.f32.mxu0 0.0
      %1818 = vmatmul.mubr.f32.gmra.mxu0 %v1700
      %v1819 = vpop.f32.mrf.mxu0
      %v1820 = vadd.f32 0.0, %v1819
      %v1821 = vpop.f32.mrf.mxu0
      %v1822 = vadd.f32 0.0, %v1821
      %1823 = vmatprep.mubr.f32.mxu0 0.0
      %1824 = vmatmul.mubr.f32.gmra.mxu0 %v1703
      %v1825 = vpop.f32.mrf.mxu0
      %v1826 = vadd.f32 0.0, %v1825
      %v1827 = vpop.f32.mrf.mxu0
      %v1828 = vadd.f32 0.0, %v1827
      %1829 = vmatprep.mubr.f32.mxu0 0.0
      %1830 = vmatmul.mubr.f32.gmra.mxu0 %v1706
      %v1831 = vpop.f32.mrf.mxu0
      %v1832 = vadd.f32 0.0, %v1831
      %v1833 = vpop.f32.mrf.mxu0
      %v1834 = vadd.f32 0.0, %v1833
      %1835 = vmatprep.mubr.f32.mxu0 0.0
      %1836 = vmatmul.mubr.f32.gmra.mxu0 %v1709
      %v1837 = vpop.f32.mrf.mxu0
      %v1838 = vadd.f32 0.0, %v1837
      %v1839 = vpop.f32.mrf.mxu0
      %v1840 = vadd.f32 0.0, %v1839
      %1841 = vmatprep.mubr.f32.mxu0 0.0
      %1842 = vmatmul.mubr.f32.gmra.mxu0 %v1712
      %v1843 = vpop.f32.mrf.mxu0
      %v1844 = vadd.f32 0.0, %v1843
      %v1845 = vpop.f32.mrf.mxu0
      %v1846 = vadd.f32 0.0, %v1845
      %1847 = vmatprep.mubr.f32.mxu0 0.0
      %1848 = vmatmul.mubr.f32.gmra.mxu0 %v1715
      %v1849 = vpop.f32.mrf.mxu0
      %v1850 = vadd.f32 0.0, %v1849
      %v1851 = vpop.f32.mrf.mxu0
      %v1852 = vadd.f32 0.0, %v1851
      %1853 = vmatprep.mubr.f32.mxu0 0.0
      %1854 = vmatmul.mubr.f32.gmra.mxu0 %v1718
      %v1855 = vpop.f32.mrf.mxu0
      %v1856 = vadd.f32 0.0, %v1855
      %v1857 = vpop.f32.mrf.mxu0
      %v1858 = vadd.f32 0.0, %v1857
      %1859 = vmatprep.mubr.f32.mxu0 0.0
      %1860 = vmatmul.mubr.f32.gmra.mxu0 %v1721
      %v1861 = vpop.f32.mrf.mxu0
      %v1862 = vadd.f32 0.0, %v1861
      %v1863 = vpop.f32.mrf.mxu0
      %v1864 = vadd.f32 0.0, %v1863
      %1865 = vmatprep.mubr.f32.mxu0 0.0
      %1866 = vmatmul.mubr.f32.gmra.mxu0 %v1724
      %v1867 = vpop.f32.mrf.mxu0
      %v1868 = vadd.f32 0.0, %v1867
      %v1869 = vpop.f32.mrf.mxu0
      %v1870 = vadd.f32 0.0, %v1869
      %1871 = vmatprep.mubr.f32.mxu0 0.0
      %1872 = vmatmul.mubr.f32.gmra.mxu0 %v1727
      %v1873 = vpop.f32.mrf.mxu0
      %v1874 = vadd.f32 0.0, %v1873
      %v1875 = vpop.f32.mrf.mxu0
      %v1876 = vadd.f32 0.0, %v1875
      %1877 = vmatprep.mubr.f32.mxu0 0.0
      %1878 = vmatmul.mubr.f32.gmra.mxu0 %v1730
      %v1879 = vpop.f32.mrf.mxu0
      %v1880 = vadd.f32 0.0, %v1879
      %v1881 = vpop.f32.mrf.mxu0
      %v1882 = vadd.f32 0.0, %v1881
      %1883 = vmatprep.mubr.f32.mxu0 0.0
      %1884 = vmatmul.mubr.f32.gmra.mxu0 %v1733
      %v1885 = vpop.f32.mrf.mxu0
      %v1886 = vadd.f32 0.0, %v1885
      %v1887 = vpop.f32.mrf.mxu0
      %v1888 = vadd.f32 0.0, %v1887
      %1889 = vmatprep.mubr.f32.mxu0 0.0
      %1890 = vmatmul.mubr.f32.gmra.mxu0 %v1736
      %v1891 = vpop.f32.mrf.mxu0
      %v1892 = vadd.f32 0.0, %v1891
      %v1893 = vpop.f32.mrf.mxu0
      %v1894 = vadd.f32 0.0, %v1893
      %1895 = vmatprep.mubr.f32.mxu0 0.0
      %1896 = vmatmul.mubr.f32.gmra.mxu0 %v1739
      %v1897 = vpop.f32.mrf.mxu0
      %v1898 = vadd.f32 0.0, %v1897
      %v1899 = vpop.f32.mrf.mxu0
      %v1900 = vadd.f32 0.0, %v1899
      %1901 = vdwg.mxu0
      %v1902 = vadd.f32 %v1574, %v1808
      %v1903 = vadd.f32 %v1576, %v1810
      %v1904 = vadd.f32 %v1580, %v1814
      %v1905 = vadd.f32 %v1582, %v1816
      %v1906 = vadd.f32 %v1586, %v1820
      %v1907 = vadd.f32 %v1588, %v1822
      %v1908 = vadd.f32 %v1592, %v1826
      %v1909 = vadd.f32 %v1594, %v1828
      %v1910 = vadd.f32 %v1598, %v1832
      %v1911 = vadd.f32 %v1600, %v1834
      %v1912 = vadd.f32 %v1604, %v1838
      %v1913 = vadd.f32 %v1606, %v1840
      %v1914 = vadd.f32 %v1610, %v1844
      %v1915 = vadd.f32 %v1612, %v1846
      %v1916 = vadd.f32 %v1616, %v1850
      %v1917 = vadd.f32 %v1618, %v1852
      %v1918 = vadd.f32 %v1622, %v1856
      %v1919 = vadd.f32 %v1624, %v1858
      %v1920 = vadd.f32 %v1628, %v1862
      %v1921 = vadd.f32 %v1630, %v1864
      %v1922 = vadd.f32 %v1634, %v1868
      %v1923 = vadd.f32 %v1636, %v1870
      %v1924 = vadd.f32 %v1640, %v1874
      %v1925 = vadd.f32 %v1642, %v1876
      %v1926 = vadd.f32 %v1646, %v1880
      %v1927 = vadd.f32 %v1648, %v1882
      %v1928 = vadd.f32 %v1652, %v1886
      %v1929 = vadd.f32 %v1654, %v1888
      %v1930 = vadd.f32 %v1658, %v1892
      %v1931 = vadd.f32 %v1660, %v1894
      %v1932 = vadd.f32 %v1664, %v1898
      %v1933 = vadd.f32 %v1666, %v1900
      %v1934 = vadd.f32 %v1168, %v1902
      %v1935 = vadd.f32 %v1169, %v1903
      %v1936 = vadd.f32 %v1170, %v1904
      %v1937 = vadd.f32 %v1171, %v1905
      %v1938 = vadd.f32 %v1172, %v1906
      %v1939 = vadd.f32 %v1173, %v1907
      %v1940 = vadd.f32 %v1174, %v1908
      %v1941 = vadd.f32 %v1175, %v1909
      %v1942 = vadd.f32 %v1176, %v1910
      %v1943 = vadd.f32 %v1177, %v1911
      %v1944 = vadd.f32 %v1178, %v1912
      %v1945 = vadd.f32 %v1179, %v1913
      %v1946 = vadd.f32 %v1180, %v1914
      %v1947 = vadd.f32 %v1181, %v1915
      %v1948 = vadd.f32 %v1182, %v1916
      %v1949 = vadd.f32 %v1183, %v1917
      %v1950 = vadd.f32 %v1184, %v1918
      %v1951 = vadd.f32 %v1185, %v1919
      %v1952 = vadd.f32 %v1186, %v1920
      %v1953 = vadd.f32 %v1187, %v1921
      %v1954 = vadd.f32 %v1188, %v1922
      %v1955 = vadd.f32 %v1189, %v1923
      %v1956 = vadd.f32 %v1190, %v1924
      %v1957 = vadd.f32 %v1191, %v1925
      %v1958 = vadd.f32 %v1192, %v1926
      %v1959 = vadd.f32 %v1193, %v1927
      %v1960 = vadd.f32 %v1194, %v1928
      %v1961 = vadd.f32 %v1195, %v1929
      %v1962 = vadd.f32 %v1196, %v1930
      %v1963 = vadd.f32 %v1197, %v1931
      %v1964 = vadd.f32 %v1198, %v1932
      %v1965 = vadd.f32 %v1199, %v1933
      %s1966 = scalar_lea.vmem %s4, 256
      %v1967 = vld [vmem:[%s1966] sm:$0xff]
      %v1968 = vld [vmem:[%s1966 + $0x8] sm:$0xff]
      %v1969 = vld [vmem:[%s1966 + $0x10] sm:$0xff]
      %v1970 = vld [vmem:[%s1966 + $0x18] sm:$0xff]
      %v1971 = vld [vmem:[%s1966 + $0x20] sm:$0xff]
      %v1972 = vld [vmem:[%s1966 + $0x28] sm:$0xff]
      %v1973 = vld [vmem:[%s1966 + $0x30] sm:$0xff]
      %v1974 = vld [vmem:[%s1966 + $0x38] sm:$0xff]
      %v1975 = vld [vmem:[%s1966 + $0x40] sm:$0xff]
      %v1976 = vld [vmem:[%s1966 + $0x48] sm:$0xff]
      %v1977 = vld [vmem:[%s1966 + $0x50] sm:$0xff]
      %v1978 = vld [vmem:[%s1966 + $0x58] sm:$0xff]
      %v1979 = vld [vmem:[%s1966 + $0x60] sm:$0xff]
      %v1980 = vld [vmem:[%s1966 + $0x68] sm:$0xff]
      %v1981 = vld [vmem:[%s1966 + $0x70] sm:$0xff]
      %v1982 = vld [vmem:[%s1966 + $0x78] sm:$0xff]
      %s1983 = scalar_lea.vmem %s4, 640
      %v1984 = vld [vmem:[%s1983] sm:$0xff]
      %v1985 = vld [vmem:[%s1983 + $0x8] sm:$0xff]
      %v1986 = vld [vmem:[%s1983 + $0x10] sm:$0xff]
      %v1987 = vld [vmem:[%s1983 + $0x18] sm:$0xff]
      %v1988 = vld [vmem:[%s1983 + $0x20] sm:$0xff]
      %v1989 = vld [vmem:[%s1983 + $0x28] sm:$0xff]
      %v1990 = vld [vmem:[%s1983 + $0x30] sm:$0xff]
      %v1991 = vld [vmem:[%s1983 + $0x38] sm:$0xff]
      %v1992 = vld [vmem:[%s1983 + $0x40] sm:$0xff]
      %v1993 = vld [vmem:[%s1983 + $0x48] sm:$0xff]
      %v1994 = vld [vmem:[%s1983 + $0x50] sm:$0xff]
      %v1995 = vld [vmem:[%s1983 + $0x58] sm:$0xff]
      %v1996 = vld [vmem:[%s1983 + $0x60] sm:$0xff]
      %v1997 = vld [vmem:[%s1983 + $0x68] sm:$0xff]
      %v1998 = vld [vmem:[%s1983 + $0x70] sm:$0xff]
      %v1999 = vld [vmem:[%s1983 + $0x78] sm:$0xff]
      %2000 = vrot.lane.b32.xlu0 %v448, 110
      %v2001 = vpop.permute.xlu0 %2000
      %2002 = vrot.lane.b32.xlu0 %v449, 110
      %v2003 = vpop.permute.xlu0 %2002
      %vm2004 = vcmask 900096
      %v2005 = vsel %vm2004, %v2001, %v2003
      %v2009 = vsel %vm477, %v1984, 0
      %v2012 = vsel %vm477, %v1985, 0
      %v2015 = vsel %vm477, %v1986, 0
      %v2018 = vsel %vm477, %v1987, 0
      %v2021 = vsel %vm477, %v1988, 0
      %v2024 = vsel %vm477, %v1989, 0
      %v2027 = vsel %vm477, %v1990, 0
      %v2030 = vsel %vm477, %v1991, 0
      %v2033 = vsel %vm477, %v1992, 0
      %v2036 = vsel %vm477, %v1993, 0
      %v2039 = vsel %vm477, %v1994, 0
      %v2042 = vsel %vm477, %v1995, 0
      %v2045 = vsel %vm477, %v1996, 0
      %v2048 = vsel %vm477, %v1997, 0
      %v2051 = vsel %vm477, %v1998, 0
      %v2054 = vsel %vm477, %v1999, 0
      %2056 = vmatprep.subr.mxu0 0.0
      %2057 = vmatpush1.msra.mxu0 0.0
      %2058 = vmatprep.subr.mxu0 0.0
      %2059 = vmatpush1.msra.mxu0 0.0
      %2060 = vmatprep.subr.mxu0 0.0
      %2061 = vmatpush1.msra.mxu0 0.0
      %2062 = vmatprep.subr.mxu0 0.0
      %2063 = vmatpush1.msra.mxu0 0.0
      %2064 = vmatprep.subr.mxu0 0.0
      %2065 = vmatpush1.msra.mxu0 0.0
      %2066 = vmatprep.subr.mxu0 0.0
      %2067 = vmatpush1.msra.mxu0 0.0
      %2068 = vmatprep.subr.mxu0 0.0
      %2069 = vmatpush1.msra.mxu0 0.0
      %2070 = vmatprep.subr.mxu0 0.0
      %2071 = vmatpush1.msra.mxu0 0.0
      %2072 = vmatprep.subr.mxu0 0.0
      %2073 = vmatpush1.msra.mxu0 0.0
      %2074 = vmatprep.subr.mxu0 0.0
      %2075 = vmatpush1.msra.mxu0 0.0
      %2076 = vmatprep.subr.mxu0 0.0
      %2077 = vmatpush1.msra.mxu0 0.0
      %2078 = vmatprep.subr.mxu0 0.0
      %2079 = vmatpush1.msra.mxu0 0.0
      %2080 = vmatprep.subr.mxu0 0.0
      %2081 = vmatpush1.msra.mxu0 0.0
      %2082 = vmatprep.subr.mxu0 0.0
      %2083 = vmatpush1.msra.mxu0 0.0
      %2084 = vmatprep.subr.mxu0 0.0
      %2085 = vmatpush1.msra.mxu0 0.0
      %2086 = vmatprep.subr.mxu0 %v2003
      %2087 = vmatpush1.msra.mxu0 %v2005
      %2088 = vmatprep.subr.mxu0 0.0
      %2089 = vmatpush2.msra.mxu0 0.0
      %2090 = vmatprep.subr.mxu0 0.0
      %2091 = vmatpush2.msra.mxu0 0.0
      %2092 = vmatprep.subr.mxu0 0.0
      %2093 = vmatpush2.msra.mxu0 0.0
      %2094 = vmatprep.subr.mxu0 0.0
      %2095 = vmatpush2.msra.mxu0 0.0
      %2096 = vmatprep.subr.mxu0 0.0
      %2097 = vmatpush2.msra.mxu0 0.0
      %2098 = vmatprep.subr.mxu0 0.0
      %2099 = vmatpush2.msra.mxu0 0.0
      %2100 = vmatprep.subr.mxu0 0.0
      %2101 = vmatpush2.msra.mxu0 0.0
      %2102 = vmatprep.subr.mxu0 0.0
      %2103 = vmatpush2.msra.mxu0 0.0
      %2104 = vmatprep.subr.mxu0 0.0
      %2105 = vmatpush2.msra.mxu0 0.0
      %2106 = vmatprep.subr.mxu0 0.0
      %2107 = vmatpush2.msra.mxu0 0.0
      %2108 = vmatprep.subr.mxu0 0.0
      %2109 = vmatpush2.msra.mxu0 0.0
      %2110 = vmatprep.subr.mxu0 0.0
      %2111 = vmatpush2.msra.mxu0 0.0
      %2112 = vmatprep.subr.mxu0 0.0
      %2113 = vmatpush2.msra.mxu0 0.0
      %2114 = vmatprep.subr.mxu0 0.0
      %2115 = vmatpush2.msra.mxu0 0.0
      %2116 = vmatprep.subr.mxu0 0.0
      %2117 = vmatpush2.msra.mxu0 0.0
      %2118 = vmatprep.subr.mxu0 0.0
      %2119 = vmatpush2.msra.mxu0 0.0
      %2120 = vmatprep.mubr.f32.mxu0 0.0
      %2121 = vmatmul.mubr.f32.gmra.mxu0 %v2009
      %v2122 = vpop.f32.mrf.mxu0
      %v2123 = vadd.f32 0.0, %v2122
      %v2124 = vpop.f32.mrf.mxu0
      %v2125 = vadd.f32 0.0, %v2124
      %2126 = vmatprep.mubr.f32.mxu0 0.0
      %2127 = vmatmul.mubr.f32.gmra.mxu0 %v2012
      %v2128 = vpop.f32.mrf.mxu0
      %v2129 = vadd.f32 0.0, %v2128
      %v2130 = vpop.f32.mrf.mxu0
      %v2131 = vadd.f32 0.0, %v2130
      %2132 = vmatprep.mubr.f32.mxu0 0.0
      %2133 = vmatmul.mubr.f32.gmra.mxu0 %v2015
      %v2134 = vpop.f32.mrf.mxu0
      %v2135 = vadd.f32 0.0, %v2134
      %v2136 = vpop.f32.mrf.mxu0
      %v2137 = vadd.f32 0.0, %v2136
      %2138 = vmatprep.mubr.f32.mxu0 0.0
      %2139 = vmatmul.mubr.f32.gmra.mxu0 %v2018
      %v2140 = vpop.f32.mrf.mxu0
      %v2141 = vadd.f32 0.0, %v2140
      %v2142 = vpop.f32.mrf.mxu0
      %v2143 = vadd.f32 0.0, %v2142
      %2144 = vmatprep.mubr.f32.mxu0 0.0
      %2145 = vmatmul.mubr.f32.gmra.mxu0 %v2021
      %v2146 = vpop.f32.mrf.mxu0
      %v2147 = vadd.f32 0.0, %v2146
      %v2148 = vpop.f32.mrf.mxu0
      %v2149 = vadd.f32 0.0, %v2148
      %2150 = vmatprep.mubr.f32.mxu0 0.0
      %2151 = vmatmul.mubr.f32.gmra.mxu0 %v2024
      %v2152 = vpop.f32.mrf.mxu0
      %v2153 = vadd.f32 0.0, %v2152
      %v2154 = vpop.f32.mrf.mxu0
      %v2155 = vadd.f32 0.0, %v2154
      %2156 = vmatprep.mubr.f32.mxu0 0.0
      %2157 = vmatmul.mubr.f32.gmra.mxu0 %v2027
      %v2158 = vpop.f32.mrf.mxu0
      %v2159 = vadd.f32 0.0, %v2158
      %v2160 = vpop.f32.mrf.mxu0
      %v2161 = vadd.f32 0.0, %v2160
      %2162 = vmatprep.mubr.f32.mxu0 0.0
      %2163 = vmatmul.mubr.f32.gmra.mxu0 %v2030
      %v2164 = vpop.f32.mrf.mxu0
      %v2165 = vadd.f32 0.0, %v2164
      %v2166 = vpop.f32.mrf.mxu0
      %v2167 = vadd.f32 0.0, %v2166
      %2168 = vmatprep.mubr.f32.mxu0 0.0
      %2169 = vmatmul.mubr.f32.gmra.mxu0 %v2033
      %v2170 = vpop.f32.mrf.mxu0
      %v2171 = vadd.f32 0.0, %v2170
      %v2172 = vpop.f32.mrf.mxu0
      %v2173 = vadd.f32 0.0, %v2172
      %2174 = vmatprep.mubr.f32.mxu0 0.0
      %2175 = vmatmul.mubr.f32.gmra.mxu0 %v2036
      %v2176 = vpop.f32.mrf.mxu0
      %v2177 = vadd.f32 0.0, %v2176
      %v2178 = vpop.f32.mrf.mxu0
      %v2179 = vadd.f32 0.0, %v2178
      %2180 = vmatprep.mubr.f32.mxu0 0.0
      %2181 = vmatmul.mubr.f32.gmra.mxu0 %v2039
      %v2182 = vpop.f32.mrf.mxu0
      %v2183 = vadd.f32 0.0, %v2182
      %v2184 = vpop.f32.mrf.mxu0
      %v2185 = vadd.f32 0.0, %v2184
      %2186 = vmatprep.mubr.f32.mxu0 0.0
      %2187 = vmatmul.mubr.f32.gmra.mxu0 %v2042
      %v2188 = vpop.f32.mrf.mxu0
      %v2189 = vadd.f32 0.0, %v2188
      %v2190 = vpop.f32.mrf.mxu0
      %v2191 = vadd.f32 0.0, %v2190
      %2192 = vmatprep.mubr.f32.mxu0 0.0
      %2193 = vmatmul.mubr.f32.gmra.mxu0 %v2045
      %v2194 = vpop.f32.mrf.mxu0
      %v2195 = vadd.f32 0.0, %v2194
      %v2196 = vpop.f32.mrf.mxu0
      %v2197 = vadd.f32 0.0, %v2196
      %2198 = vmatprep.mubr.f32.mxu0 0.0
      %2199 = vmatmul.mubr.f32.gmra.mxu0 %v2048
      %v2200 = vpop.f32.mrf.mxu0
      %v2201 = vadd.f32 0.0, %v2200
      %v2202 = vpop.f32.mrf.mxu0
      %v2203 = vadd.f32 0.0, %v2202
      %2204 = vmatprep.mubr.f32.mxu0 0.0
      %2205 = vmatmul.mubr.f32.gmra.mxu0 %v2051
      %v2206 = vpop.f32.mrf.mxu0
      %v2207 = vadd.f32 0.0, %v2206
      %v2208 = vpop.f32.mrf.mxu0
      %v2209 = vadd.f32 0.0, %v2208
      %2210 = vmatprep.mubr.f32.mxu0 0.0
      %2211 = vmatmul.mubr.f32.gmra.mxu0 %v2054
      %v2212 = vpop.f32.mrf.mxu0
      %v2213 = vadd.f32 0.0, %v2212
      %v2214 = vpop.f32.mrf.mxu0
      %v2215 = vadd.f32 0.0, %v2214
      %2216 = vdwg.mxu0
      %2217 = vrot.lane.b32.xlu0 %v448, 126
      %v2218 = vpop.permute.xlu0 %2217
      %2219 = vrot.lane.b32.xlu0 %v449, 126
      %v2220 = vpop.permute.xlu0 %2219
      %vm2221 = vcmask 1031168
      %v2222 = vsel %vm2221, %v2218, %v2220
      %v2226 = vsel %vm477, %v1967, 0
      %v2229 = vsel %vm477, %v1968, 0
      %v2232 = vsel %vm477, %v1969, 0
      %v2235 = vsel %vm477, %v1970, 0
      %v2238 = vsel %vm477, %v1971, 0
      %v2241 = vsel %vm477, %v1972, 0
      %v2244 = vsel %vm477, %v1973, 0
      %v2247 = vsel %vm477, %v1974, 0
      %v2250 = vsel %vm477, %v1975, 0
      %v2253 = vsel %vm477, %v1976, 0
      %v2256 = vsel %vm477, %v1977, 0
      %v2259 = vsel %vm477, %v1978, 0
      %v2262 = vsel %vm477, %v1979, 0
      %v2265 = vsel %vm477, %v1980, 0
      %v2268 = vsel %vm477, %v1981, 0
      %v2271 = vsel %vm477, %v1982, 0
      %2273 = vmatprep.subr.mxu0 0.0
      %2274 = vmatpush1.msra.mxu0 0.0
      %2275 = vmatprep.subr.mxu0 0.0
      %2276 = vmatpush1.msra.mxu0 0.0
      %2277 = vmatprep.subr.mxu0 0.0
      %2278 = vmatpush1.msra.mxu0 0.0
      %2279 = vmatprep.subr.mxu0 0.0
      %2280 = vmatpush1.msra.mxu0 0.0
      %2281 = vmatprep.subr.mxu0 0.0
      %2282 = vmatpush1.msra.mxu0 0.0
      %2283 = vmatprep.subr.mxu0 0.0
      %2284 = vmatpush1.msra.mxu0 0.0
      %2285 = vmatprep.subr.mxu0 0.0
      %2286 = vmatpush1.msra.mxu0 0.0
      %2287 = vmatprep.subr.mxu0 0.0
      %2288 = vmatpush1.msra.mxu0 0.0
      %2289 = vmatprep.subr.mxu0 0.0
      %2290 = vmatpush1.msra.mxu0 0.0
      %2291 = vmatprep.subr.mxu0 0.0
      %2292 = vmatpush1.msra.mxu0 0.0
      %2293 = vmatprep.subr.mxu0 0.0
      %2294 = vmatpush1.msra.mxu0 0.0
      %2295 = vmatprep.subr.mxu0 0.0
      %2296 = vmatpush1.msra.mxu0 0.0
      %2297 = vmatprep.subr.mxu0 0.0
      %2298 = vmatpush1.msra.mxu0 0.0
      %2299 = vmatprep.subr.mxu0 0.0
      %2300 = vmatpush1.msra.mxu0 0.0
      %2301 = vmatprep.subr.mxu0 0.0
      %2302 = vmatpush1.msra.mxu0 0.0
      %2303 = vmatprep.subr.mxu0 %v2220
      %2304 = vmatpush1.msra.mxu0 %v2222
      %2305 = vmatprep.subr.mxu0 0.0
      %2306 = vmatpush2.msra.mxu0 0.0
      %2307 = vmatprep.subr.mxu0 0.0
      %2308 = vmatpush2.msra.mxu0 0.0
      %2309 = vmatprep.subr.mxu0 0.0
      %2310 = vmatpush2.msra.mxu0 0.0
      %2311 = vmatprep.subr.mxu0 0.0
      %2312 = vmatpush2.msra.mxu0 0.0
      %2313 = vmatprep.subr.mxu0 0.0
      %2314 = vmatpush2.msra.mxu0 0.0
      %2315 = vmatprep.subr.mxu0 0.0
      %2316 = vmatpush2.msra.mxu0 0.0
      %2317 = vmatprep.subr.mxu0 0.0
      %2318 = vmatpush2.msra.mxu0 0.0
      %2319 = vmatprep.subr.mxu0 0.0
      %2320 = vmatpush2.msra.mxu0 0.0
      %2321 = vmatprep.subr.mxu0 0.0
      %2322 = vmatpush2.msra.mxu0 0.0
      %2323 = vmatprep.subr.mxu0 0.0
      %2324 = vmatpush2.msra.mxu0 0.0
      %2325 = vmatprep.subr.mxu0 0.0
      %2326 = vmatpush2.msra.mxu0 0.0
      %2327 = vmatprep.subr.mxu0 0.0
      %2328 = vmatpush2.msra.mxu0 0.0
      %2329 = vmatprep.subr.mxu0 0.0
      %2330 = vmatpush2.msra.mxu0 0.0
      %2331 = vmatprep.subr.mxu0 0.0
      %2332 = vmatpush2.msra.mxu0 0.0
      %2333 = vmatprep.subr.mxu0 0.0
      %2334 = vmatpush2.msra.mxu0 0.0
      %2335 = vmatprep.subr.mxu0 0.0
      %2336 = vmatpush2.msra.mxu0 0.0
      %2337 = vmatprep.mubr.f32.mxu0 0.0
      %2338 = vmatmul.mubr.f32.gmra.mxu0 %v2226
      %v2339 = vpop.f32.mrf.mxu0
      %v2340 = vadd.f32 %v2123, %v2339
      %v2341 = vpop.f32.mrf.mxu0
      %v2342 = vadd.f32 %v2125, %v2341
      %2343 = vmatprep.mubr.f32.mxu0 0.0
      %2344 = vmatmul.mubr.f32.gmra.mxu0 %v2229
      %v2345 = vpop.f32.mrf.mxu0
      %v2346 = vadd.f32 %v2129, %v2345
      %v2347 = vpop.f32.mrf.mxu0
      %v2348 = vadd.f32 %v2131, %v2347
      %2349 = vmatprep.mubr.f32.mxu0 0.0
      %2350 = vmatmul.mubr.f32.gmra.mxu0 %v2232
      %v2351 = vpop.f32.mrf.mxu0
      %v2352 = vadd.f32 %v2135, %v2351
      %v2353 = vpop.f32.mrf.mxu0
      %v2354 = vadd.f32 %v2137, %v2353
      %2355 = vmatprep.mubr.f32.mxu0 0.0
      %2356 = vmatmul.mubr.f32.gmra.mxu0 %v2235
      %v2357 = vpop.f32.mrf.mxu0
      %v2358 = vadd.f32 %v2141, %v2357
      %v2359 = vpop.f32.mrf.mxu0
      %v2360 = vadd.f32 %v2143, %v2359
      %2361 = vmatprep.mubr.f32.mxu0 0.0
      %2362 = vmatmul.mubr.f32.gmra.mxu0 %v2238
      %v2363 = vpop.f32.mrf.mxu0
      %v2364 = vadd.f32 %v2147, %v2363
      %v2365 = vpop.f32.mrf.mxu0
      %v2366 = vadd.f32 %v2149, %v2365
      %2367 = vmatprep.mubr.f32.mxu0 0.0
      %2368 = vmatmul.mubr.f32.gmra.mxu0 %v2241
      %v2369 = vpop.f32.mrf.mxu0
      %v2370 = vadd.f32 %v2153, %v2369
      %v2371 = vpop.f32.mrf.mxu0
      %v2372 = vadd.f32 %v2155, %v2371
      %2373 = vmatprep.mubr.f32.mxu0 0.0
      %2374 = vmatmul.mubr.f32.gmra.mxu0 %v2244
      %v2375 = vpop.f32.mrf.mxu0
      %v2376 = vadd.f32 %v2159, %v2375
      %v2377 = vpop.f32.mrf.mxu0
      %v2378 = vadd.f32 %v2161, %v2377
      %2379 = vmatprep.mubr.f32.mxu0 0.0
      %2380 = vmatmul.mubr.f32.gmra.mxu0 %v2247
      %v2381 = vpop.f32.mrf.mxu0
      %v2382 = vadd.f32 %v2165, %v2381
      %v2383 = vpop.f32.mrf.mxu0
      %v2384 = vadd.f32 %v2167, %v2383
      %2385 = vmatprep.mubr.f32.mxu0 0.0
      %2386 = vmatmul.mubr.f32.gmra.mxu0 %v2250
      %v2387 = vpop.f32.mrf.mxu0
      %v2388 = vadd.f32 %v2171, %v2387
      %v2389 = vpop.f32.mrf.mxu0
      %v2390 = vadd.f32 %v2173, %v2389
      %2391 = vmatprep.mubr.f32.mxu0 0.0
      %2392 = vmatmul.mubr.f32.gmra.mxu0 %v2253
      %v2393 = vpop.f32.mrf.mxu0
      %v2394 = vadd.f32 %v2177, %v2393
      %v2395 = vpop.f32.mrf.mxu0
      %v2396 = vadd.f32 %v2179, %v2395
      %2397 = vmatprep.mubr.f32.mxu0 0.0
      %2398 = vmatmul.mubr.f32.gmra.mxu0 %v2256
      %v2399 = vpop.f32.mrf.mxu0
      %v2400 = vadd.f32 %v2183, %v2399
      %v2401 = vpop.f32.mrf.mxu0
      %v2402 = vadd.f32 %v2185, %v2401
      %2403 = vmatprep.mubr.f32.mxu0 0.0
      %2404 = vmatmul.mubr.f32.gmra.mxu0 %v2259
      %v2405 = vpop.f32.mrf.mxu0
      %v2406 = vadd.f32 %v2189, %v2405
      %v2407 = vpop.f32.mrf.mxu0
      %v2408 = vadd.f32 %v2191, %v2407
      %2409 = vmatprep.mubr.f32.mxu0 0.0
      %2410 = vmatmul.mubr.f32.gmra.mxu0 %v2262
      %v2411 = vpop.f32.mrf.mxu0
      %v2412 = vadd.f32 %v2195, %v2411
      %v2413 = vpop.f32.mrf.mxu0
      %v2414 = vadd.f32 %v2197, %v2413
      %2415 = vmatprep.mubr.f32.mxu0 0.0
      %2416 = vmatmul.mubr.f32.gmra.mxu0 %v2265
      %v2417 = vpop.f32.mrf.mxu0
      %v2418 = vadd.f32 %v2201, %v2417
      %v2419 = vpop.f32.mrf.mxu0
      %v2420 = vadd.f32 %v2203, %v2419
      %2421 = vmatprep.mubr.f32.mxu0 0.0
      %2422 = vmatmul.mubr.f32.gmra.mxu0 %v2268
      %v2423 = vpop.f32.mrf.mxu0
      %v2424 = vadd.f32 %v2207, %v2423
      %v2425 = vpop.f32.mrf.mxu0
      %v2426 = vadd.f32 %v2209, %v2425
      %2427 = vmatprep.mubr.f32.mxu0 0.0
      %2428 = vmatmul.mubr.f32.gmra.mxu0 %v2271
      %v2429 = vpop.f32.mrf.mxu0
      %v2430 = vadd.f32 %v2213, %v2429
      %v2431 = vpop.f32.mrf.mxu0
      %v2432 = vadd.f32 %v2215, %v2431
      %2433 = vdwg.mxu0
      %s2434 = scalar_lea.vmem %s4, 1024
      %v2435 = vld [vmem:[%s2434] sm:$0xff]
      %v2436 = vld [vmem:[%s2434 + $0x8] sm:$0xff]
      %v2437 = vld [vmem:[%s2434 + $0x10] sm:$0xff]
      %v2438 = vld [vmem:[%s2434 + $0x18] sm:$0xff]
      %v2439 = vld [vmem:[%s2434 + $0x20] sm:$0xff]
      %v2440 = vld [vmem:[%s2434 + $0x28] sm:$0xff]
      %v2441 = vld [vmem:[%s2434 + $0x30] sm:$0xff]
      %v2442 = vld [vmem:[%s2434 + $0x38] sm:$0xff]
      %v2443 = vld [vmem:[%s2434 + $0x40] sm:$0xff]
      %v2444 = vld [vmem:[%s2434 + $0x48] sm:$0xff]
      %v2445 = vld [vmem:[%s2434 + $0x50] sm:$0xff]
      %v2446 = vld [vmem:[%s2434 + $0x58] sm:$0xff]
      %v2447 = vld [vmem:[%s2434 + $0x60] sm:$0xff]
      %v2448 = vld [vmem:[%s2434 + $0x68] sm:$0xff]
      %v2449 = vld [vmem:[%s2434 + $0x70] sm:$0xff]
      %v2450 = vld [vmem:[%s2434 + $0x78] sm:$0xff]
      %2451 = vrot.lane.b32.xlu0 %v448, 94
      %v2452 = vpop.permute.xlu0 %2451
      %2453 = vrot.lane.b32.xlu0 %v449, 94
      %v2454 = vpop.permute.xlu0 %2453
      %vm2455 = vcmask 769024
      %v2456 = vsel %vm2455, %v2452, %v2454
      %v2460 = vsel %vm477, %v2435, 0
      %v2463 = vsel %vm477, %v2436, 0
      %v2466 = vsel %vm477, %v2437, 0
      %v2469 = vsel %vm477, %v2438, 0
      %v2472 = vsel %vm477, %v2439, 0
      %v2475 = vsel %vm477, %v2440, 0
      %v2478 = vsel %vm477, %v2441, 0
      %v2481 = vsel %vm477, %v2442, 0
      %v2484 = vsel %vm477, %v2443, 0
      %v2487 = vsel %vm477, %v2444, 0
      %v2490 = vsel %vm477, %v2445, 0
      %v2493 = vsel %vm477, %v2446, 0
      %v2496 = vsel %vm477, %v2447, 0
      %v2499 = vsel %vm477, %v2448, 0
      %v2502 = vsel %vm477, %v2449, 0
      %v2505 = vsel %vm477, %v2450, 0
      %2507 = vmatprep.subr.mxu0 0.0
      %2508 = vmatpush1.msra.mxu0 0.0
      %2509 = vmatprep.subr.mxu0 0.0
      %2510 = vmatpush1.msra.mxu0 0.0
      %2511 = vmatprep.subr.mxu0 0.0
      %2512 = vmatpush1.msra.mxu0 0.0
      %2513 = vmatprep.subr.mxu0 0.0
      %2514 = vmatpush1.msra.mxu0 0.0
      %2515 = vmatprep.subr.mxu0 0.0
      %2516 = vmatpush1.msra.mxu0 0.0
      %2517 = vmatprep.subr.mxu0 0.0
      %2518 = vmatpush1.msra.mxu0 0.0
      %2519 = vmatprep.subr.mxu0 0.0
      %2520 = vmatpush1.msra.mxu0 0.0
      %2521 = vmatprep.subr.mxu0 0.0
      %2522 = vmatpush1.msra.mxu0 0.0
      %2523 = vmatprep.subr.mxu0 0.0
      %2524 = vmatpush1.msra.mxu0 0.0
      %2525 = vmatprep.subr.mxu0 0.0
      %2526 = vmatpush1.msra.mxu0 0.0
      %2527 = vmatprep.subr.mxu0 0.0
      %2528 = vmatpush1.msra.mxu0 0.0
      %2529 = vmatprep.subr.mxu0 0.0
      %2530 = vmatpush1.msra.mxu0 0.0
      %2531 = vmatprep.subr.mxu0 0.0
      %2532 = vmatpush1.msra.mxu0 0.0
      %2533 = vmatprep.subr.mxu0 0.0
      %2534 = vmatpush1.msra.mxu0 0.0
      %2535 = vmatprep.subr.mxu0 0.0
      %2536 = vmatpush1.msra.mxu0 0.0
      %2537 = vmatprep.subr.mxu0 %v2454
      %2538 = vmatpush1.msra.mxu0 %v2456
      %2539 = vmatprep.subr.mxu0 0.0
      %2540 = vmatpush2.msra.mxu0 0.0
      %2541 = vmatprep.subr.mxu0 0.0
      %2542 = vmatpush2.msra.mxu0 0.0
      %2543 = vmatprep.subr.mxu0 0.0
      %2544 = vmatpush2.msra.mxu0 0.0
      %2545 = vmatprep.subr.mxu0 0.0
      %2546 = vmatpush2.msra.mxu0 0.0
      %2547 = vmatprep.subr.mxu0 0.0
      %2548 = vmatpush2.msra.mxu0 0.0
      %2549 = vmatprep.subr.mxu0 0.0
      %2550 = vmatpush2.msra.mxu0 0.0
      %2551 = vmatprep.subr.mxu0 0.0
      %2552 = vmatpush2.msra.mxu0 0.0
      %2553 = vmatprep.subr.mxu0 0.0
      %2554 = vmatpush2.msra.mxu0 0.0
      %2555 = vmatprep.subr.mxu0 0.0
      %2556 = vmatpush2.msra.mxu0 0.0
      %2557 = vmatprep.subr.mxu0 0.0
      %2558 = vmatpush2.msra.mxu0 0.0
      %2559 = vmatprep.subr.mxu0 0.0
      %2560 = vmatpush2.msra.mxu0 0.0
      %2561 = vmatprep.subr.mxu0 0.0
      %2562 = vmatpush2.msra.mxu0 0.0
      %2563 = vmatprep.subr.mxu0 0.0
      %2564 = vmatpush2.msra.mxu0 0.0
      %2565 = vmatprep.subr.mxu0 0.0
      %2566 = vmatpush2.msra.mxu0 0.0
      %2567 = vmatprep.subr.mxu0 0.0
      %2568 = vmatpush2.msra.mxu0 0.0
      %2569 = vmatprep.subr.mxu0 0.0
      %2570 = vmatpush2.msra.mxu0 0.0
      %2571 = vmatprep.mubr.f32.mxu0 0.0
      %2572 = vmatmul.mubr.f32.gmra.mxu0 %v2460
      %v2573 = vpop.f32.mrf.mxu0
      %v2574 = vadd.f32 0.0, %v2573
      %v2575 = vpop.f32.mrf.mxu0
      %v2576 = vadd.f32 0.0, %v2575
      %2577 = vmatprep.mubr.f32.mxu0 0.0
      %2578 = vmatmul.mubr.f32.gmra.mxu0 %v2463
      %v2579 = vpop.f32.mrf.mxu0
      %v2580 = vadd.f32 0.0, %v2579
      %v2581 = vpop.f32.mrf.mxu0
      %v2582 = vadd.f32 0.0, %v2581
      %2583 = vmatprep.mubr.f32.mxu0 0.0
      %2584 = vmatmul.mubr.f32.gmra.mxu0 %v2466
      %v2585 = vpop.f32.mrf.mxu0
      %v2586 = vadd.f32 0.0, %v2585
      %v2587 = vpop.f32.mrf.mxu0
      %v2588 = vadd.f32 0.0, %v2587
      %2589 = vmatprep.mubr.f32.mxu0 0.0
      %2590 = vmatmul.mubr.f32.gmra.mxu0 %v2469
      %v2591 = vpop.f32.mrf.mxu0
      %v2592 = vadd.f32 0.0, %v2591
      %v2593 = vpop.f32.mrf.mxu0
      %v2594 = vadd.f32 0.0, %v2593
      %2595 = vmatprep.mubr.f32.mxu0 0.0
      %2596 = vmatmul.mubr.f32.gmra.mxu0 %v2472
      %v2597 = vpop.f32.mrf.mxu0
      %v2598 = vadd.f32 0.0, %v2597
      %v2599 = vpop.f32.mrf.mxu0
      %v2600 = vadd.f32 0.0, %v2599
      %2601 = vmatprep.mubr.f32.mxu0 0.0
      %2602 = vmatmul.mubr.f32.gmra.mxu0 %v2475
      %v2603 = vpop.f32.mrf.mxu0
      %v2604 = vadd.f32 0.0, %v2603
      %v2605 = vpop.f32.mrf.mxu0
      %v2606 = vadd.f32 0.0, %v2605
      %2607 = vmatprep.mubr.f32.mxu0 0.0
      %2608 = vmatmul.mubr.f32.gmra.mxu0 %v2478
      %v2609 = vpop.f32.mrf.mxu0
      %v2610 = vadd.f32 0.0, %v2609
      %v2611 = vpop.f32.mrf.mxu0
      %v2612 = vadd.f32 0.0, %v2611
      %2613 = vmatprep.mubr.f32.mxu0 0.0
      %2614 = vmatmul.mubr.f32.gmra.mxu0 %v2481
      %v2615 = vpop.f32.mrf.mxu0
      %v2616 = vadd.f32 0.0, %v2615
      %v2617 = vpop.f32.mrf.mxu0
      %v2618 = vadd.f32 0.0, %v2617
      %2619 = vmatprep.mubr.f32.mxu0 0.0
      %2620 = vmatmul.mubr.f32.gmra.mxu0 %v2484
      %v2621 = vpop.f32.mrf.mxu0
      %v2622 = vadd.f32 0.0, %v2621
      %v2623 = vpop.f32.mrf.mxu0
      %v2624 = vadd.f32 0.0, %v2623
      %2625 = vmatprep.mubr.f32.mxu0 0.0
      %2626 = vmatmul.mubr.f32.gmra.mxu0 %v2487
      %v2627 = vpop.f32.mrf.mxu0
      %v2628 = vadd.f32 0.0, %v2627
      %v2629 = vpop.f32.mrf.mxu0
      %v2630 = vadd.f32 0.0, %v2629
      %2631 = vmatprep.mubr.f32.mxu0 0.0
      %2632 = vmatmul.mubr.f32.gmra.mxu0 %v2490
      %v2633 = vpop.f32.mrf.mxu0
      %v2634 = vadd.f32 0.0, %v2633
      %v2635 = vpop.f32.mrf.mxu0
      %v2636 = vadd.f32 0.0, %v2635
      %2637 = vmatprep.mubr.f32.mxu0 0.0
      %2638 = vmatmul.mubr.f32.gmra.mxu0 %v2493
      %v2639 = vpop.f32.mrf.mxu0
      %v2640 = vadd.f32 0.0, %v2639
      %v2641 = vpop.f32.mrf.mxu0
      %v2642 = vadd.f32 0.0, %v2641
      %2643 = vmatprep.mubr.f32.mxu0 0.0
      %2644 = vmatmul.mubr.f32.gmra.mxu0 %v2496
      %v2645 = vpop.f32.mrf.mxu0
      %v2646 = vadd.f32 0.0, %v2645
      %v2647 = vpop.f32.mrf.mxu0
      %v2648 = vadd.f32 0.0, %v2647
      %2649 = vmatprep.mubr.f32.mxu0 0.0
      %2650 = vmatmul.mubr.f32.gmra.mxu0 %v2499
      %v2651 = vpop.f32.mrf.mxu0
      %v2652 = vadd.f32 0.0, %v2651
      %v2653 = vpop.f32.mrf.mxu0
      %v2654 = vadd.f32 0.0, %v2653
      %2655 = vmatprep.mubr.f32.mxu0 0.0
      %2656 = vmatmul.mubr.f32.gmra.mxu0 %v2502
      %v2657 = vpop.f32.mrf.mxu0
      %v2658 = vadd.f32 0.0, %v2657
      %v2659 = vpop.f32.mrf.mxu0
      %v2660 = vadd.f32 0.0, %v2659
      %2661 = vmatprep.mubr.f32.mxu0 0.0
      %2662 = vmatmul.mubr.f32.gmra.mxu0 %v2505
      %v2663 = vpop.f32.mrf.mxu0
      %v2664 = vadd.f32 0.0, %v2663
      %v2665 = vpop.f32.mrf.mxu0
      %v2666 = vadd.f32 0.0, %v2665
      %2667 = vdwg.mxu0
      %v2668 = vadd.f32 %v2340, %v2574
      %v2669 = vadd.f32 %v2342, %v2576
      %v2670 = vadd.f32 %v2346, %v2580
      %v2671 = vadd.f32 %v2348, %v2582
      %v2672 = vadd.f32 %v2352, %v2586
      %v2673 = vadd.f32 %v2354, %v2588
      %v2674 = vadd.f32 %v2358, %v2592
      %v2675 = vadd.f32 %v2360, %v2594
      %v2676 = vadd.f32 %v2364, %v2598
      %v2677 = vadd.f32 %v2366, %v2600
      %v2678 = vadd.f32 %v2370, %v2604
      %v2679 = vadd.f32 %v2372, %v2606
      %v2680 = vadd.f32 %v2376, %v2610
      %v2681 = vadd.f32 %v2378, %v2612
      %v2682 = vadd.f32 %v2382, %v2616
      %v2683 = vadd.f32 %v2384, %v2618
      %v2684 = vadd.f32 %v2388, %v2622
      %v2685 = vadd.f32 %v2390, %v2624
      %v2686 = vadd.f32 %v2394, %v2628
      %v2687 = vadd.f32 %v2396, %v2630
      %v2688 = vadd.f32 %v2400, %v2634
      %v2689 = vadd.f32 %v2402, %v2636
      %v2690 = vadd.f32 %v2406, %v2640
      %v2691 = vadd.f32 %v2408, %v2642
      %v2692 = vadd.f32 %v2412, %v2646
      %v2693 = vadd.f32 %v2414, %v2648
      %v2694 = vadd.f32 %v2418, %v2652
      %v2695 = vadd.f32 %v2420, %v2654
      %v2696 = vadd.f32 %v2424, %v2658
      %v2697 = vadd.f32 %v2426, %v2660
      %v2698 = vadd.f32 %v2430, %v2664
      %v2699 = vadd.f32 %v2432, %v2666
      %vm2700 = vcmp.lt.s32.totalorder %v430, 15
      %vm2701 = vcmp.lt.s32.totalorder %v431, 15
      %v2702 = vsel %vm2700, 1, 0
      %v2703 = vsel %vm2701, 1, 0
      %vm2704 = vcmp.eq.s32.totalorder %v2702, 1
      %vm2705 = vcmp.eq.s32.totalorder %v2703, 1
      %v2706 = vsel %vm2704, %v2668, 0.0
      %v2707 = vsel %vm2705, %v2669, 0.0
      %v2708 = vsel %vm2704, %v2670, 0.0
      %v2709 = vsel %vm2705, %v2671, 0.0
      %v2710 = vsel %vm2704, %v2672, 0.0
      %v2711 = vsel %vm2705, %v2673, 0.0
      %v2712 = vsel %vm2704, %v2674, 0.0
      %v2713 = vsel %vm2705, %v2675, 0.0
      %v2714 = vsel %vm2704, %v2676, 0.0
      %v2715 = vsel %vm2705, %v2677, 0.0
      %v2716 = vsel %vm2704, %v2678, 0.0
      %v2717 = vsel %vm2705, %v2679, 0.0
      %v2718 = vsel %vm2704, %v2680, 0.0
      %v2719 = vsel %vm2705, %v2681, 0.0
      %v2720 = vsel %vm2704, %v2682, 0.0
      %v2721 = vsel %vm2705, %v2683, 0.0
      %v2722 = vsel %vm2704, %v2684, 0.0
      %v2723 = vsel %vm2705, %v2685, 0.0
      %v2724 = vsel %vm2704, %v2686, 0.0
      %v2725 = vsel %vm2705, %v2687, 0.0
      %v2726 = vsel %vm2704, %v2688, 0.0
      %v2727 = vsel %vm2705, %v2689, 0.0
      %v2728 = vsel %vm2704, %v2690, 0.0
      %v2729 = vsel %vm2705, %v2691, 0.0
      %v2730 = vsel %vm2704, %v2692, 0.0
      %v2731 = vsel %vm2705, %v2693, 0.0
      %v2732 = vsel %vm2704, %v2694, 0.0
      %v2733 = vsel %vm2705, %v2695, 0.0
      %v2734 = vsel %vm2704, %v2696, 0.0
      %v2735 = vsel %vm2705, %v2697, 0.0
      %v2736 = vsel %vm2704, %v2698, 0.0
      %v2737 = vsel %vm2705, %v2699, 0.0
      %v2738 = vadd.f32 %v1934, %v2706
      %v2739 = vadd.f32 %v1935, %v2707
      %v2740 = vadd.f32 %v1936, %v2708
      %v2741 = vadd.f32 %v1937, %v2709
      %v2742 = vadd.f32 %v1938, %v2710
      %v2743 = vadd.f32 %v1939, %v2711
      %v2744 = vadd.f32 %v1940, %v2712
      %v2745 = vadd.f32 %v1941, %v2713
      %v2746 = vadd.f32 %v1942, %v2714
      %v2747 = vadd.f32 %v1943, %v2715
      %v2748 = vadd.f32 %v1944, %v2716
      %v2749 = vadd.f32 %v1945, %v2717
      %v2750 = vadd.f32 %v1946, %v2718
      %v2751 = vadd.f32 %v1947, %v2719
      %v2752 = vadd.f32 %v1948, %v2720
      %v2753 = vadd.f32 %v1949, %v2721
      %v2754 = vadd.f32 %v1950, %v2722
      %v2755 = vadd.f32 %v1951, %v2723
      %v2756 = vadd.f32 %v1952, %v2724
      %v2757 = vadd.f32 %v1953, %v2725
      %v2758 = vadd.f32 %v1954, %v2726
      %v2759 = vadd.f32 %v1955, %v2727
      %v2760 = vadd.f32 %v1956, %v2728
      %v2761 = vadd.f32 %v1957, %v2729
      %v2762 = vadd.f32 %v1958, %v2730
      %v2763 = vadd.f32 %v1959, %v2731
      %v2764 = vadd.f32 %v1960, %v2732
      %v2765 = vadd.f32 %v1961, %v2733
      %v2766 = vadd.f32 %v1962, %v2734
      %v2767 = vadd.f32 %v1963, %v2735
      %v2768 = vadd.f32 %v1964, %v2736
      %v2769 = vadd.f32 %v1965, %v2737
      %v2770 = vld [vmem:[%s5] sm:$0xff]
      %v2771 = vld [vmem:[%s5 + $0x8] sm:$0xff]
      %v2772 = vld [vmem:[%s5 + $0x10] sm:$0xff]
      %v2773 = vld [vmem:[%s5 + $0x18] sm:$0xff]
      %v2774 = vld [vmem:[%s5 + $0x20] sm:$0xff]
      %v2775 = vld [vmem:[%s5 + $0x28] sm:$0xff]
      %v2776 = vld [vmem:[%s5 + $0x30] sm:$0xff]
      %v2777 = vld [vmem:[%s5 + $0x38] sm:$0xff]
      %v2778 = vld [vmem:[%s5 + $0x40] sm:$0xff]
      %v2779 = vld [vmem:[%s5 + $0x48] sm:$0xff]
      %v2780 = vld [vmem:[%s5 + $0x50] sm:$0xff]
      %v2781 = vld [vmem:[%s5 + $0x58] sm:$0xff]
      %v2782 = vld [vmem:[%s5 + $0x60] sm:$0xff]
      %v2783 = vld [vmem:[%s5 + $0x68] sm:$0xff]
      %v2784 = vld [vmem:[%s5 + $0x70] sm:$0xff]
      %v2785 = vld [vmem:[%s5 + $0x78] sm:$0xff]
      %2787 = vset.pattern.permute.xlu0 0
      %2788 = vperm.xlu0 %2787, %v2770
      %v2789 = vpop.permute.xlu0 %2788
      %2792 = vset.pattern.permute.xlu0 0
      %2793 = vperm.xlu0 %2792, %v2771
      %v2794 = vpop.permute.xlu0 %2793
      %2797 = vset.pattern.permute.xlu0 0
      %2798 = vperm.xlu0 %2797, %v2772
      %v2799 = vpop.permute.xlu0 %2798
      %2802 = vset.pattern.permute.xlu0 0
      %2803 = vperm.xlu0 %2802, %v2773
      %v2804 = vpop.permute.xlu0 %2803
      %2807 = vset.pattern.permute.xlu0 0
      %2808 = vperm.xlu0 %2807, %v2774
      %v2809 = vpop.permute.xlu0 %2808
      %2812 = vset.pattern.permute.xlu0 0
      %2813 = vperm.xlu0 %2812, %v2775
      %v2814 = vpop.permute.xlu0 %2813
      %2817 = vset.pattern.permute.xlu0 0
      %2818 = vperm.xlu0 %2817, %v2776
      %v2819 = vpop.permute.xlu0 %2818
      %2822 = vset.pattern.permute.xlu0 0
      %2823 = vperm.xlu0 %2822, %v2777
      %v2824 = vpop.permute.xlu0 %2823
      %2827 = vset.pattern.permute.xlu0 0
      %2828 = vperm.xlu0 %2827, %v2778
      %v2829 = vpop.permute.xlu0 %2828
      %2832 = vset.pattern.permute.xlu0 0
      %2833 = vperm.xlu0 %2832, %v2779
      %v2834 = vpop.permute.xlu0 %2833
      %2837 = vset.pattern.permute.xlu0 0
      %2838 = vperm.xlu0 %2837, %v2780
      %v2839 = vpop.permute.xlu0 %2838
      %2842 = vset.pattern.permute.xlu0 0
      %2843 = vperm.xlu0 %2842, %v2781
      %v2844 = vpop.permute.xlu0 %2843
      %2847 = vset.pattern.permute.xlu0 0
      %2848 = vperm.xlu0 %2847, %v2782
      %v2849 = vpop.permute.xlu0 %2848
      %2852 = vset.pattern.permute.xlu0 0
      %2853 = vperm.xlu0 %2852, %v2783
      %v2854 = vpop.permute.xlu0 %2853
      %2857 = vset.pattern.permute.xlu0 0
      %2858 = vperm.xlu0 %2857, %v2784
      %v2859 = vpop.permute.xlu0 %2858
      %2862 = vset.pattern.permute.xlu0 0
      %2863 = vperm.xlu0 %2862, %v2785
      %v2864 = vpop.permute.xlu0 %2863
      %v2866 = vadd.f32 %v2738, %v2789
      %v2867 = vadd.f32 %v2739, %v2789
      %v2868 = vadd.f32 %v2740, %v2794
      %v2869 = vadd.f32 %v2741, %v2794
      %v2870 = vadd.f32 %v2742, %v2799
      %v2871 = vadd.f32 %v2743, %v2799
      %v2872 = vadd.f32 %v2744, %v2804
      %v2873 = vadd.f32 %v2745, %v2804
      %v2874 = vadd.f32 %v2746, %v2809
      %v2875 = vadd.f32 %v2747, %v2809
      %v2876 = vadd.f32 %v2748, %v2814
      %v2877 = vadd.f32 %v2749, %v2814
      %v2878 = vadd.f32 %v2750, %v2819
      %v2879 = vadd.f32 %v2751, %v2819
      %v2880 = vadd.f32 %v2752, %v2824
      %v2881 = vadd.f32 %v2753, %v2824
      %v2882 = vadd.f32 %v2754, %v2829
      %v2883 = vadd.f32 %v2755, %v2829
      %v2884 = vadd.f32 %v2756, %v2834
      %v2885 = vadd.f32 %v2757, %v2834
      %v2886 = vadd.f32 %v2758, %v2839
      %v2887 = vadd.f32 %v2759, %v2839
      %v2888 = vadd.f32 %v2760, %v2844
      %v2889 = vadd.f32 %v2761, %v2844
      %v2890 = vadd.f32 %v2762, %v2849
      %v2891 = vadd.f32 %v2763, %v2849
      %v2892 = vadd.f32 %v2764, %v2854
      %v2893 = vadd.f32 %v2765, %v2854
      %v2894 = vadd.f32 %v2766, %v2859
      %v2895 = vadd.f32 %v2767, %v2859
      %v2896 = vadd.f32 %v2768, %v2864
      %v2897 = vadd.f32 %v2769, %v2864
      %v2898 = vmax.f32 %v2866, 0.0
      %v2899 = vmax.f32 %v2867, 0.0
      %v2900 = vmax.f32 %v2868, 0.0
      %v2901 = vmax.f32 %v2869, 0.0
      %v2902 = vmax.f32 %v2870, 0.0
      %v2903 = vmax.f32 %v2871, 0.0
      %v2904 = vmax.f32 %v2872, 0.0
      %v2905 = vmax.f32 %v2873, 0.0
      %v2906 = vmax.f32 %v2874, 0.0
      %v2907 = vmax.f32 %v2875, 0.0
      %v2908 = vmax.f32 %v2876, 0.0
      %v2909 = vmax.f32 %v2877, 0.0
      %v2910 = vmax.f32 %v2878, 0.0
      %v2911 = vmax.f32 %v2879, 0.0
      %v2912 = vmax.f32 %v2880, 0.0
      %v2913 = vmax.f32 %v2881, 0.0
      %v2914 = vmax.f32 %v2882, 0.0
      %v2915 = vmax.f32 %v2883, 0.0
      %v2916 = vmax.f32 %v2884, 0.0
      %v2917 = vmax.f32 %v2885, 0.0
      %v2918 = vmax.f32 %v2886, 0.0
      %v2919 = vmax.f32 %v2887, 0.0
      %v2920 = vmax.f32 %v2888, 0.0
      %v2921 = vmax.f32 %v2889, 0.0
      %v2922 = vmax.f32 %v2890, 0.0
      %v2923 = vmax.f32 %v2891, 0.0
      %v2924 = vmax.f32 %v2892, 0.0
      %v2925 = vmax.f32 %v2893, 0.0
      %v2926 = vmax.f32 %v2894, 0.0
      %v2927 = vmax.f32 %v2895, 0.0
      %v2928 = vmax.f32 %v2896, 0.0
      %v2929 = vmax.f32 %v2897, 0.0
      %2930 = vst [vmem:[#allocation2 + $0x8] sm:$0xff] %v2898
      %vm2931 = vcmask 261120
      %2932 = vst.msk [vmem:[#allocation2 + $0x10] sm:$0xff] %vm2931, %v2899
      %2933 = vst [vmem:[#allocation2 + $0x28] sm:$0xff] %v2900
      %2934 = vst.msk [vmem:[#allocation2 + $0x30] sm:$0xff] %vm2931, %v2901
      %2935 = vst [vmem:[#allocation2 + $0x48] sm:$0xff] %v2902
      %2936 = vst.msk [vmem:[#allocation2 + $0x50] sm:$0xff] %vm2931, %v2903
      %2937 = vst [vmem:[#allocation2 + $0x68] sm:$0xff] %v2904
      %2938 = vst.msk [vmem:[#allocation2 + $0x70] sm:$0xff] %vm2931, %v2905
      %2939 = vst [vmem:[#allocation2 + $0x88] sm:$0xff] %v2906
      %2940 = vst.msk [vmem:[#allocation2 + $0x90] sm:$0xff] %vm2931, %v2907
      %2941 = vst [vmem:[#allocation2 + $0xa8] sm:$0xff] %v2908
      %2942 = vst.msk [vmem:[#allocation2 + $0xb0] sm:$0xff] %vm2931, %v2909
      %2943 = vst [vmem:[#allocation2 + $0xc8] sm:$0xff] %v2910
      %2944 = vst.msk [vmem:[#allocation2 + $0xd0] sm:$0xff] %vm2931, %v2911
      %2945 = vst [vmem:[#allocation2 + $0xe8] sm:$0xff] %v2912
      %2946 = vst.msk [vmem:[#allocation2 + $0xf0] sm:$0xff] %vm2931, %v2913
      %2947 = vst [vmem:[#allocation2 + $0x108] sm:$0xff] %v2914
      %2948 = vst.msk [vmem:[#allocation2 + $0x110] sm:$0xff] %vm2931, %v2915
      %2949 = vst [vmem:[#allocation2 + $0x128] sm:$0xff] %v2916
      %2950 = vst.msk [vmem:[#allocation2 + $0x130] sm:$0xff] %vm2931, %v2917
      %2951 = vst [vmem:[#allocation2 + $0x148] sm:$0xff] %v2918
      %2952 = vst.msk [vmem:[#allocation2 + $0x150] sm:$0xff] %vm2931, %v2919
      %2953 = vst [vmem:[#allocation2 + $0x168] sm:$0xff] %v2920
      %2954 = vst.msk [vmem:[#allocation2 + $0x170] sm:$0xff] %vm2931, %v2921
      %2955 = vst [vmem:[#allocation2 + $0x188] sm:$0xff] %v2922
      %2956 = vst.msk [vmem:[#allocation2 + $0x190] sm:$0xff] %vm2931, %v2923
      %2957 = vst [vmem:[#allocation2 + $0x1a8] sm:$0xff] %v2924
      %2958 = vst.msk [vmem:[#allocation2 + $0x1b0] sm:$0xff] %vm2931, %v2925
      %2959 = vst [vmem:[#allocation2 + $0x1c8] sm:$0xff] %v2926
      %2960 = vst.msk [vmem:[#allocation2 + $0x1d0] sm:$0xff] %vm2931, %v2927
      %2961 = vst [vmem:[#allocation2 + $0x1e8] sm:$0xff] %v2928
      %2962 = vst.msk [vmem:[#allocation2 + $0x1f0] sm:$0xff] %vm2931, %v2929
      %vm2963 = vcmask 1048568
      %2964 = vst.msk [vmem:[#allocation2] sm:$0xff] %vm2963, 0.0
      %2965 = vst.msk [vmem:[#allocation2 + $0x20] sm:$0xff] %vm2963, 0.0
      %2966 = vst.msk [vmem:[#allocation2 + $0x40] sm:$0xff] %vm2963, 0.0
      %2967 = vst.msk [vmem:[#allocation2 + $0x60] sm:$0xff] %vm2963, 0.0
      %2968 = vst.msk [vmem:[#allocation2 + $0x80] sm:$0xff] %vm2963, 0.0
      %2969 = vst.msk [vmem:[#allocation2 + $0xa0] sm:$0xff] %vm2963, 0.0
      %2970 = vst.msk [vmem:[#allocation2 + $0xc0] sm:$0xff] %vm2963, 0.0
      %2971 = vst.msk [vmem:[#allocation2 + $0xe0] sm:$0xff] %vm2963, 0.0
      %2972 = vst.msk [vmem:[#allocation2 + $0x100] sm:$0xff] %vm2963, 0.0
      %2973 = vst.msk [vmem:[#allocation2 + $0x120] sm:$0xff] %vm2963, 0.0
      %2974 = vst.msk [vmem:[#allocation2 + $0x140] sm:$0xff] %vm2963, 0.0
      %2975 = vst.msk [vmem:[#allocation2 + $0x160] sm:$0xff] %vm2963, 0.0
      %2976 = vst.msk [vmem:[#allocation2 + $0x180] sm:$0xff] %vm2963, 0.0
      %2977 = vst.msk [vmem:[#allocation2 + $0x1a0] sm:$0xff] %vm2963, 0.0
      %2978 = vst.msk [vmem:[#allocation2 + $0x1c0] sm:$0xff] %vm2963, 0.0
      %2979 = vst.msk [vmem:[#allocation2 + $0x1e0] sm:$0xff] %vm2963, 0.0
      %vm2980 = vcmask 269568
      %2981 = vst.msk [vmem:[#allocation2 + $0x10] sm:$0xff] %vm2980, 0.0
      %2982 = vst.msk [vmem:[#allocation2 + $0x30] sm:$0xff] %vm2980, 0.0
      %2983 = vst.msk [vmem:[#allocation2 + $0x50] sm:$0xff] %vm2980, 0.0
      %2984 = vst.msk [vmem:[#allocation2 + $0x70] sm:$0xff] %vm2980, 0.0
      %2985 = vst.msk [vmem:[#allocation2 + $0x90] sm:$0xff] %vm2980, 0.0
      %2986 = vst.msk [vmem:[#allocation2 + $0xb0] sm:$0xff] %vm2980, 0.0
      %2987 = vst.msk [vmem:[#allocation2 + $0xd0] sm:$0xff] %vm2980, 0.0
      %2988 = vst.msk [vmem:[#allocation2 + $0xf0] sm:$0xff] %vm2980, 0.0
      %2989 = vst.msk [vmem:[#allocation2 + $0x110] sm:$0xff] %vm2980, 0.0
      %2990 = vst.msk [vmem:[#allocation2 + $0x130] sm:$0xff] %vm2980, 0.0
      %2991 = vst.msk [vmem:[#allocation2 + $0x150] sm:$0xff] %vm2980, 0.0
      %2992 = vst.msk [vmem:[#allocation2 + $0x170] sm:$0xff] %vm2980, 0.0
      %2993 = vst.msk [vmem:[#allocation2 + $0x190] sm:$0xff] %vm2980, 0.0
      %2994 = vst.msk [vmem:[#allocation2 + $0x1b0] sm:$0xff] %vm2980, 0.0
      %2995 = vst.msk [vmem:[#allocation2 + $0x1d0] sm:$0xff] %vm2980, 0.0
      %2996 = vst.msk [vmem:[#allocation2 + $0x1f0] sm:$0xff] %vm2980, 0.0
      %p2997 = scmp.eq.s32.totalorder %s24, 0
      // Predicated region
      $region53: #{spade_forward.1} parent=51 // pred_check
        %p2998 = pneg %p2997
      $region54: #{spade_forward.1} parent=51 // pred_check_branch
        %3000 = sbr.rel (%p2998) target = $region56
      $region55: #{spade_forward.1} parent=51 // pred_region
        %vm3001 = vcmask 130048
        %3002 = vst.msk [vmem:[#allocation2 + $0x8] sm:$0xff] %vm3001, 0.0
        %3003 = vst.msk [vmem:[#allocation2 + $0x28] sm:$0xff] %vm3001, 0.0
        %3004 = vst.msk [vmem:[#allocation2 + $0x48] sm:$0xff] %vm3001, 0.0
        %3005 = vst.msk [vmem:[#allocation2 + $0x68] sm:$0xff] %vm3001, 0.0
        %3006 = vst.msk [vmem:[#allocation2 + $0x88] sm:$0xff] %vm3001, 0.0
        %3007 = vst.msk [vmem:[#allocation2 + $0xa8] sm:$0xff] %vm3001, 0.0
        %3008 = vst.msk [vmem:[#allocation2 + $0xc8] sm:$0xff] %vm3001, 0.0
        %3009 = vst.msk [vmem:[#allocation2 + $0xe8] sm:$0xff] %vm3001, 0.0
        %3010 = vst.msk [vmem:[#allocation2 + $0x108] sm:$0xff] %vm3001, 0.0
        %3011 = vst.msk [vmem:[#allocation2 + $0x128] sm:$0xff] %vm3001, 0.0
        %3012 = vst.msk [vmem:[#allocation2 + $0x148] sm:$0xff] %vm3001, 0.0
        %3013 = vst.msk [vmem:[#allocation2 + $0x168] sm:$0xff] %vm3001, 0.0
        %3014 = vst.msk [vmem:[#allocation2 + $0x188] sm:$0xff] %vm3001, 0.0
        %3015 = vst.msk [vmem:[#allocation2 + $0x1a8] sm:$0xff] %vm3001, 0.0
        %3016 = vst.msk [vmem:[#allocation2 + $0x1c8] sm:$0xff] %vm3001, 0.0
        %3017 = vst.msk [vmem:[#allocation2 + $0x1e8] sm:$0xff] %vm3001, 0.0
      $region56: #{spade_forward.1} parent=51 // pred_fallthru
        _
      %p3018 = scmp.eq.s32.totalorder %s24, 1
      // Predicated region
      $region57: #{spade_forward.1} parent=51 // pred_check
        %p3019 = pneg %p3018
      $region58: #{spade_forward.1} parent=51 // pred_check_branch
        %3021 = sbr.rel (%p3019) target = $region60
      $region59: #{spade_forward.1} parent=51 // pred_region
        %vm3022 = vcmask 261248
        %3023 = vst.msk [vmem:[#allocation2 + $0x10] sm:$0xff] %vm3022, 0.0
        %3024 = vst.msk [vmem:[#allocation2 + $0x30] sm:$0xff] %vm3022, 0.0
        %3025 = vst.msk [vmem:[#allocation2 + $0x50] sm:$0xff] %vm3022, 0.0
        %3026 = vst.msk [vmem:[#allocation2 + $0x70] sm:$0xff] %vm3022, 0.0
        %3027 = vst.msk [vmem:[#allocation2 + $0x90] sm:$0xff] %vm3022, 0.0
        %3028 = vst.msk [vmem:[#allocation2 + $0xb0] sm:$0xff] %vm3022, 0.0
        %3029 = vst.msk [vmem:[#allocation2 + $0xd0] sm:$0xff] %vm3022, 0.0
        %3030 = vst.msk [vmem:[#allocation2 + $0xf0] sm:$0xff] %vm3022, 0.0
        %3031 = vst.msk [vmem:[#allocation2 + $0x110] sm:$0xff] %vm3022, 0.0
        %3032 = vst.msk [vmem:[#allocation2 + $0x130] sm:$0xff] %vm3022, 0.0
        %3033 = vst.msk [vmem:[#allocation2 + $0x150] sm:$0xff] %vm3022, 0.0
        %3034 = vst.msk [vmem:[#allocation2 + $0x170] sm:$0xff] %vm3022, 0.0
        %3035 = vst.msk [vmem:[#allocation2 + $0x190] sm:$0xff] %vm3022, 0.0
        %3036 = vst.msk [vmem:[#allocation2 + $0x1b0] sm:$0xff] %vm3022, 0.0
        %3037 = vst.msk [vmem:[#allocation2 + $0x1d0] sm:$0xff] %vm3022, 0.0
        %3038 = vst.msk [vmem:[#allocation2 + $0x1f0] sm:$0xff] %vm3022, 0.0
      $region60: #{spade_forward.1} parent=51 // pred_fallthru
        _
      %v3039 = vld [vmem:[%s6] sm:$0xff]
      %v3040 = vld [vmem:[%s6 + $0x8] sm:$0xff]
      %v3041 = vld [vmem:[#allocation2] sm:$0xff]
      %v3042 = vld [vmem:[#allocation2 + $0x8] sm:$0xff]
      %v3043 = vld [vmem:[#allocation2 + $0x20] sm:$0xff]
      %v3044 = vld [vmem:[#allocation2 + $0x28] sm:$0xff]
      %v3045 = vld [vmem:[#allocation2 + $0x40] sm:$0xff]
      %v3046 = vld [vmem:[#allocation2 + $0x48] sm:$0xff]
      %v3047 = vld [vmem:[#allocation2 + $0x60] sm:$0xff]
      %v3048 = vld [vmem:[#allocation2 + $0x68] sm:$0xff]
      %v3049 = vld [vmem:[#allocation2 + $0x80] sm:$0xff]
      %v3050 = vld [vmem:[#allocation2 + $0x88] sm:$0xff]
      %v3051 = vld [vmem:[#allocation2 + $0xa0] sm:$0xff]
      %v3052 = vld [vmem:[#allocation2 + $0xa8] sm:$0xff]
      %v3053 = vld [vmem:[#allocation2 + $0xc0] sm:$0xff]
      %v3054 = vld [vmem:[#allocation2 + $0xc8] sm:$0xff]
      %v3055 = vld [vmem:[#allocation2 + $0xe0] sm:$0xff]
      %v3056 = vld [vmem:[#allocation2 + $0xe8] sm:$0xff]
      %v3057 = vld [vmem:[#allocation2 + $0x100] sm:$0xff]
      %v3058 = vld [vmem:[#allocation2 + $0x108] sm:$0xff]
      %v3059 = vld [vmem:[#allocation2 + $0x120] sm:$0xff]
      %v3060 = vld [vmem:[#allocation2 + $0x128] sm:$0xff]
      %v3061 = vld [vmem:[#allocation2 + $0x140] sm:$0xff]
      %v3062 = vld [vmem:[#allocation2 + $0x148] sm:$0xff]
      %v3063 = vld [vmem:[#allocation2 + $0x160] sm:$0xff]
      %v3064 = vld [vmem:[#allocation2 + $0x168] sm:$0xff]
      %v3065 = vld [vmem:[#allocation2 + $0x180] sm:$0xff]
      %v3066 = vld [vmem:[#allocation2 + $0x188] sm:$0xff]
      %v3067 = vld [vmem:[#allocation2 + $0x1a0] sm:$0xff]
      %v3068 = vld [vmem:[#allocation2 + $0x1a8] sm:$0xff]
      %v3069 = vld [vmem:[#allocation2 + $0x1c0] sm:$0xff]
      %v3070 = vld [vmem:[#allocation2 + $0x1c8] sm:$0xff]
      %v3071 = vld [vmem:[#allocation2 + $0x1e0] sm:$0xff]
      %v3072 = vld [vmem:[#allocation2 + $0x1e8] sm:$0xff]
      %s3073 = scalar_lea.vmem %s6, 48
      %v3074 = vld [vmem:[%s3073] sm:$0xff]
      %v3075 = vld [vmem:[%s3073 + $0x8] sm:$0xff]
      %v3076 = vld [vmem:[#allocation2 + $0x10] sm:$0xff]
      %v3077 = vld [vmem:[#allocation2 + $0x30] sm:$0xff]
      %v3078 = vld [vmem:[#allocation2 + $0x50] sm:$0xff]
      %v3079 = vld [vmem:[#allocation2 + $0x70] sm:$0xff]
      %v3080 = vld [vmem:[#allocation2 + $0x90] sm:$0xff]
      %v3081 = vld [vmem:[#allocation2 + $0xb0] sm:$0xff]
      %v3082 = vld [vmem:[#allocation2 + $0xd0] sm:$0xff]
      %v3083 = vld [vmem:[#allocation2 + $0xf0] sm:$0xff]
      %v3084 = vld [vmem:[#allocation2 + $0x110] sm:$0xff]
      %v3085 = vld [vmem:[#allocation2 + $0x130] sm:$0xff]
      %v3086 = vld [vmem:[#allocation2 + $0x150] sm:$0xff]
      %v3087 = vld [vmem:[#allocation2 + $0x170] sm:$0xff]
      %v3088 = vld [vmem:[#allocation2 + $0x190] sm:$0xff]
      %v3089 = vld [vmem:[#allocation2 + $0x1b0] sm:$0xff]
      %v3090 = vld [vmem:[#allocation2 + $0x1d0] sm:$0xff]
      %v3091 = vld [vmem:[#allocation2 + $0x1f0] sm:$0xff]
      %3124 = vrot.lane.b32.xlu0 %v3042, 113
      %v3125 = vpop.permute.xlu0 %3124
      %3126 = vrot.lane.b32.xlu0 %v3076, 113
      %v3127 = vpop.permute.xlu0 %3126
      %3128 = vrot.lane.b32.xlu0 %v3044, 113
      %v3129 = vpop.permute.xlu0 %3128
      %3130 = vrot.lane.b32.xlu0 %v3077, 113
      %v3131 = vpop.permute.xlu0 %3130
      %3132 = vrot.lane.b32.xlu0 %v3046, 113
      %v3133 = vpop.permute.xlu0 %3132
      %3134 = vrot.lane.b32.xlu0 %v3078, 113
      %v3135 = vpop.permute.xlu0 %3134
      %3136 = vrot.lane.b32.xlu0 %v3048, 113
      %v3137 = vpop.permute.xlu0 %3136
      %3138 = vrot.lane.b32.xlu0 %v3079, 113
      %v3139 = vpop.permute.xlu0 %3138
      %3140 = vrot.lane.b32.xlu0 %v3050, 113
      %v3141 = vpop.permute.xlu0 %3140
      %3142 = vrot.lane.b32.xlu0 %v3080, 113
      %v3143 = vpop.permute.xlu0 %3142
      %3144 = vrot.lane.b32.xlu0 %v3052, 113
      %v3145 = vpop.permute.xlu0 %3144
      %3146 = vrot.lane.b32.xlu0 %v3081, 113
      %v3147 = vpop.permute.xlu0 %3146
      %3148 = vrot.lane.b32.xlu0 %v3054, 113
      %v3149 = vpop.permute.xlu0 %3148
      %3150 = vrot.lane.b32.xlu0 %v3082, 113
      %v3151 = vpop.permute.xlu0 %3150
      %3152 = vrot.lane.b32.xlu0 %v3056, 113
      %v3153 = vpop.permute.xlu0 %3152
      %3154 = vrot.lane.b32.xlu0 %v3083, 113
      %v3155 = vpop.permute.xlu0 %3154
      %3156 = vrot.lane.b32.xlu0 %v3058, 113
      %v3157 = vpop.permute.xlu0 %3156
      %3158 = vrot.lane.b32.xlu0 %v3084, 113
      %v3159 = vpop.permute.xlu0 %3158
      %3160 = vrot.lane.b32.xlu0 %v3060, 113
      %v3161 = vpop.permute.xlu0 %3160
      %3162 = vrot.lane.b32.xlu0 %v3085, 113
      %v3163 = vpop.permute.xlu0 %3162
      %3164 = vrot.lane.b32.xlu0 %v3062, 113
      %v3165 = vpop.permute.xlu0 %3164
      %3166 = vrot.lane.b32.xlu0 %v3086, 113
      %v3167 = vpop.permute.xlu0 %3166
      %3168 = vrot.lane.b32.xlu0 %v3064, 113
      %v3169 = vpop.permute.xlu0 %3168
      %3170 = vrot.lane.b32.xlu0 %v3087, 113
      %v3171 = vpop.permute.xlu0 %3170
      %3172 = vrot.lane.b32.xlu0 %v3066, 113
      %v3173 = vpop.permute.xlu0 %3172
      %3174 = vrot.lane.b32.xlu0 %v3088, 113
      %v3175 = vpop.permute.xlu0 %3174
      %3176 = vrot.lane.b32.xlu0 %v3068, 113
      %v3177 = vpop.permute.xlu0 %3176
      %3178 = vrot.lane.b32.xlu0 %v3089, 113
      %v3179 = vpop.permute.xlu0 %3178
      %3180 = vrot.lane.b32.xlu0 %v3070, 113
      %v3181 = vpop.permute.xlu0 %3180
      %3182 = vrot.lane.b32.xlu0 %v3090, 113
      %v3183 = vpop.permute.xlu0 %3182
      %3184 = vrot.lane.b32.xlu0 %v3072, 113
      %v3185 = vpop.permute.xlu0 %3184
      %3186 = vrot.lane.b32.xlu0 %v3091, 113
      %v3187 = vpop.permute.xlu0 %3186
      %vm3188 = vcmask 924672
      %v3189 = vsel %vm3188, %v3125, %v3127
      %v3190 = vsel %vm3188, %v3129, %v3131
      %v3191 = vsel %vm3188, %v3133, %v3135
      %v3192 = vsel %vm3188, %v3137, %v3139
      %v3193 = vsel %vm3188, %v3141, %v3143
      %v3194 = vsel %vm3188, %v3145, %v3147
      %v3195 = vsel %vm3188, %v3149, %v3151
      %v3196 = vsel %vm3188, %v3153, %v3155
      %v3197 = vsel %vm3188, %v3157, %v3159
      %v3198 = vsel %vm3188, %v3161, %v3163
      %v3199 = vsel %vm3188, %v3165, %v3167
      %v3200 = vsel %vm3188, %v3169, %v3171
      %v3201 = vsel %vm3188, %v3173, %v3175
      %v3202 = vsel %vm3188, %v3177, %v3179
      %v3203 = vsel %vm3188, %v3181, %v3183
      %v3204 = vsel %vm3188, %v3185, %v3187
      %3221 = vmatprep.subr.mxu0 0.0
      %3222 = vmatpush1.msra.mxu0 %v3204
      %3223 = vmatprep.subr.mxu0 0.0
      %3224 = vmatpush1.msra.mxu0 %v3203
      %3225 = vmatprep.subr.mxu0 0.0
      %3226 = vmatpush1.msra.mxu0 %v3202
      %3227 = vmatprep.subr.mxu0 0.0
      %3228 = vmatpush1.msra.mxu0 %v3201
      %3229 = vmatprep.subr.mxu0 0.0
      %3230 = vmatpush1.msra.mxu0 %v3200
      %3231 = vmatprep.subr.mxu0 0.0
      %3232 = vmatpush1.msra.mxu0 %v3199
      %3233 = vmatprep.subr.mxu0 0.0
      %3234 = vmatpush1.msra.mxu0 %v3198
      %3235 = vmatprep.subr.mxu0 0.0
      %3236 = vmatpush1.msra.mxu0 %v3197
      %3237 = vmatprep.subr.mxu0 0.0
      %3238 = vmatpush1.msra.mxu0 %v3196
      %3239 = vmatprep.subr.mxu0 0.0
      %3240 = vmatpush1.msra.mxu0 %v3195
      %3241 = vmatprep.subr.mxu0 0.0
      %3242 = vmatpush1.msra.mxu0 %v3194
      %3243 = vmatprep.subr.mxu0 0.0
      %3244 = vmatpush1.msra.mxu0 %v3193
      %3245 = vmatprep.subr.mxu0 0.0
      %3246 = vmatpush1.msra.mxu0 %v3192
      %3247 = vmatprep.subr.mxu0 0.0
      %3248 = vmatpush1.msra.mxu0 %v3191
      %3249 = vmatprep.subr.mxu0 0.0
      %3250 = vmatpush1.msra.mxu0 %v3190
      %3251 = vmatprep.subr.mxu0 0.0
      %3252 = vmatpush1.msra.mxu0 %v3189
      %3253 = vmatprep.subr.mxu0 0.0
      %3254 = vmatpush2.msra.mxu0 0.0
      %3255 = vmatprep.subr.mxu0 0.0
      %3256 = vmatpush2.msra.mxu0 0.0
      %3257 = vmatprep.subr.mxu0 0.0
      %3258 = vmatpush2.msra.mxu0 0.0
      %3259 = vmatprep.subr.mxu0 0.0
      %3260 = vmatpush2.msra.mxu0 0.0
      %3261 = vmatprep.subr.mxu0 0.0
      %3262 = vmatpush2.msra.mxu0 0.0
      %3263 = vmatprep.subr.mxu0 0.0
      %3264 = vmatpush2.msra.mxu0 0.0
      %3265 = vmatprep.subr.mxu0 0.0
      %3266 = vmatpush2.msra.mxu0 0.0
      %3267 = vmatprep.subr.mxu0 0.0
      %3268 = vmatpush2.msra.mxu0 0.0
      %3269 = vmatprep.subr.mxu0 0.0
      %3270 = vmatpush2.msra.mxu0 0.0
      %3271 = vmatprep.subr.mxu0 0.0
      %3272 = vmatpush2.msra.mxu0 0.0
      %3273 = vmatprep.subr.mxu0 0.0
      %3274 = vmatpush2.msra.mxu0 0.0
      %3275 = vmatprep.subr.mxu0 0.0
      %3276 = vmatpush2.msra.mxu0 0.0
      %3277 = vmatprep.subr.mxu0 0.0
      %3278 = vmatpush2.msra.mxu0 0.0
      %3279 = vmatprep.subr.mxu0 0.0
      %3280 = vmatpush2.msra.mxu0 0.0
      %3281 = vmatprep.subr.mxu0 0.0
      %3282 = vmatpush2.msra.mxu0 0.0
      %3283 = vmatprep.subr.mxu0 0.0
      %3284 = vmatpush2.msra.mxu0 0.0
      %3285 = vmatprep.mubr.f32.mxu0 0.0
      %3286 = vmatmul.mubr.f32.gmra.mxu0 %v3074
      %v3287 = vpop.f32.mrf.mxu0
      %v3288 = vadd.f32 0.0, %v3287
      %v3289 = vpop.f32.mrf.mxu0
      %3290 = vmatprep.mubr.f32.mxu0 0.0
      %3291 = vmatmul.mubr.f32.gmra.mxu0 %v3075
      %v3292 = vpop.f32.mrf.mxu0
      %v3293 = vadd.f32 0.0, %v3292
      %v3294 = vpop.f32.mrf.mxu0
      %3295 = vdwg.mxu0
      %3312 = vrot.lane.b32.xlu0 %v3041, 1
      %v3313 = vpop.permute.xlu0 %3312
      %3314 = vrot.lane.b32.xlu0 %v3042, 1
      %v3315 = vpop.permute.xlu0 %3314
      %3316 = vrot.lane.b32.xlu0 %v3043, 1
      %v3317 = vpop.permute.xlu0 %3316
      %3318 = vrot.lane.b32.xlu0 %v3044, 1
      %v3319 = vpop.permute.xlu0 %3318
      %3320 = vrot.lane.b32.xlu0 %v3045, 1
      %v3321 = vpop.permute.xlu0 %3320
      %3322 = vrot.lane.b32.xlu0 %v3046, 1
      %v3323 = vpop.permute.xlu0 %3322
      %3324 = vrot.lane.b32.xlu0 %v3047, 1
      %v3325 = vpop.permute.xlu0 %3324
      %3326 = vrot.lane.b32.xlu0 %v3048, 1
      %v3327 = vpop.permute.xlu0 %3326
      %3328 = vrot.lane.b32.xlu0 %v3049, 1
      %v3329 = vpop.permute.xlu0 %3328
      %3330 = vrot.lane.b32.xlu0 %v3050, 1
      %v3331 = vpop.permute.xlu0 %3330
      %3332 = vrot.lane.b32.xlu0 %v3051, 1
      %v3333 = vpop.permute.xlu0 %3332
      %3334 = vrot.lane.b32.xlu0 %v3052, 1
      %v3335 = vpop.permute.xlu0 %3334
      %3336 = vrot.lane.b32.xlu0 %v3053, 1
      %v3337 = vpop.permute.xlu0 %3336
      %3338 = vrot.lane.b32.xlu0 %v3054, 1
      %v3339 = vpop.permute.xlu0 %3338
      %3340 = vrot.lane.b32.xlu0 %v3055, 1
      %v3341 = vpop.permute.xlu0 %3340
      %3342 = vrot.lane.b32.xlu0 %v3056, 1
      %v3343 = vpop.permute.xlu0 %3342
      %3344 = vrot.lane.b32.xlu0 %v3057, 1
      %v3345 = vpop.permute.xlu0 %3344
      %3346 = vrot.lane.b32.xlu0 %v3058, 1
      %v3347 = vpop.permute.xlu0 %3346
      %3348 = vrot.lane.b32.xlu0 %v3059, 1
      %v3349 = vpop.permute.xlu0 %3348
      %3350 = vrot.lane.b32.xlu0 %v3060, 1
      %v3351 = vpop.permute.xlu0 %3350
      %3352 = vrot.lane.b32.xlu0 %v3061, 1
      %v3353 = vpop.permute.xlu0 %3352
      %3354 = vrot.lane.b32.xlu0 %v3062, 1
      %v3355 = vpop.permute.xlu0 %3354
      %3356 = vrot.lane.b32.xlu0 %v3063, 1
      %v3357 = vpop.permute.xlu0 %3356
      %3358 = vrot.lane.b32.xlu0 %v3064, 1
      %v3359 = vpop.permute.xlu0 %3358
      %3360 = vrot.lane.b32.xlu0 %v3065, 1
      %v3361 = vpop.permute.xlu0 %3360
      %3362 = vrot.lane.b32.xlu0 %v3066, 1
      %v3363 = vpop.permute.xlu0 %3362
      %3364 = vrot.lane.b32.xlu0 %v3067, 1
      %v3365 = vpop.permute.xlu0 %3364
      %3366 = vrot.lane.b32.xlu0 %v3068, 1
      %v3367 = vpop.permute.xlu0 %3366
      %3368 = vrot.lane.b32.xlu0 %v3069, 1
      %v3369 = vpop.permute.xlu0 %3368
      %3370 = vrot.lane.b32.xlu0 %v3070, 1
      %v3371 = vpop.permute.xlu0 %3370
      %3372 = vrot.lane.b32.xlu0 %v3071, 1
      %v3373 = vpop.permute.xlu0 %3372
      %3374 = vrot.lane.b32.xlu0 %v3072, 1
      %v3375 = vpop.permute.xlu0 %3374
      %vm3376 = vcmask 7168
      %v3377 = vsel %vm3376, %v3313, %v3315
      %v3378 = vsel %vm3376, %v3317, %v3319
      %v3379 = vsel %vm3376, %v3321, %v3323
      %v3380 = vsel %vm3376, %v3325, %v3327
      %v3381 = vsel %vm3376, %v3329, %v3331
      %v3382 = vsel %vm3376, %v3333, %v3335
      %v3383 = vsel %vm3376, %v3337, %v3339
      %v3384 = vsel %vm3376, %v3341, %v3343
      %v3385 = vsel %vm3376, %v3345, %v3347
      %v3386 = vsel %vm3376, %v3349, %v3351
      %v3387 = vsel %vm3376, %v3353, %v3355
      %v3388 = vsel %vm3376, %v3357, %v3359
      %v3389 = vsel %vm3376, %v3361, %v3363
      %v3390 = vsel %vm3376, %v3365, %v3367
      %v3391 = vsel %vm3376, %v3369, %v3371
      %v3392 = vsel %vm3376, %v3373, %v3375
      %3409 = vmatprep.subr.mxu0 0.0
      %3410 = vmatpush1.msra.mxu0 %v3392
      %3411 = vmatprep.subr.mxu0 0.0
      %3412 = vmatpush1.msra.mxu0 %v3391
      %3413 = vmatprep.subr.mxu0 0.0
      %3414 = vmatpush1.msra.mxu0 %v3390
      %3415 = vmatprep.subr.mxu0 0.0
      %3416 = vmatpush1.msra.mxu0 %v3389
      %3417 = vmatprep.subr.mxu0 0.0
      %3418 = vmatpush1.msra.mxu0 %v3388
      %3419 = vmatprep.subr.mxu0 0.0
      %3420 = vmatpush1.msra.mxu0 %v3387
      %3421 = vmatprep.subr.mxu0 0.0
      %3422 = vmatpush1.msra.mxu0 %v3386
      %3423 = vmatprep.subr.mxu0 0.0
      %3424 = vmatpush1.msra.mxu0 %v3385
      %3425 = vmatprep.subr.mxu0 0.0
      %3426 = vmatpush1.msra.mxu0 %v3384
      %3427 = vmatprep.subr.mxu0 0.0
      %3428 = vmatpush1.msra.mxu0 %v3383
      %3429 = vmatprep.subr.mxu0 0.0
      %3430 = vmatpush1.msra.mxu0 %v3382
      %3431 = vmatprep.subr.mxu0 0.0
      %3432 = vmatpush1.msra.mxu0 %v3381
      %3433 = vmatprep.subr.mxu0 0.0
      %3434 = vmatpush1.msra.mxu0 %v3380
      %3435 = vmatprep.subr.mxu0 0.0
      %3436 = vmatpush1.msra.mxu0 %v3379
      %3437 = vmatprep.subr.mxu0 0.0
      %3438 = vmatpush1.msra.mxu0 %v3378
      %3439 = vmatprep.subr.mxu0 0.0
      %3440 = vmatpush1.msra.mxu0 %v3377
      %3441 = vmatprep.subr.mxu0 0.0
      %3442 = vmatpush2.msra.mxu0 0.0
      %3443 = vmatprep.subr.mxu0 0.0
      %3444 = vmatpush2.msra.mxu0 0.0
      %3445 = vmatprep.subr.mxu0 0.0
      %3446 = vmatpush2.msra.mxu0 0.0
      %3447 = vmatprep.subr.mxu0 0.0
      %3448 = vmatpush2.msra.mxu0 0.0
      %3449 = vmatprep.subr.mxu0 0.0
      %3450 = vmatpush2.msra.mxu0 0.0
      %3451 = vmatprep.subr.mxu0 0.0
      %3452 = vmatpush2.msra.mxu0 0.0
      %3453 = vmatprep.subr.mxu0 0.0
      %3454 = vmatpush2.msra.mxu0 0.0
      %3455 = vmatprep.subr.mxu0 0.0
      %3456 = vmatpush2.msra.mxu0 0.0
      %3457 = vmatprep.subr.mxu0 0.0
      %3458 = vmatpush2.msra.mxu0 0.0
      %3459 = vmatprep.subr.mxu0 0.0
      %3460 = vmatpush2.msra.mxu0 0.0
      %3461 = vmatprep.subr.mxu0 0.0
      %3462 = vmatpush2.msra.mxu0 0.0
      %3463 = vmatprep.subr.mxu0 0.0
      %3464 = vmatpush2.msra.mxu0 0.0
      %3465 = vmatprep.subr.mxu0 0.0
      %3466 = vmatpush2.msra.mxu0 0.0
      %3467 = vmatprep.subr.mxu0 0.0
      %3468 = vmatpush2.msra.mxu0 0.0
      %3469 = vmatprep.subr.mxu0 0.0
      %3470 = vmatpush2.msra.mxu0 0.0
      %3471 = vmatprep.subr.mxu0 0.0
      %3472 = vmatpush2.msra.mxu0 0.0
      %3473 = vmatprep.mubr.f32.mxu0 0.0
      %3474 = vmatmul.mubr.f32.gmra.mxu0 %v3039
      %v3475 = vpop.f32.mrf.mxu0
      %v3476 = vadd.f32 %v3288, %v3475
      %v3477 = vpop.f32.mrf.mxu0
      %3478 = vmatprep.mubr.f32.mxu0 0.0
      %3479 = vmatmul.mubr.f32.gmra.mxu0 %v3040
      %v3480 = vpop.f32.mrf.mxu0
      %v3481 = vadd.f32 %v3293, %v3480
      %v3482 = vpop.f32.mrf.mxu0
      %3483 = vdwg.mxu0
      %s3484 = scalar_lea.vmem %s6, 96
      %v3485 = vld [vmem:[%s3484] sm:$0xff]
      %v3486 = vld [vmem:[%s3484 + $0x8] sm:$0xff]
      %3487 = vrot.lane.b32.xlu0 %v3042, 97
      %v3488 = vpop.permute.xlu0 %3487
      %3489 = vrot.lane.b32.xlu0 %v3076, 97
      %v3490 = vpop.permute.xlu0 %3489
      %3491 = vrot.lane.b32.xlu0 %v3044, 97
      %v3492 = vpop.permute.xlu0 %3491
      %3493 = vrot.lane.b32.xlu0 %v3077, 97
      %v3494 = vpop.permute.xlu0 %3493
      %3495 = vrot.lane.b32.xlu0 %v3046, 97
      %v3496 = vpop.permute.xlu0 %3495
      %3497 = vrot.lane.b32.xlu0 %v3078, 97
      %v3498 = vpop.permute.xlu0 %3497
      %3499 = vrot.lane.b32.xlu0 %v3048, 97
      %v3500 = vpop.permute.xlu0 %3499
      %3501 = vrot.lane.b32.xlu0 %v3079, 97
      %v3502 = vpop.permute.xlu0 %3501
      %3503 = vrot.lane.b32.xlu0 %v3050, 97
      %v3504 = vpop.permute.xlu0 %3503
      %3505 = vrot.lane.b32.xlu0 %v3080, 97
      %v3506 = vpop.permute.xlu0 %3505
      %3507 = vrot.lane.b32.xlu0 %v3052, 97
      %v3508 = vpop.permute.xlu0 %3507
      %3509 = vrot.lane.b32.xlu0 %v3081, 97
      %v3510 = vpop.permute.xlu0 %3509
      %3511 = vrot.lane.b32.xlu0 %v3054, 97
      %v3512 = vpop.permute.xlu0 %3511
      %3513 = vrot.lane.b32.xlu0 %v3082, 97
      %v3514 = vpop.permute.xlu0 %3513
      %3515 = vrot.lane.b32.xlu0 %v3056, 97
      %v3516 = vpop.permute.xlu0 %3515
      %3517 = vrot.lane.b32.xlu0 %v3083, 97
      %v3518 = vpop.permute.xlu0 %3517
      %3519 = vrot.lane.b32.xlu0 %v3058, 97
      %v3520 = vpop.permute.xlu0 %3519
      %3521 = vrot.lane.b32.xlu0 %v3084, 97
      %v3522 = vpop.permute.xlu0 %3521
      %3523 = vrot.lane.b32.xlu0 %v3060, 97
      %v3524 = vpop.permute.xlu0 %3523
      %3525 = vrot.lane.b32.xlu0 %v3085, 97
      %v3526 = vpop.permute.xlu0 %3525
      %3527 = vrot.lane.b32.xlu0 %v3062, 97
      %v3528 = vpop.permute.xlu0 %3527
      %3529 = vrot.lane.b32.xlu0 %v3086, 97
      %v3530 = vpop.permute.xlu0 %3529
      %3531 = vrot.lane.b32.xlu0 %v3064, 97
      %v3532 = vpop.permute.xlu0 %3531
      %3533 = vrot.lane.b32.xlu0 %v3087, 97
      %v3534 = vpop.permute.xlu0 %3533
      %3535 = vrot.lane.b32.xlu0 %v3066, 97
      %v3536 = vpop.permute.xlu0 %3535
      %3537 = vrot.lane.b32.xlu0 %v3088, 97
      %v3538 = vpop.permute.xlu0 %3537
      %3539 = vrot.lane.b32.xlu0 %v3068, 97
      %v3540 = vpop.permute.xlu0 %3539
      %3541 = vrot.lane.b32.xlu0 %v3089, 97
      %v3542 = vpop.permute.xlu0 %3541
      %3543 = vrot.lane.b32.xlu0 %v3070, 97
      %v3544 = vpop.permute.xlu0 %3543
      %3545 = vrot.lane.b32.xlu0 %v3090, 97
      %v3546 = vpop.permute.xlu0 %3545
      %3547 = vrot.lane.b32.xlu0 %v3072, 97
      %v3548 = vpop.permute.xlu0 %3547
      %3549 = vrot.lane.b32.xlu0 %v3091, 97
      %v3550 = vpop.permute.xlu0 %3549
      %vm3551 = vcmask 793600
      %v3552 = vsel %vm3551, %v3488, %v3490
      %v3553 = vsel %vm3551, %v3492, %v3494
      %v3554 = vsel %vm3551, %v3496, %v3498
      %v3555 = vsel %vm3551, %v3500, %v3502
      %v3556 = vsel %vm3551, %v3504, %v3506
      %v3557 = vsel %vm3551, %v3508, %v3510
      %v3558 = vsel %vm3551, %v3512, %v3514
      %v3559 = vsel %vm3551, %v3516, %v3518
      %v3560 = vsel %vm3551, %v3520, %v3522
      %v3561 = vsel %vm3551, %v3524, %v3526
      %v3562 = vsel %vm3551, %v3528, %v3530
      %v3563 = vsel %vm3551, %v3532, %v3534
      %v3564 = vsel %vm3551, %v3536, %v3538
      %v3565 = vsel %vm3551, %v3540, %v3542
      %v3566 = vsel %vm3551, %v3544, %v3546
      %v3567 = vsel %vm3551, %v3548, %v3550
      %3584 = vmatprep.subr.mxu0 0.0
      %3585 = vmatpush1.msra.mxu0 %v3567
      %3586 = vmatprep.subr.mxu0 0.0
      %3587 = vmatpush1.msra.mxu0 %v3566
      %3588 = vmatprep.subr.mxu0 0.0
      %3589 = vmatpush1.msra.mxu0 %v3565
      %3590 = vmatprep.subr.mxu0 0.0
      %3591 = vmatpush1.msra.mxu0 %v3564
      %3592 = vmatprep.subr.mxu0 0.0
      %3593 = vmatpush1.msra.mxu0 %v3563
      %3594 = vmatprep.subr.mxu0 0.0
      %3595 = vmatpush1.msra.mxu0 %v3562
      %3596 = vmatprep.subr.mxu0 0.0
      %3597 = vmatpush1.msra.mxu0 %v3561
      %3598 = vmatprep.subr.mxu0 0.0
      %3599 = vmatpush1.msra.mxu0 %v3560
      %3600 = vmatprep.subr.mxu0 0.0
      %3601 = vmatpush1.msra.mxu0 %v3559
      %3602 = vmatprep.subr.mxu0 0.0
      %3603 = vmatpush1.msra.mxu0 %v3558
      %3604 = vmatprep.subr.mxu0 0.0
      %3605 = vmatpush1.msra.mxu0 %v3557
      %3606 = vmatprep.subr.mxu0 0.0
      %3607 = vmatpush1.msra.mxu0 %v3556
      %3608 = vmatprep.subr.mxu0 0.0
      %3609 = vmatpush1.msra.mxu0 %v3555
      %3610 = vmatprep.subr.mxu0 0.0
      %3611 = vmatpush1.msra.mxu0 %v3554
      %3612 = vmatprep.subr.mxu0 0.0
      %3613 = vmatpush1.msra.mxu0 %v3553
      %3614 = vmatprep.subr.mxu0 0.0
      %3615 = vmatpush1.msra.mxu0 %v3552
      %3616 = vmatprep.subr.mxu0 0.0
      %3617 = vmatpush2.msra.mxu0 0.0
      %3618 = vmatprep.subr.mxu0 0.0
      %3619 = vmatpush2.msra.mxu0 0.0
      %3620 = vmatprep.subr.mxu0 0.0
      %3621 = vmatpush2.msra.mxu0 0.0
      %3622 = vmatprep.subr.mxu0 0.0
      %3623 = vmatpush2.msra.mxu0 0.0
      %3624 = vmatprep.subr.mxu0 0.0
      %3625 = vmatpush2.msra.mxu0 0.0
      %3626 = vmatprep.subr.mxu0 0.0
      %3627 = vmatpush2.msra.mxu0 0.0
      %3628 = vmatprep.subr.mxu0 0.0
      %3629 = vmatpush2.msra.mxu0 0.0
      %3630 = vmatprep.subr.mxu0 0.0
      %3631 = vmatpush2.msra.mxu0 0.0
      %3632 = vmatprep.subr.mxu0 0.0
      %3633 = vmatpush2.msra.mxu0 0.0
      %3634 = vmatprep.subr.mxu0 0.0
      %3635 = vmatpush2.msra.mxu0 0.0
      %3636 = vmatprep.subr.mxu0 0.0
      %3637 = vmatpush2.msra.mxu0 0.0
      %3638 = vmatprep.subr.mxu0 0.0
      %3639 = vmatpush2.msra.mxu0 0.0
      %3640 = vmatprep.subr.mxu0 0.0
      %3641 = vmatpush2.msra.mxu0 0.0
      %3642 = vmatprep.subr.mxu0 0.0
      %3643 = vmatpush2.msra.mxu0 0.0
      %3644 = vmatprep.subr.mxu0 0.0
      %3645 = vmatpush2.msra.mxu0 0.0
      %3646 = vmatprep.subr.mxu0 0.0
      %3647 = vmatpush2.msra.mxu0 0.0
      %3648 = vmatprep.mubr.f32.mxu0 0.0
      %3649 = vmatmul.mubr.f32.gmra.mxu0 %v3485
      %v3650 = vpop.f32.mrf.mxu0
      %v3651 = vadd.f32 0.0, %v3650
      %v3652 = vpop.f32.mrf.mxu0
      %3653 = vmatprep.mubr.f32.mxu0 0.0
      %3654 = vmatmul.mubr.f32.gmra.mxu0 %v3486
      %v3655 = vpop.f32.mrf.mxu0
      %v3656 = vadd.f32 0.0, %v3655
      %v3657 = vpop.f32.mrf.mxu0
      %3658 = vdwg.mxu0
      %v3659 = vadd.f32 %v3476, %v3651
      %v3660 = vadd.f32 %v3481, %v3656
      %v3661 = vsel %vm1166, %v3659, 0.0
      %v3662 = vsel %vm1166, %v3660, 0.0
      %s3663 = scalar_lea.vmem %s6, 16
      %v3664 = vld [vmem:[%s3663] sm:$0xff]
      %v3665 = vld [vmem:[%s3663 + $0x8] sm:$0xff]
      %s3666 = scalar_lea.vmem %s6, 64
      %v3667 = vld [vmem:[%s3666] sm:$0xff]
      %v3668 = vld [vmem:[%s3666 + $0x8] sm:$0xff]
      %3669 = vrot.lane.b32.xlu0 %v3042, 112
      %v3670 = vpop.permute.xlu0 %3669
      %3671 = vrot.lane.b32.xlu0 %v3076, 112
      %v3672 = vpop.permute.xlu0 %3671
      %3673 = vrot.lane.b32.xlu0 %v3044, 112
      %v3674 = vpop.permute.xlu0 %3673
      %3675 = vrot.lane.b32.xlu0 %v3077, 112
      %v3676 = vpop.permute.xlu0 %3675
      %3677 = vrot.lane.b32.xlu0 %v3046, 112
      %v3678 = vpop.permute.xlu0 %3677
      %3679 = vrot.lane.b32.xlu0 %v3078, 112
      %v3680 = vpop.permute.xlu0 %3679
      %3681 = vrot.lane.b32.xlu0 %v3048, 112
      %v3682 = vpop.permute.xlu0 %3681
      %3683 = vrot.lane.b32.xlu0 %v3079, 112
      %v3684 = vpop.permute.xlu0 %3683
      %3685 = vrot.lane.b32.xlu0 %v3050, 112
      %v3686 = vpop.permute.xlu0 %3685
      %3687 = vrot.lane.b32.xlu0 %v3080, 112
      %v3688 = vpop.permute.xlu0 %3687
      %3689 = vrot.lane.b32.xlu0 %v3052, 112
      %v3690 = vpop.permute.xlu0 %3689
      %3691 = vrot.lane.b32.xlu0 %v3081, 112
      %v3692 = vpop.permute.xlu0 %3691
      %3693 = vrot.lane.b32.xlu0 %v3054, 112
      %v3694 = vpop.permute.xlu0 %3693
      %3695 = vrot.lane.b32.xlu0 %v3082, 112
      %v3696 = vpop.permute.xlu0 %3695
      %3697 = vrot.lane.b32.xlu0 %v3056, 112
      %v3698 = vpop.permute.xlu0 %3697
      %3699 = vrot.lane.b32.xlu0 %v3083, 112
      %v3700 = vpop.permute.xlu0 %3699
      %3701 = vrot.lane.b32.xlu0 %v3058, 112
      %v3702 = vpop.permute.xlu0 %3701
      %3703 = vrot.lane.b32.xlu0 %v3084, 112
      %v3704 = vpop.permute.xlu0 %3703
      %3705 = vrot.lane.b32.xlu0 %v3060, 112
      %v3706 = vpop.permute.xlu0 %3705
      %3707 = vrot.lane.b32.xlu0 %v3085, 112
      %v3708 = vpop.permute.xlu0 %3707
      %3709 = vrot.lane.b32.xlu0 %v3062, 112
      %v3710 = vpop.permute.xlu0 %3709
      %3711 = vrot.lane.b32.xlu0 %v3086, 112
      %v3712 = vpop.permute.xlu0 %3711
      %3713 = vrot.lane.b32.xlu0 %v3064, 112
      %v3714 = vpop.permute.xlu0 %3713
      %3715 = vrot.lane.b32.xlu0 %v3087, 112
      %v3716 = vpop.permute.xlu0 %3715
      %3717 = vrot.lane.b32.xlu0 %v3066, 112
      %v3718 = vpop.permute.xlu0 %3717
      %3719 = vrot.lane.b32.xlu0 %v3088, 112
      %v3720 = vpop.permute.xlu0 %3719
      %3721 = vrot.lane.b32.xlu0 %v3068, 112
      %v3722 = vpop.permute.xlu0 %3721
      %3723 = vrot.lane.b32.xlu0 %v3089, 112
      %v3724 = vpop.permute.xlu0 %3723
      %3725 = vrot.lane.b32.xlu0 %v3070, 112
      %v3726 = vpop.permute.xlu0 %3725
      %3727 = vrot.lane.b32.xlu0 %v3090, 112
      %v3728 = vpop.permute.xlu0 %3727
      %3729 = vrot.lane.b32.xlu0 %v3072, 112
      %v3730 = vpop.permute.xlu0 %3729
      %3731 = vrot.lane.b32.xlu0 %v3091, 112
      %v3732 = vpop.permute.xlu0 %3731
      %v3733 = vsel %vm473, %v3670, %v3672
      %v3734 = vsel %vm473, %v3674, %v3676
      %v3735 = vsel %vm473, %v3678, %v3680
      %v3736 = vsel %vm473, %v3682, %v3684
      %v3737 = vsel %vm473, %v3686, %v3688
      %v3738 = vsel %vm473, %v3690, %v3692
      %v3739 = vsel %vm473, %v3694, %v3696
      %v3740 = vsel %vm473, %v3698, %v3700
      %v3741 = vsel %vm473, %v3702, %v3704
      %v3742 = vsel %vm473, %v3706, %v3708
      %v3743 = vsel %vm473, %v3710, %v3712
      %v3744 = vsel %vm473, %v3714, %v3716
      %v3745 = vsel %vm473, %v3718, %v3720
      %v3746 = vsel %vm473, %v3722, %v3724
      %v3747 = vsel %vm473, %v3726, %v3728
      %v3748 = vsel %vm473, %v3730, %v3732
      %3765 = vmatprep.subr.mxu0 0.0
      %3766 = vmatpush1.msra.mxu0 %v3748
      %3767 = vmatprep.subr.mxu0 0.0
      %3768 = vmatpush1.msra.mxu0 %v3747
      %3769 = vmatprep.subr.mxu0 0.0
      %3770 = vmatpush1.msra.mxu0 %v3746
      %3771 = vmatprep.subr.mxu0 0.0
      %3772 = vmatpush1.msra.mxu0 %v3745
      %3773 = vmatprep.subr.mxu0 0.0
      %3774 = vmatpush1.msra.mxu0 %v3744
      %3775 = vmatprep.subr.mxu0 0.0
      %3776 = vmatpush1.msra.mxu0 %v3743
      %3777 = vmatprep.subr.mxu0 0.0
      %3778 = vmatpush1.msra.mxu0 %v3742
      %3779 = vmatprep.subr.mxu0 0.0
      %3780 = vmatpush1.msra.mxu0 %v3741
      %3781 = vmatprep.subr.mxu0 0.0
      %3782 = vmatpush1.msra.mxu0 %v3740
      %3783 = vmatprep.subr.mxu0 0.0
      %3784 = vmatpush1.msra.mxu0 %v3739
      %3785 = vmatprep.subr.mxu0 0.0
      %3786 = vmatpush1.msra.mxu0 %v3738
      %3787 = vmatprep.subr.mxu0 0.0
      %3788 = vmatpush1.msra.mxu0 %v3737
      %3789 = vmatprep.subr.mxu0 0.0
      %3790 = vmatpush1.msra.mxu0 %v3736
      %3791 = vmatprep.subr.mxu0 0.0
      %3792 = vmatpush1.msra.mxu0 %v3735
      %3793 = vmatprep.subr.mxu0 0.0
      %3794 = vmatpush1.msra.mxu0 %v3734
      %3795 = vmatprep.subr.mxu0 0.0
      %3796 = vmatpush1.msra.mxu0 %v3733
      %3797 = vmatprep.subr.mxu0 0.0
      %3798 = vmatpush2.msra.mxu0 0.0
      %3799 = vmatprep.subr.mxu0 0.0
      %3800 = vmatpush2.msra.mxu0 0.0
      %3801 = vmatprep.subr.mxu0 0.0
      %3802 = vmatpush2.msra.mxu0 0.0
      %3803 = vmatprep.subr.mxu0 0.0
      %3804 = vmatpush2.msra.mxu0 0.0
      %3805 = vmatprep.subr.mxu0 0.0
      %3806 = vmatpush2.msra.mxu0 0.0
      %3807 = vmatprep.subr.mxu0 0.0
      %3808 = vmatpush2.msra.mxu0 0.0
      %3809 = vmatprep.subr.mxu0 0.0
      %3810 = vmatpush2.msra.mxu0 0.0
      %3811 = vmatprep.subr.mxu0 0.0
      %3812 = vmatpush2.msra.mxu0 0.0
      %3813 = vmatprep.subr.mxu0 0.0
      %3814 = vmatpush2.msra.mxu0 0.0
      %3815 = vmatprep.subr.mxu0 0.0
      %3816 = vmatpush2.msra.mxu0 0.0
      %3817 = vmatprep.subr.mxu0 0.0
      %3818 = vmatpush2.msra.mxu0 0.0
      %3819 = vmatprep.subr.mxu0 0.0
      %3820 = vmatpush2.msra.mxu0 0.0
      %3821 = vmatprep.subr.mxu0 0.0
      %3822 = vmatpush2.msra.mxu0 0.0
      %3823 = vmatprep.subr.mxu0 0.0
      %3824 = vmatpush2.msra.mxu0 0.0
      %3825 = vmatprep.subr.mxu0 0.0
      %3826 = vmatpush2.msra.mxu0 0.0
      %3827 = vmatprep.subr.mxu0 0.0
      %3828 = vmatpush2.msra.mxu0 0.0
      %3829 = vmatprep.mubr.f32.mxu0 0.0
      %3830 = vmatmul.mubr.f32.gmra.mxu0 %v3667
      %v3831 = vpop.f32.mrf.mxu0
      %v3832 = vadd.f32 0.0, %v3831
      %v3833 = vpop.f32.mrf.mxu0
      %3834 = vmatprep.mubr.f32.mxu0 0.0
      %3835 = vmatmul.mubr.f32.gmra.mxu0 %v3668
      %v3836 = vpop.f32.mrf.mxu0
      %v3837 = vadd.f32 0.0, %v3836
      %v3838 = vpop.f32.mrf.mxu0
      %3839 = vdwg.mxu0
      %3840 = vmatprep.subr.mxu0 0.0
      %3841 = vmatpush1.msra.mxu0 %v3072
      %3842 = vmatprep.subr.mxu0 0.0
      %3843 = vmatpush1.msra.mxu0 %v3070
      %3844 = vmatprep.subr.mxu0 0.0
      %3845 = vmatpush1.msra.mxu0 %v3068
      %3846 = vmatprep.subr.mxu0 0.0
      %3847 = vmatpush1.msra.mxu0 %v3066
      %3848 = vmatprep.subr.mxu0 0.0
      %3849 = vmatpush1.msra.mxu0 %v3064
      %3850 = vmatprep.subr.mxu0 0.0
      %3851 = vmatpush1.msra.mxu0 %v3062
      %3852 = vmatprep.subr.mxu0 0.0
      %3853 = vmatpush1.msra.mxu0 %v3060
      %3854 = vmatprep.subr.mxu0 0.0
      %3855 = vmatpush1.msra.mxu0 %v3058
      %3856 = vmatprep.subr.mxu0 0.0
      %3857 = vmatpush1.msra.mxu0 %v3056
      %3858 = vmatprep.subr.mxu0 0.0
      %3859 = vmatpush1.msra.mxu0 %v3054
      %3860 = vmatprep.subr.mxu0 0.0
      %3861 = vmatpush1.msra.mxu0 %v3052
      %3862 = vmatprep.subr.mxu0 0.0
      %3863 = vmatpush1.msra.mxu0 %v3050
      %3864 = vmatprep.subr.mxu0 0.0
      %3865 = vmatpush1.msra.mxu0 %v3048
      %3866 = vmatprep.subr.mxu0 0.0
      %3867 = vmatpush1.msra.mxu0 %v3046
      %3868 = vmatprep.subr.mxu0 0.0
      %3869 = vmatpush1.msra.mxu0 %v3044
      %3870 = vmatprep.subr.mxu0 0.0
      %3871 = vmatpush1.msra.mxu0 %v3042
      %3872 = vmatprep.subr.mxu0 0.0
      %3873 = vmatpush2.msra.mxu0 0.0
      %3874 = vmatprep.subr.mxu0 0.0
      %3875 = vmatpush2.msra.mxu0 0.0
      %3876 = vmatprep.subr.mxu0 0.0
      %3877 = vmatpush2.msra.mxu0 0.0
      %3878 = vmatprep.subr.mxu0 0.0
      %3879 = vmatpush2.msra.mxu0 0.0
      %3880 = vmatprep.subr.mxu0 0.0
      %3881 = vmatpush2.msra.mxu0 0.0
      %3882 = vmatprep.subr.mxu0 0.0
      %3883 = vmatpush2.msra.mxu0 0.0
      %3884 = vmatprep.subr.mxu0 0.0
      %3885 = vmatpush2.msra.mxu0 0.0
      %3886 = vmatprep.subr.mxu0 0.0
      %3887 = vmatpush2.msra.mxu0 0.0
      %3888 = vmatprep.subr.mxu0 0.0
      %3889 = vmatpush2.msra.mxu0 0.0
      %3890 = vmatprep.subr.mxu0 0.0
      %3891 = vmatpush2.msra.mxu0 0.0
      %3892 = vmatprep.subr.mxu0 0.0
      %3893 = vmatpush2.msra.mxu0 0.0
      %3894 = vmatprep.subr.mxu0 0.0
      %3895 = vmatpush2.msra.mxu0 0.0
      %3896 = vmatprep.subr.mxu0 0.0
      %3897 = vmatpush2.msra.mxu0 0.0
      %3898 = vmatprep.subr.mxu0 0.0
      %3899 = vmatpush2.msra.mxu0 0.0
      %3900 = vmatprep.subr.mxu0 0.0
      %3901 = vmatpush2.msra.mxu0 0.0
      %3902 = vmatprep.subr.mxu0 0.0
      %3903 = vmatpush2.msra.mxu0 0.0
      %3904 = vmatprep.mubr.f32.mxu0 0.0
      %3905 = vmatmul.mubr.f32.gmra.mxu0 %v3664
      %v3906 = vpop.f32.mrf.mxu0
      %v3907 = vadd.f32 %v3832, %v3906
      %v3908 = vpop.f32.mrf.mxu0
      %3909 = vmatprep.mubr.f32.mxu0 0.0
      %3910 = vmatmul.mubr.f32.gmra.mxu0 %v3665
      %v3911 = vpop.f32.mrf.mxu0
      %v3912 = vadd.f32 %v3837, %v3911
      %v3913 = vpop.f32.mrf.mxu0
      %3914 = vdwg.mxu0
      %s3915 = scalar_lea.vmem %s6, 112
      %v3916 = vld [vmem:[%s3915] sm:$0xff]
      %v3917 = vld [vmem:[%s3915 + $0x8] sm:$0xff]
      %3918 = vrot.lane.b32.xlu0 %v3042, 96
      %v3919 = vpop.permute.xlu0 %3918
      %3920 = vrot.lane.b32.xlu0 %v3076, 96
      %v3921 = vpop.permute.xlu0 %3920
      %3922 = vrot.lane.b32.xlu0 %v3044, 96
      %v3923 = vpop.permute.xlu0 %3922
      %3924 = vrot.lane.b32.xlu0 %v3077, 96
      %v3925 = vpop.permute.xlu0 %3924
      %3926 = vrot.lane.b32.xlu0 %v3046, 96
      %v3927 = vpop.permute.xlu0 %3926
      %3928 = vrot.lane.b32.xlu0 %v3078, 96
      %v3929 = vpop.permute.xlu0 %3928
      %3930 = vrot.lane.b32.xlu0 %v3048, 96
      %v3931 = vpop.permute.xlu0 %3930
      %3932 = vrot.lane.b32.xlu0 %v3079, 96
      %v3933 = vpop.permute.xlu0 %3932
      %3934 = vrot.lane.b32.xlu0 %v3050, 96
      %v3935 = vpop.permute.xlu0 %3934
      %3936 = vrot.lane.b32.xlu0 %v3080, 96
      %v3937 = vpop.permute.xlu0 %3936
      %3938 = vrot.lane.b32.xlu0 %v3052, 96
      %v3939 = vpop.permute.xlu0 %3938
      %3940 = vrot.lane.b32.xlu0 %v3081, 96
      %v3941 = vpop.permute.xlu0 %3940
      %3942 = vrot.lane.b32.xlu0 %v3054, 96
      %v3943 = vpop.permute.xlu0 %3942
      %3944 = vrot.lane.b32.xlu0 %v3082, 96
      %v3945 = vpop.permute.xlu0 %3944
      %3946 = vrot.lane.b32.xlu0 %v3056, 96
      %v3947 = vpop.permute.xlu0 %3946
      %3948 = vrot.lane.b32.xlu0 %v3083, 96
      %v3949 = vpop.permute.xlu0 %3948
      %3950 = vrot.lane.b32.xlu0 %v3058, 96
      %v3951 = vpop.permute.xlu0 %3950
      %3952 = vrot.lane.b32.xlu0 %v3084, 96
      %v3953 = vpop.permute.xlu0 %3952
      %3954 = vrot.lane.b32.xlu0 %v3060, 96
      %v3955 = vpop.permute.xlu0 %3954
      %3956 = vrot.lane.b32.xlu0 %v3085, 96
      %v3957 = vpop.permute.xlu0 %3956
      %3958 = vrot.lane.b32.xlu0 %v3062, 96
      %v3959 = vpop.permute.xlu0 %3958
      %3960 = vrot.lane.b32.xlu0 %v3086, 96
      %v3961 = vpop.permute.xlu0 %3960
      %3962 = vrot.lane.b32.xlu0 %v3064, 96
      %v3963 = vpop.permute.xlu0 %3962
      %3964 = vrot.lane.b32.xlu0 %v3087, 96
      %v3965 = vpop.permute.xlu0 %3964
      %3966 = vrot.lane.b32.xlu0 %v3066, 96
      %v3967 = vpop.permute.xlu0 %3966
      %3968 = vrot.lane.b32.xlu0 %v3088, 96
      %v3969 = vpop.permute.xlu0 %3968
      %3970 = vrot.lane.b32.xlu0 %v3068, 96
      %v3971 = vpop.permute.xlu0 %3970
      %3972 = vrot.lane.b32.xlu0 %v3089, 96
      %v3973 = vpop.permute.xlu0 %3972
      %3974 = vrot.lane.b32.xlu0 %v3070, 96
      %v3975 = vpop.permute.xlu0 %3974
      %3976 = vrot.lane.b32.xlu0 %v3090, 96
      %v3977 = vpop.permute.xlu0 %3976
      %3978 = vrot.lane.b32.xlu0 %v3072, 96
      %v3979 = vpop.permute.xlu0 %3978
      %3980 = vrot.lane.b32.xlu0 %v3091, 96
      %v3981 = vpop.permute.xlu0 %3980
      %v3982 = vsel %vm917, %v3919, %v3921
      %v3983 = vsel %vm917, %v3923, %v3925
      %v3984 = vsel %vm917, %v3927, %v3929
      %v3985 = vsel %vm917, %v3931, %v3933
      %v3986 = vsel %vm917, %v3935, %v3937
      %v3987 = vsel %vm917, %v3939, %v3941
      %v3988 = vsel %vm917, %v3943, %v3945
      %v3989 = vsel %vm917, %v3947, %v3949
      %v3990 = vsel %vm917, %v3951, %v3953
      %v3991 = vsel %vm917, %v3955, %v3957
      %v3992 = vsel %vm917, %v3959, %v3961
      %v3993 = vsel %vm917, %v3963, %v3965
      %v3994 = vsel %vm917, %v3967, %v3969
      %v3995 = vsel %vm917, %v3971, %v3973
      %v3996 = vsel %vm917, %v3975, %v3977
      %v3997 = vsel %vm917, %v3979, %v3981
      %4014 = vmatprep.subr.mxu0 0.0
      %4015 = vmatpush1.msra.mxu0 %v3997
      %4016 = vmatprep.subr.mxu0 0.0
      %4017 = vmatpush1.msra.mxu0 %v3996
      %4018 = vmatprep.subr.mxu0 0.0
      %4019 = vmatpush1.msra.mxu0 %v3995
      %4020 = vmatprep.subr.mxu0 0.0
      %4021 = vmatpush1.msra.mxu0 %v3994
      %4022 = vmatprep.subr.mxu0 0.0
      %4023 = vmatpush1.msra.mxu0 %v3993
      %4024 = vmatprep.subr.mxu0 0.0
      %4025 = vmatpush1.msra.mxu0 %v3992
      %4026 = vmatprep.subr.mxu0 0.0
      %4027 = vmatpush1.msra.mxu0 %v3991
      %4028 = vmatprep.subr.mxu0 0.0
      %4029 = vmatpush1.msra.mxu0 %v3990
      %4030 = vmatprep.subr.mxu0 0.0
      %4031 = vmatpush1.msra.mxu0 %v3989
      %4032 = vmatprep.subr.mxu0 0.0
      %4033 = vmatpush1.msra.mxu0 %v3988
      %4034 = vmatprep.subr.mxu0 0.0
      %4035 = vmatpush1.msra.mxu0 %v3987
      %4036 = vmatprep.subr.mxu0 0.0
      %4037 = vmatpush1.msra.mxu0 %v3986
      %4038 = vmatprep.subr.mxu0 0.0
      %4039 = vmatpush1.msra.mxu0 %v3985
      %4040 = vmatprep.subr.mxu0 0.0
      %4041 = vmatpush1.msra.mxu0 %v3984
      %4042 = vmatprep.subr.mxu0 0.0
      %4043 = vmatpush1.msra.mxu0 %v3983
      %4044 = vmatprep.subr.mxu0 0.0
      %4045 = vmatpush1.msra.mxu0 %v3982
      %4046 = vmatprep.subr.mxu0 0.0
      %4047 = vmatpush2.msra.mxu0 0.0
      %4048 = vmatprep.subr.mxu0 0.0
      %4049 = vmatpush2.msra.mxu0 0.0
      %4050 = vmatprep.subr.mxu0 0.0
      %4051 = vmatpush2.msra.mxu0 0.0
      %4052 = vmatprep.subr.mxu0 0.0
      %4053 = vmatpush2.msra.mxu0 0.0
      %4054 = vmatprep.subr.mxu0 0.0
      %4055 = vmatpush2.msra.mxu0 0.0
      %4056 = vmatprep.subr.mxu0 0.0
      %4057 = vmatpush2.msra.mxu0 0.0
      %4058 = vmatprep.subr.mxu0 0.0
      %4059 = vmatpush2.msra.mxu0 0.0
      %4060 = vmatprep.subr.mxu0 0.0
      %4061 = vmatpush2.msra.mxu0 0.0
      %4062 = vmatprep.subr.mxu0 0.0
      %4063 = vmatpush2.msra.mxu0 0.0
      %4064 = vmatprep.subr.mxu0 0.0
      %4065 = vmatpush2.msra.mxu0 0.0
      %4066 = vmatprep.subr.mxu0 0.0
      %4067 = vmatpush2.msra.mxu0 0.0
      %4068 = vmatprep.subr.mxu0 0.0
      %4069 = vmatpush2.msra.mxu0 0.0
      %4070 = vmatprep.subr.mxu0 0.0
      %4071 = vmatpush2.msra.mxu0 0.0
      %4072 = vmatprep.subr.mxu0 0.0
      %4073 = vmatpush2.msra.mxu0 0.0
      %4074 = vmatprep.subr.mxu0 0.0
      %4075 = vmatpush2.msra.mxu0 0.0
      %4076 = vmatprep.subr.mxu0 0.0
      %4077 = vmatpush2.msra.mxu0 0.0
      %4078 = vmatprep.mubr.f32.mxu0 0.0
      %4079 = vmatmul.mubr.f32.gmra.mxu0 %v3916
      %v4080 = vpop.f32.mrf.mxu0
      %v4081 = vadd.f32 0.0, %v4080
      %v4082 = vpop.f32.mrf.mxu0
      %4083 = vmatprep.mubr.f32.mxu0 0.0
      %4084 = vmatmul.mubr.f32.gmra.mxu0 %v3917
      %v4085 = vpop.f32.mrf.mxu0
      %v4086 = vadd.f32 0.0, %v4085
      %v4087 = vpop.f32.mrf.mxu0
      %4088 = vdwg.mxu0
      %v4089 = vadd.f32 %v3907, %v4081
      %v4090 = vadd.f32 %v3912, %v4086
      %v4091 = vadd.f32 %v3661, %v4089
      %v4092 = vadd.f32 %v3662, %v4090
      %s4093 = scalar_lea.vmem %s6, 32
      %v4094 = vld [vmem:[%s4093] sm:$0xff]
      %v4095 = vld [vmem:[%s4093 + $0x8] sm:$0xff]
      %s4096 = scalar_lea.vmem %s6, 80
      %v4097 = vld [vmem:[%s4096] sm:$0xff]
      %v4098 = vld [vmem:[%s4096 + $0x8] sm:$0xff]
      %4099 = vrot.lane.b32.xlu0 %v3042, 111
      %v4100 = vpop.permute.xlu0 %4099
      %4101 = vrot.lane.b32.xlu0 %v3076, 111
      %v4102 = vpop.permute.xlu0 %4101
      %4103 = vrot.lane.b32.xlu0 %v3044, 111
      %v4104 = vpop.permute.xlu0 %4103
      %4105 = vrot.lane.b32.xlu0 %v3077, 111
      %v4106 = vpop.permute.xlu0 %4105
      %4107 = vrot.lane.b32.xlu0 %v3046, 111
      %v4108 = vpop.permute.xlu0 %4107
      %4109 = vrot.lane.b32.xlu0 %v3078, 111
      %v4110 = vpop.permute.xlu0 %4109
      %4111 = vrot.lane.b32.xlu0 %v3048, 111
      %v4112 = vpop.permute.xlu0 %4111
      %4113 = vrot.lane.b32.xlu0 %v3079, 111
      %v4114 = vpop.permute.xlu0 %4113
      %4115 = vrot.lane.b32.xlu0 %v3050, 111
      %v4116 = vpop.permute.xlu0 %4115
      %4117 = vrot.lane.b32.xlu0 %v3080, 111
      %v4118 = vpop.permute.xlu0 %4117
      %4119 = vrot.lane.b32.xlu0 %v3052, 111
      %v4120 = vpop.permute.xlu0 %4119
      %4121 = vrot.lane.b32.xlu0 %v3081, 111
      %v4122 = vpop.permute.xlu0 %4121
      %4123 = vrot.lane.b32.xlu0 %v3054, 111
      %v4124 = vpop.permute.xlu0 %4123
      %4125 = vrot.lane.b32.xlu0 %v3082, 111
      %v4126 = vpop.permute.xlu0 %4125
      %4127 = vrot.lane.b32.xlu0 %v3056, 111
      %v4128 = vpop.permute.xlu0 %4127
      %4129 = vrot.lane.b32.xlu0 %v3083, 111
      %v4130 = vpop.permute.xlu0 %4129
      %4131 = vrot.lane.b32.xlu0 %v3058, 111
      %v4132 = vpop.permute.xlu0 %4131
      %4133 = vrot.lane.b32.xlu0 %v3084, 111
      %v4134 = vpop.permute.xlu0 %4133
      %4135 = vrot.lane.b32.xlu0 %v3060, 111
      %v4136 = vpop.permute.xlu0 %4135
      %4137 = vrot.lane.b32.xlu0 %v3085, 111
      %v4138 = vpop.permute.xlu0 %4137
      %4139 = vrot.lane.b32.xlu0 %v3062, 111
      %v4140 = vpop.permute.xlu0 %4139
      %4141 = vrot.lane.b32.xlu0 %v3086, 111
      %v4142 = vpop.permute.xlu0 %4141
      %4143 = vrot.lane.b32.xlu0 %v3064, 111
      %v4144 = vpop.permute.xlu0 %4143
      %4145 = vrot.lane.b32.xlu0 %v3087, 111
      %v4146 = vpop.permute.xlu0 %4145
      %4147 = vrot.lane.b32.xlu0 %v3066, 111
      %v4148 = vpop.permute.xlu0 %4147
      %4149 = vrot.lane.b32.xlu0 %v3088, 111
      %v4150 = vpop.permute.xlu0 %4149
      %4151 = vrot.lane.b32.xlu0 %v3068, 111
      %v4152 = vpop.permute.xlu0 %4151
      %4153 = vrot.lane.b32.xlu0 %v3089, 111
      %v4154 = vpop.permute.xlu0 %4153
      %4155 = vrot.lane.b32.xlu0 %v3070, 111
      %v4156 = vpop.permute.xlu0 %4155
      %4157 = vrot.lane.b32.xlu0 %v3090, 111
      %v4158 = vpop.permute.xlu0 %4157
      %4159 = vrot.lane.b32.xlu0 %v3072, 111
      %v4160 = vpop.permute.xlu0 %4159
      %4161 = vrot.lane.b32.xlu0 %v3091, 111
      %v4162 = vpop.permute.xlu0 %4161
      %v4163 = vsel %vm1238, %v4100, %v4102
      %v4164 = vsel %vm1238, %v4104, %v4106
      %v4165 = vsel %vm1238, %v4108, %v4110
      %v4166 = vsel %vm1238, %v4112, %v4114
      %v4167 = vsel %vm1238, %v4116, %v4118
      %v4168 = vsel %vm1238, %v4120, %v4122
      %v4169 = vsel %vm1238, %v4124, %v4126
      %v4170 = vsel %vm1238, %v4128, %v4130
      %v4171 = vsel %vm1238, %v4132, %v4134
      %v4172 = vsel %vm1238, %v4136, %v4138
      %v4173 = vsel %vm1238, %v4140, %v4142
      %v4174 = vsel %vm1238, %v4144, %v4146
      %v4175 = vsel %vm1238, %v4148, %v4150
      %v4176 = vsel %vm1238, %v4152, %v4154
      %v4177 = vsel %vm1238, %v4156, %v4158
      %v4178 = vsel %vm1238, %v4160, %v4162
      %4195 = vmatprep.subr.mxu0 0.0
      %4196 = vmatpush1.msra.mxu0 %v4178
      %4197 = vmatprep.subr.mxu0 0.0
      %4198 = vmatpush1.msra.mxu0 %v4177
      %4199 = vmatprep.subr.mxu0 0.0
      %4200 = vmatpush1.msra.mxu0 %v4176
      %4201 = vmatprep.subr.mxu0 0.0
      %4202 = vmatpush1.msra.mxu0 %v4175
      %4203 = vmatprep.subr.mxu0 0.0
      %4204 = vmatpush1.msra.mxu0 %v4174
      %4205 = vmatprep.subr.mxu0 0.0
      %4206 = vmatpush1.msra.mxu0 %v4173
      %4207 = vmatprep.subr.mxu0 0.0
      %4208 = vmatpush1.msra.mxu0 %v4172
      %4209 = vmatprep.subr.mxu0 0.0
      %4210 = vmatpush1.msra.mxu0 %v4171
      %4211 = vmatprep.subr.mxu0 0.0
      %4212 = vmatpush1.msra.mxu0 %v4170
      %4213 = vmatprep.subr.mxu0 0.0
      %4214 = vmatpush1.msra.mxu0 %v4169
      %4215 = vmatprep.subr.mxu0 0.0
      %4216 = vmatpush1.msra.mxu0 %v4168
      %4217 = vmatprep.subr.mxu0 0.0
      %4218 = vmatpush1.msra.mxu0 %v4167
      %4219 = vmatprep.subr.mxu0 0.0
      %4220 = vmatpush1.msra.mxu0 %v4166
      %4221 = vmatprep.subr.mxu0 0.0
      %4222 = vmatpush1.msra.mxu0 %v4165
      %4223 = vmatprep.subr.mxu0 0.0
      %4224 = vmatpush1.msra.mxu0 %v4164
      %4225 = vmatprep.subr.mxu0 0.0
      %4226 = vmatpush1.msra.mxu0 %v4163
      %4227 = vmatprep.subr.mxu0 0.0
      %4228 = vmatpush2.msra.mxu0 0.0
      %4229 = vmatprep.subr.mxu0 0.0
      %4230 = vmatpush2.msra.mxu0 0.0
      %4231 = vmatprep.subr.mxu0 0.0
      %4232 = vmatpush2.msra.mxu0 0.0
      %4233 = vmatprep.subr.mxu0 0.0
      %4234 = vmatpush2.msra.mxu0 0.0
      %4235 = vmatprep.subr.mxu0 0.0
      %4236 = vmatpush2.msra.mxu0 0.0
      %4237 = vmatprep.subr.mxu0 0.0
      %4238 = vmatpush2.msra.mxu0 0.0
      %4239 = vmatprep.subr.mxu0 0.0
      %4240 = vmatpush2.msra.mxu0 0.0
      %4241 = vmatprep.subr.mxu0 0.0
      %4242 = vmatpush2.msra.mxu0 0.0
      %4243 = vmatprep.subr.mxu0 0.0
      %4244 = vmatpush2.msra.mxu0 0.0
      %4245 = vmatprep.subr.mxu0 0.0
      %4246 = vmatpush2.msra.mxu0 0.0
      %4247 = vmatprep.subr.mxu0 0.0
      %4248 = vmatpush2.msra.mxu0 0.0
      %4249 = vmatprep.subr.mxu0 0.0
      %4250 = vmatpush2.msra.mxu0 0.0
      %4251 = vmatprep.subr.mxu0 0.0
      %4252 = vmatpush2.msra.mxu0 0.0
      %4253 = vmatprep.subr.mxu0 0.0
      %4254 = vmatpush2.msra.mxu0 0.0
      %4255 = vmatprep.subr.mxu0 0.0
      %4256 = vmatpush2.msra.mxu0 0.0
      %4257 = vmatprep.subr.mxu0 0.0
      %4258 = vmatpush2.msra.mxu0 0.0
      %4259 = vmatprep.mubr.f32.mxu0 0.0
      %4260 = vmatmul.mubr.f32.gmra.mxu0 %v4097
      %v4261 = vpop.f32.mrf.mxu0
      %v4262 = vadd.f32 0.0, %v4261
      %v4263 = vpop.f32.mrf.mxu0
      %4264 = vmatprep.mubr.f32.mxu0 0.0
      %4265 = vmatmul.mubr.f32.gmra.mxu0 %v4098
      %v4266 = vpop.f32.mrf.mxu0
      %v4267 = vadd.f32 0.0, %v4266
      %v4268 = vpop.f32.mrf.mxu0
      %4269 = vdwg.mxu0
      %4270 = vrot.lane.b32.xlu0 %v3042, 127
      %v4271 = vpop.permute.xlu0 %4270
      %4272 = vrot.lane.b32.xlu0 %v3076, 127
      %v4273 = vpop.permute.xlu0 %4272
      %4274 = vrot.lane.b32.xlu0 %v3044, 127
      %v4275 = vpop.permute.xlu0 %4274
      %4276 = vrot.lane.b32.xlu0 %v3077, 127
      %v4277 = vpop.permute.xlu0 %4276
      %4278 = vrot.lane.b32.xlu0 %v3046, 127
      %v4279 = vpop.permute.xlu0 %4278
      %4280 = vrot.lane.b32.xlu0 %v3078, 127
      %v4281 = vpop.permute.xlu0 %4280
      %4282 = vrot.lane.b32.xlu0 %v3048, 127
      %v4283 = vpop.permute.xlu0 %4282
      %4284 = vrot.lane.b32.xlu0 %v3079, 127
      %v4285 = vpop.permute.xlu0 %4284
      %4286 = vrot.lane.b32.xlu0 %v3050, 127
      %v4287 = vpop.permute.xlu0 %4286
      %4288 = vrot.lane.b32.xlu0 %v3080, 127
      %v4289 = vpop.permute.xlu0 %4288
      %4290 = vrot.lane.b32.xlu0 %v3052, 127
      %v4291 = vpop.permute.xlu0 %4290
      %4292 = vrot.lane.b32.xlu0 %v3081, 127
      %v4293 = vpop.permute.xlu0 %4292
      %4294 = vrot.lane.b32.xlu0 %v3054, 127
      %v4295 = vpop.permute.xlu0 %4294
      %4296 = vrot.lane.b32.xlu0 %v3082, 127
      %v4297 = vpop.permute.xlu0 %4296
      %4298 = vrot.lane.b32.xlu0 %v3056, 127
      %v4299 = vpop.permute.xlu0 %4298
      %4300 = vrot.lane.b32.xlu0 %v3083, 127
      %v4301 = vpop.permute.xlu0 %4300
      %4302 = vrot.lane.b32.xlu0 %v3058, 127
      %v4303 = vpop.permute.xlu0 %4302
      %4304 = vrot.lane.b32.xlu0 %v3084, 127
      %v4305 = vpop.permute.xlu0 %4304
      %4306 = vrot.lane.b32.xlu0 %v3060, 127
      %v4307 = vpop.permute.xlu0 %4306
      %4308 = vrot.lane.b32.xlu0 %v3085, 127
      %v4309 = vpop.permute.xlu0 %4308
      %4310 = vrot.lane.b32.xlu0 %v3062, 127
      %v4311 = vpop.permute.xlu0 %4310
      %4312 = vrot.lane.b32.xlu0 %v3086, 127
      %v4313 = vpop.permute.xlu0 %4312
      %4314 = vrot.lane.b32.xlu0 %v3064, 127
      %v4315 = vpop.permute.xlu0 %4314
      %4316 = vrot.lane.b32.xlu0 %v3087, 127
      %v4317 = vpop.permute.xlu0 %4316
      %4318 = vrot.lane.b32.xlu0 %v3066, 127
      %v4319 = vpop.permute.xlu0 %4318
      %4320 = vrot.lane.b32.xlu0 %v3088, 127
      %v4321 = vpop.permute.xlu0 %4320
      %4322 = vrot.lane.b32.xlu0 %v3068, 127
      %v4323 = vpop.permute.xlu0 %4322
      %4324 = vrot.lane.b32.xlu0 %v3089, 127
      %v4325 = vpop.permute.xlu0 %4324
      %4326 = vrot.lane.b32.xlu0 %v3070, 127
      %v4327 = vpop.permute.xlu0 %4326
      %4328 = vrot.lane.b32.xlu0 %v3090, 127
      %v4329 = vpop.permute.xlu0 %4328
      %4330 = vrot.lane.b32.xlu0 %v3072, 127
      %v4331 = vpop.permute.xlu0 %4330
      %4332 = vrot.lane.b32.xlu0 %v3091, 127
      %v4333 = vpop.permute.xlu0 %4332
      %v4334 = vsel %vm1455, %v4271, %v4273
      %v4335 = vsel %vm1455, %v4275, %v4277
      %v4336 = vsel %vm1455, %v4279, %v4281
      %v4337 = vsel %vm1455, %v4283, %v4285
      %v4338 = vsel %vm1455, %v4287, %v4289
      %v4339 = vsel %vm1455, %v4291, %v4293
      %v4340 = vsel %vm1455, %v4295, %v4297
      %v4341 = vsel %vm1455, %v4299, %v4301
      %v4342 = vsel %vm1455, %v4303, %v4305
      %v4343 = vsel %vm1455, %v4307, %v4309
      %v4344 = vsel %vm1455, %v4311, %v4313
      %v4345 = vsel %vm1455, %v4315, %v4317
      %v4346 = vsel %vm1455, %v4319, %v4321
      %v4347 = vsel %vm1455, %v4323, %v4325
      %v4348 = vsel %vm1455, %v4327, %v4329
      %v4349 = vsel %vm1455, %v4331, %v4333
      %4366 = vmatprep.subr.mxu0 0.0
      %4367 = vmatpush1.msra.mxu0 %v4349
      %4368 = vmatprep.subr.mxu0 0.0
      %4369 = vmatpush1.msra.mxu0 %v4348
      %4370 = vmatprep.subr.mxu0 0.0
      %4371 = vmatpush1.msra.mxu0 %v4347
      %4372 = vmatprep.subr.mxu0 0.0
      %4373 = vmatpush1.msra.mxu0 %v4346
      %4374 = vmatprep.subr.mxu0 0.0
      %4375 = vmatpush1.msra.mxu0 %v4345
      %4376 = vmatprep.subr.mxu0 0.0
      %4377 = vmatpush1.msra.mxu0 %v4344
      %4378 = vmatprep.subr.mxu0 0.0
      %4379 = vmatpush1.msra.mxu0 %v4343
      %4380 = vmatprep.subr.mxu0 0.0
      %4381 = vmatpush1.msra.mxu0 %v4342
      %4382 = vmatprep.subr.mxu0 0.0
      %4383 = vmatpush1.msra.mxu0 %v4341
      %4384 = vmatprep.subr.mxu0 0.0
      %4385 = vmatpush1.msra.mxu0 %v4340
      %4386 = vmatprep.subr.mxu0 0.0
      %4387 = vmatpush1.msra.mxu0 %v4339
      %4388 = vmatprep.subr.mxu0 0.0
      %4389 = vmatpush1.msra.mxu0 %v4338
      %4390 = vmatprep.subr.mxu0 0.0
      %4391 = vmatpush1.msra.mxu0 %v4337
      %4392 = vmatprep.subr.mxu0 0.0
      %4393 = vmatpush1.msra.mxu0 %v4336
      %4394 = vmatprep.subr.mxu0 0.0
      %4395 = vmatpush1.msra.mxu0 %v4335
      %4396 = vmatprep.subr.mxu0 0.0
      %4397 = vmatpush1.msra.mxu0 %v4334
      %4398 = vmatprep.subr.mxu0 0.0
      %4399 = vmatpush2.msra.mxu0 0.0
      %4400 = vmatprep.subr.mxu0 0.0
      %4401 = vmatpush2.msra.mxu0 0.0
      %4402 = vmatprep.subr.mxu0 0.0
      %4403 = vmatpush2.msra.mxu0 0.0
      %4404 = vmatprep.subr.mxu0 0.0
      %4405 = vmatpush2.msra.mxu0 0.0
      %4406 = vmatprep.subr.mxu0 0.0
      %4407 = vmatpush2.msra.mxu0 0.0
      %4408 = vmatprep.subr.mxu0 0.0
      %4409 = vmatpush2.msra.mxu0 0.0
      %4410 = vmatprep.subr.mxu0 0.0
      %4411 = vmatpush2.msra.mxu0 0.0
      %4412 = vmatprep.subr.mxu0 0.0
      %4413 = vmatpush2.msra.mxu0 0.0
      %4414 = vmatprep.subr.mxu0 0.0
      %4415 = vmatpush2.msra.mxu0 0.0
      %4416 = vmatprep.subr.mxu0 0.0
      %4417 = vmatpush2.msra.mxu0 0.0
      %4418 = vmatprep.subr.mxu0 0.0
      %4419 = vmatpush2.msra.mxu0 0.0
      %4420 = vmatprep.subr.mxu0 0.0
      %4421 = vmatpush2.msra.mxu0 0.0
      %4422 = vmatprep.subr.mxu0 0.0
      %4423 = vmatpush2.msra.mxu0 0.0
      %4424 = vmatprep.subr.mxu0 0.0
      %4425 = vmatpush2.msra.mxu0 0.0
      %4426 = vmatprep.subr.mxu0 0.0
      %4427 = vmatpush2.msra.mxu0 0.0
      %4428 = vmatprep.subr.mxu0 0.0
      %4429 = vmatpush2.msra.mxu0 0.0
      %4430 = vmatprep.mubr.f32.mxu0 0.0
      %4431 = vmatmul.mubr.f32.gmra.mxu0 %v4094
      %v4432 = vpop.f32.mrf.mxu0
      %v4433 = vadd.f32 %v4262, %v4432
      %v4434 = vpop.f32.mrf.mxu0
      %4435 = vmatprep.mubr.f32.mxu0 0.0
      %4436 = vmatmul.mubr.f32.gmra.mxu0 %v4095
      %v4437 = vpop.f32.mrf.mxu0
      %v4438 = vadd.f32 %v4267, %v4437
      %v4439 = vpop.f32.mrf.mxu0
      %4440 = vdwg.mxu0
      %s4441 = scalar_lea.vmem %s6, 128
      %v4442 = vld [vmem:[%s4441] sm:$0xff]
      %v4443 = vld [vmem:[%s4441 + $0x8] sm:$0xff]
      %4444 = vrot.lane.b32.xlu0 %v3042, 95
      %v4445 = vpop.permute.xlu0 %4444
      %4446 = vrot.lane.b32.xlu0 %v3076, 95
      %v4447 = vpop.permute.xlu0 %4446
      %4448 = vrot.lane.b32.xlu0 %v3044, 95
      %v4449 = vpop.permute.xlu0 %4448
      %4450 = vrot.lane.b32.xlu0 %v3077, 95
      %v4451 = vpop.permute.xlu0 %4450
      %4452 = vrot.lane.b32.xlu0 %v3046, 95
      %v4453 = vpop.permute.xlu0 %4452
      %4454 = vrot.lane.b32.xlu0 %v3078, 95
      %v4455 = vpop.permute.xlu0 %4454
      %4456 = vrot.lane.b32.xlu0 %v3048, 95
      %v4457 = vpop.permute.xlu0 %4456
      %4458 = vrot.lane.b32.xlu0 %v3079, 95
      %v4459 = vpop.permute.xlu0 %4458
      %4460 = vrot.lane.b32.xlu0 %v3050, 95
      %v4461 = vpop.permute.xlu0 %4460
      %4462 = vrot.lane.b32.xlu0 %v3080, 95
      %v4463 = vpop.permute.xlu0 %4462
      %4464 = vrot.lane.b32.xlu0 %v3052, 95
      %v4465 = vpop.permute.xlu0 %4464
      %4466 = vrot.lane.b32.xlu0 %v3081, 95
      %v4467 = vpop.permute.xlu0 %4466
      %4468 = vrot.lane.b32.xlu0 %v3054, 95
      %v4469 = vpop.permute.xlu0 %4468
      %4470 = vrot.lane.b32.xlu0 %v3082, 95
      %v4471 = vpop.permute.xlu0 %4470
      %4472 = vrot.lane.b32.xlu0 %v3056, 95
      %v4473 = vpop.permute.xlu0 %4472
      %4474 = vrot.lane.b32.xlu0 %v3083, 95
      %v4475 = vpop.permute.xlu0 %4474
      %4476 = vrot.lane.b32.xlu0 %v3058, 95
      %v4477 = vpop.permute.xlu0 %4476
      %4478 = vrot.lane.b32.xlu0 %v3084, 95
      %v4479 = vpop.permute.xlu0 %4478
      %4480 = vrot.lane.b32.xlu0 %v3060, 95
      %v4481 = vpop.permute.xlu0 %4480
      %4482 = vrot.lane.b32.xlu0 %v3085, 95
      %v4483 = vpop.permute.xlu0 %4482
      %4484 = vrot.lane.b32.xlu0 %v3062, 95
      %v4485 = vpop.permute.xlu0 %4484
      %4486 = vrot.lane.b32.xlu0 %v3086, 95
      %v4487 = vpop.permute.xlu0 %4486
      %4488 = vrot.lane.b32.xlu0 %v3064, 95
      %v4489 = vpop.permute.xlu0 %4488
      %4490 = vrot.lane.b32.xlu0 %v3087, 95
      %v4491 = vpop.permute.xlu0 %4490
      %4492 = vrot.lane.b32.xlu0 %v3066, 95
      %v4493 = vpop.permute.xlu0 %4492
      %4494 = vrot.lane.b32.xlu0 %v3088, 95
      %v4495 = vpop.permute.xlu0 %4494
      %4496 = vrot.lane.b32.xlu0 %v3068, 95
      %v4497 = vpop.permute.xlu0 %4496
      %4498 = vrot.lane.b32.xlu0 %v3089, 95
      %v4499 = vpop.permute.xlu0 %4498
      %4500 = vrot.lane.b32.xlu0 %v3070, 95
      %v4501 = vpop.permute.xlu0 %4500
      %4502 = vrot.lane.b32.xlu0 %v3090, 95
      %v4503 = vpop.permute.xlu0 %4502
      %4504 = vrot.lane.b32.xlu0 %v3072, 95
      %v4505 = vpop.permute.xlu0 %4504
      %4506 = vrot.lane.b32.xlu0 %v3091, 95
      %v4507 = vpop.permute.xlu0 %4506
      %v4508 = vsel %vm1689, %v4445, %v4447
      %v4509 = vsel %vm1689, %v4449, %v4451
      %v4510 = vsel %vm1689, %v4453, %v4455
      %v4511 = vsel %vm1689, %v4457, %v4459
      %v4512 = vsel %vm1689, %v4461, %v4463
      %v4513 = vsel %vm1689, %v4465, %v4467
      %v4514 = vsel %vm1689, %v4469, %v4471
      %v4515 = vsel %vm1689, %v4473, %v4475
      %v4516 = vsel %vm1689, %v4477, %v4479
      %v4517 = vsel %vm1689, %v4481, %v4483
      %v4518 = vsel %vm1689, %v4485, %v4487
      %v4519 = vsel %vm1689, %v4489, %v4491
      %v4520 = vsel %vm1689, %v4493, %v4495
      %v4521 = vsel %vm1689, %v4497, %v4499
      %v4522 = vsel %vm1689, %v4501, %v4503
      %v4523 = vsel %vm1689, %v4505, %v4507
      %4540 = vmatprep.subr.mxu0 0.0
      %4541 = vmatpush1.msra.mxu0 %v4523
      %4542 = vmatprep.subr.mxu0 0.0
      %4543 = vmatpush1.msra.mxu0 %v4522
      %4544 = vmatprep.subr.mxu0 0.0
      %4545 = vmatpush1.msra.mxu0 %v4521
      %4546 = vmatprep.subr.mxu0 0.0
      %4547 = vmatpush1.msra.mxu0 %v4520
      %4548 = vmatprep.subr.mxu0 0.0
      %4549 = vmatpush1.msra.mxu0 %v4519
      %4550 = vmatprep.subr.mxu0 0.0
      %4551 = vmatpush1.msra.mxu0 %v4518
      %4552 = vmatprep.subr.mxu0 0.0
      %4553 = vmatpush1.msra.mxu0 %v4517
      %4554 = vmatprep.subr.mxu0 0.0
      %4555 = vmatpush1.msra.mxu0 %v4516
      %4556 = vmatprep.subr.mxu0 0.0
      %4557 = vmatpush1.msra.mxu0 %v4515
      %4558 = vmatprep.subr.mxu0 0.0
      %4559 = vmatpush1.msra.mxu0 %v4514
      %4560 = vmatprep.subr.mxu0 0.0
      %4561 = vmatpush1.msra.mxu0 %v4513
      %4562 = vmatprep.subr.mxu0 0.0
      %4563 = vmatpush1.msra.mxu0 %v4512
      %4564 = vmatprep.subr.mxu0 0.0
      %4565 = vmatpush1.msra.mxu0 %v4511
      %4566 = vmatprep.subr.mxu0 0.0
      %4567 = vmatpush1.msra.mxu0 %v4510
      %4568 = vmatprep.subr.mxu0 0.0
      %4569 = vmatpush1.msra.mxu0 %v4509
      %4570 = vmatprep.subr.mxu0 0.0
      %4571 = vmatpush1.msra.mxu0 %v4508
      %4572 = vmatprep.subr.mxu0 0.0
      %4573 = vmatpush2.msra.mxu0 0.0
      %4574 = vmatprep.subr.mxu0 0.0
      %4575 = vmatpush2.msra.mxu0 0.0
      %4576 = vmatprep.subr.mxu0 0.0
      %4577 = vmatpush2.msra.mxu0 0.0
      %4578 = vmatprep.subr.mxu0 0.0
      %4579 = vmatpush2.msra.mxu0 0.0
      %4580 = vmatprep.subr.mxu0 0.0
      %4581 = vmatpush2.msra.mxu0 0.0
      %4582 = vmatprep.subr.mxu0 0.0
      %4583 = vmatpush2.msra.mxu0 0.0
      %4584 = vmatprep.subr.mxu0 0.0
      %4585 = vmatpush2.msra.mxu0 0.0
      %4586 = vmatprep.subr.mxu0 0.0
      %4587 = vmatpush2.msra.mxu0 0.0
      %4588 = vmatprep.subr.mxu0 0.0
      %4589 = vmatpush2.msra.mxu0 0.0
      %4590 = vmatprep.subr.mxu0 0.0
      %4591 = vmatpush2.msra.mxu0 0.0
      %4592 = vmatprep.subr.mxu0 0.0
      %4593 = vmatpush2.msra.mxu0 0.0
      %4594 = vmatprep.subr.mxu0 0.0
      %4595 = vmatpush2.msra.mxu0 0.0
      %4596 = vmatprep.subr.mxu0 0.0
      %4597 = vmatpush2.msra.mxu0 0.0
      %4598 = vmatprep.subr.mxu0 0.0
      %4599 = vmatpush2.msra.mxu0 0.0
      %4600 = vmatprep.subr.mxu0 0.0
      %4601 = vmatpush2.msra.mxu0 0.0
      %4602 = vmatprep.subr.mxu0 0.0
      %4603 = vmatpush2.msra.mxu0 0.0
      %4604 = vmatprep.mubr.f32.mxu0 0.0
      %4605 = vmatmul.mubr.f32.gmra.mxu0 %v4442
      %v4606 = vpop.f32.mrf.mxu0
      %v4607 = vadd.f32 0.0, %v4606
      %v4608 = vpop.f32.mrf.mxu0
      %4609 = vmatprep.mubr.f32.mxu0 0.0
      %4610 = vmatmul.mubr.f32.gmra.mxu0 %v4443
      %v4611 = vpop.f32.mrf.mxu0
      %v4612 = vadd.f32 0.0, %v4611
      %v4613 = vpop.f32.mrf.mxu0
      %4614 = vdwg.mxu0
      %v4615 = vadd.f32 %v4433, %v4607
      %v4616 = vadd.f32 %v4438, %v4612
      %v4617 = vsel %vm2704, %v4615, 0.0
      %v4618 = vsel %vm2704, %v4616, 0.0
      %v4619 = vadd.f32 %v4091, %v4617
      %v4620 = vadd.f32 %v4092, %v4618
      %v4621 = vld [vmem:[%s7] sm:$0xff]
      %v4622 = vld [vmem:[%s7 + $0x8] sm:$0xff]
      %4624 = vset.pattern.permute.xlu0 0
      %4625 = vperm.xlu0 %4624, %v4621
      %v4626 = vpop.permute.xlu0 %4625
      %4629 = vset.pattern.permute.xlu0 0
      %4630 = vperm.xlu0 %4629, %v4622
      %v4631 = vpop.permute.xlu0 %4630
      %v4633 = vadd.f32 %v4619, %v4626
      %v4634 = vadd.f32 %v4620, %v4631
      %v4635 = vld [vmem:[%s388] sm:$0xf]
      %v4636 = vld [vmem:[%s392] sm:$0xf]
      %4638 = vset.pattern.permute.xlu0 0
      %4639 = vperm.xlu0 %4638, %v4636
      %v4640 = vpop.permute.xlu0 %4639
      %v4642 = vsub.f32 %v4635, %v4640
      %v4643 = vld [vmem:[%s396] sm:$0xf]
      %4645 = vset.pattern.permute.xlu0 0
      %4646 = vperm.xlu0 %4645, %v4643
      %v4647 = vpop.permute.xlu0 %4646
      %v4649 = vmul.f32 %v4642, %v4647
      %v4650 = vadd.f32 %v4633, 1.0
      %v4651 = vmul.f32 %v4649, %v4650
      %v4652 = vadd.f32 %v4651, %v4634
      %4653 = vst [vmem:[%s404] sm:$0xf] %v4652
      %p4654 = scmp.lt.s32.totalorder %s23, 1
      %s4655 = scalar_select %p4654, %s23, 1
      %p4656 = scmp.lt.s32.totalorder %s24, 1
      %s4657 = scalar_select %p4656, %s24, 1
      %s4658 = smul.addr %s4655, 2
      %s4659 = sadd.s32 %s4657, %s4658
      %s4660 = smul.addr %s4659, 4
      %s4661 = scalar_lea.vmem %s8, %s4660
      // Predicated region
      $region61: #{spade_forward.1} parent=51 // pred_check
        %p4662 = pneg %p243
      $region62: #{spade_forward.1} parent=51 // pred_check_branch
        %4664 = sbr.rel (%p4662) target = $region64
      $region63: #{spade_forward.1} parent=51 // pred_region
        _
      $region64: #{spade_forward.1} parent=51 // pred_fallthru
        _
    $region52: #{spade_forward.1} parent=5 // pred_fallthru
      _
    %p4665 = scmp.le.s32.totalorder 2, %s14
    // Predicated region
    $region65: #{spade_forward.1} parent=5 // pred_check
      %p4666 = pneg %p4665
    $region66: #{spade_forward.1} parent=5 // pred_check_branch
      %4668 = sbr.rel (%p4666) target = $region68
    $region67: #{spade_forward.1} parent=5 // pred_region
      %s4669 = ssub.s32 %s14, 2
      // Predicated region
      $region69: #{spade_forward.1} parent=67 // pred_check
        %p4670 = pneg %p249
      $region70: #{spade_forward.1} parent=67 // pred_check_branch
        %4672 = sbr.rel (%p4670) target = $region72
      $region71: #{spade_forward.1} parent=67 // pred_region
        %p4673 = scmp.lt.s32.totalorder %s25, 1
        %s4674 = scalar_select %p4673, %s25, 1
        %p4675 = scmp.lt.s32.totalorder %s26, 1
        %s4676 = scalar_select %p4675, %s26, 1
        %s4677 = smul.addr %s4674, 2
        %s4678 = sadd.s32 %s4676, %s4677
        %s4679 = smul.addr %s4678, 4
        %s4680 = scalar_lea.vmem %s8, %s4679
      $region72: #{spade_forward.1} parent=67 // pred_fallthru
        _
    $region68: #{spade_forward.1} parent=5 // pred_fallthru
      _
  $region6: #{spade_forward.1} parent=0 // loop_footer
    %s18 = sadd.s32 1, %s14
  $region7: #{spade_forward.1} parent=0 // loop_footer_branch
    %13 = sbr.rel target = $region3
  $region8: #{spade_forward.1} parent=0 // loop_exit
    _

</llo_original>
